<compile_context>
chip_gen: v6e
topology: v6e:2x2x1
jax: 0.10.0
libtpu: 0.0.40
codegen_flags: <defaults>
</compile_context>

<pallas_src>
import functools

import jax
import jax.numpy as jnp
from jax import lax
from jax.experimental import pallas as pl
from jax.experimental.pallas import tpu as pltpu


def lstm_soh_kernel(x_ref, win_ref, bin_ref, wih_ref, whh_ref, blstm_ref,
                    wout_ref, bout_ref, out_ref, hn_ref, *, num_layers):
    B, T, D = x_ref.shape
    E = bin_ref.shape[-1]

    # ---- instance normalization over time (dim=1), PyTorch semantics (unbiased=False) ----
    x = x_ref[...].astype(jnp.float32)                         # (B, T, D)
    mean = jnp.mean(x, axis=1, keepdims=True)                  # (B, 1, D)
    xc = x - mean
    var = jnp.mean(xc * xc, axis=1, keepdims=True)             # var(unbiased=False)
    rstd = lax.rsqrt(var + 1e-5)                               # EUP rsqrt, no divide
    stdev = (var + 1e-5) * rstd                                # sqrt(v) = v * rsqrt(v)
    xn = xc * rstd

    # ---- input linear: single (B*T, D) @ (D, E) matmul ----
    seq = (jnp.dot(xn.reshape(B * T, D), win_ref[...],
                   preferred_element_type=jnp.float32)
           + bin_ref[...]).reshape(B, T, E)                    # stays in registers

    # Gate-column scale: 0.5 on i/f/o, 1.0 on g.  With pre-scaled activations a
    # single tanh over all 4*E lanes yields every gate:
    #   sigmoid(x) = 0.5 + 0.5 * tanh(x / 2).
    lane = lax.broadcasted_iota(jnp.int32, (1, 4 * E), 1)
    half = jnp.where((lane >= 2 * E) & (lane < 3 * E),
                     jnp.float32(1.0), jnp.float32(0.5))       # (1, 4E)

    # ---- stacked LSTM; recurrence fully unrolled, sequence kept as values ----
    h = jnp.zeros((B, E), jnp.float32)
    for layer in range(num_layers):
        wih = wih_ref[layer]                                   # (E, 4E)
        whh_s = whh_ref[layer] * half                          # (E, 4E), scaled once, off serial path
        b = blstm_ref[layer]                                   # (1, 4E)

        # Hoisted x @ W_ih (+ bias fold, + gate half-scale): one big matmul per
        # layer, entirely off the serial recurrence path.
        pre = ((jnp.dot(seq.reshape(B * T, E), wih,
                        preferred_element_type=jnp.float32) + b) * half
               ).reshape(B, T, 4 * E)                          # (B, T, 4E)

        h = jnp.zeros((B, E), jnp.float32)
        c = jnp.zeros((B, E), jnp.float32)
        hs = []
        for t in range(T):                                     # static unroll (T small)
            # pre[:, t, :] has no dependence on h/c -> scheduler can prefetch it.
            z = pre[:, t, :] + jnp.dot(h, whh_s,
                                       preferred_element_type=jnp.float32)
            th = jnp.tanh(z)                                   # one EUP pass, all 4 gates
            s = 0.5 * th + 0.5                                 # sigmoid of original i/f/o pre-acts
            i = s[:, 0:E]
            f = s[:, E:2 * E]
            o = s[:, 3 * E:4 * E]
            g = th[:, 2 * E:3 * E]
            c = f * c + i * g
            h = o * jnp.tanh(c)
            hs.append(h)
        seq = jnp.stack(hs, axis=1)                            # (B, T, E), once per layer

    # ---- output linear + de-normalization ----
    out = (jnp.dot(seq.reshape(B * T, E), wout_ref[...],
                   preferred_element_type=jnp.float32) + bout_ref[...]
           ).reshape(B, T, D)
    out_ref[...] = (out * stdev + mean).astype(out_ref.dtype)

    # hn[-1] * stdev.squeeze(1) + means.squeeze(1)   (requires D == E)
    hn_ref[...] = (h * stdev[:, 0, :] + mean[:, 0, :]).astype(hn_ref.dtype)


def lstm_soh_forward(x, params, num_layers, *, batch_block=None):
    B, T, D = x.shape
    E = params["w_in"].shape[1]
    # The module's `hn[-1] * stdev.squeeze(1)` only broadcasts when input_dim == embed_dim.
    assert D == E, "LSTM_SOH de-normalized hn requires input_dim == embed_dim"

    # Default: whole batch in one program (best for 1-TC v5e/v6e at tiny B).
    # For large B on v7x, pass batch_block=B//2 (or smaller) to shard across TensorCores.
    bb = B if batch_block is None else batch_block
    assert B % bb == 0, "batch_block must divide B"
    grid = (B // bb,)

    def full(a):
        return pl.BlockSpec(a.shape, lambda i, _nd=a.ndim: (0,) * _nd)

    kernel = functools.partial(lstm_soh_kernel, num_layers=num_layers)
    return pl.pallas_call(
        kernel,
        out_shape=(jax.ShapeDtypeStruct((B, T, D), x.dtype),
                   jax.ShapeDtypeStruct((B, E), x.dtype)),
        grid=grid,
        in_specs=[pl.BlockSpec((bb, T, D), lambda i: (i, 0, 0)),
                  full(params["w_in"]), full(params["b_in"]),
                  full(params["w_ih"]), full(params["w_hh"]),
                  full(params["b_lstm"]),
                  full(params["w_out"]), full(params["b_out"])],
        out_specs=(pl.BlockSpec((bb, T, D), lambda i: (i, 0, 0)),
                   pl.BlockSpec((bb, E), lambda i: (i, 0))),
        compiler_params=pltpu.CompilerParams(
            dimension_semantics=("parallel",)),
    )(x, params["w_in"], params["b_in"], params["w_ih"], params["w_hh"],
      params["b_lstm"], params["w_out"], params["b_out"])


def reference(x, params, num_layers):
    """Pure-JAX reference mirroring the PyTorch forward (PPA=False)."""
    B, T, D = x.shape
    E = params["w_in"].shape[1]
    means = jnp.mean(x, axis=1, keepdims=True)
    xc = x - means
    stdev = jnp.sqrt(jnp.var(xc, axis=1, keepdims=True) + 1e-5)
    xn = xc / stdev
    seq = xn @ params["w_in"] + params["b_in"][0]
    h_last = jnp.zeros((B, E), jnp.float32)
    for layer in range(num_layers):
        h = jnp.zeros((B, E), jnp.float32)
        c = jnp.zeros((B, E), jnp.float32)
        outs = []
        for t in range(T):
            gates = (seq[:, t, :] @ params["w_ih"][layer]
                     + h @ params["w_hh"][layer]
                     + params["b_lstm"][layer])
            i = jax.nn.sigmoid(gates[:, :E])
            f = jax.nn.sigmoid(gates[:, E:2 * E])
            g = jnp.tanh(gates[:, 2 * E:3 * E])
            o = jax.nn.sigmoid(gates[:, 3 * E:])
            c = f * c + i * g
            h = o * jnp.tanh(c)
            outs.append(h)
        seq = jnp.stack(outs, axis=1)
        h_last = h
    out = seq @ params["w_out"] + params["b_out"][0]
    out = out * stdev + means
    hn = h_last * stdev[:, 0, :] + means[:, 0, :]
    return out, hn


if __name__ == "__main__":
    B, T = 2, 8          # batch, sequence length
    D = 32               # input_dim
    E = 32               # embed_dim (== hidden size)
    L = 2                # num_layers

    key = jax.random.PRNGKey(0)
    ks = jax.random.split(key, 8)
    s = 0.1
    params = {
        "w_in":   jax.random.normal(ks[0], (D, E), jnp.float32) * s,         # input_linear.weight.T
        "b_in":   jax.random.normal(ks[1], (1, E), jnp.float32) * s,         # input_linear.bias
        "w_ih":   jax.random.normal(ks[2], (L, E, 4 * E), jnp.float32) * s,  # weight_ih_l{k}.T
        "w_hh":   jax.random.normal(ks[3], (L, E, 4 * E), jnp.float32) * s,  # weight_hh_l{k}.T
        "b_lstm": jax.random.normal(ks[4], (L, 1, 4 * E), jnp.float32) * s,  # b_ih + b_hh
        "w_out":  jax.random.normal(ks[5], (E, D), jnp.float32) * s,         # output_linear.weight.T
        "b_out":  jax.random.normal(ks[6], (1, D), jnp.float32) * s,         # output_linear.bias
    }
    x = jax.random.normal(ks[7], (B, T, D), jnp.float32)

    out, hn = lstm_soh_forward(x, params, num_layers=L)
    jax.block_until_ready((out, hn))

    ref_out, ref_hn = reference(x, params, L)
    assert out.shape == (B, T, D) and hn.shape == (B, E)
    assert jnp.allclose(out, ref_out, rtol=1e-3, atol=1e-3)
    assert jnp.allclose(hn, ref_hn, rtol=1e-3, atol=1e-3)
    print("KERNEL_OK")
</pallas_src>

<mosaic_0001>
module attributes {stable_mosaic.version = 11 : i64} {
  func.func @lstm_soh_kernel(%arg0: i32, %arg1: memref<2x8x32xf32, #tpu.memory_space<vmem>>, %arg2: memref<32x32xf32, #tpu.memory_space<vmem>>, %arg3: memref<1x32xf32, #tpu.memory_space<vmem>>, %arg4: memref<2x32x128xf32, #tpu.memory_space<vmem>>, %arg5: memref<2x32x128xf32, #tpu.memory_space<vmem>>, %arg6: memref<2x1x128xf32, #tpu.memory_space<vmem>>, %arg7: memref<32x32xf32, #tpu.memory_space<vmem>>, %arg8: memref<1x32xf32, #tpu.memory_space<vmem>>, %arg9: memref<2x8x32xf32, #tpu.memory_space<vmem>>, %arg10: memref<2x32xf32, #tpu.memory_space<vmem>>) attributes {dimension_semantics = [#tpu.dimension_semantics<parallel>], iteration_bounds = array<i64: 1>, scalar_prefetch = 0 : i64, scratch_operands = 0 : i64, tpu.core_type = #tpu.core_type<tc>, window_params = [{transform_indices = @transform_0, window_bounds = array<i64: 2, 8, 32>}, {pipeline_mode = #tpu.pipeline_mode<synchronous>, transform_indices = @transform_1, window_bounds = array<i64: 32, 32>}, {pipeline_mode = #tpu.pipeline_mode<synchronous>, transform_indices = @transform_2, window_bounds = array<i64: 1, 32>}, {pipeline_mode = #tpu.pipeline_mode<synchronous>, transform_indices = @transform_3, window_bounds = array<i64: 2, 32, 128>}, {pipeline_mode = #tpu.pipeline_mode<synchronous>, transform_indices = @transform_4, window_bounds = array<i64: 2, 32, 128>}, {pipeline_mode = #tpu.pipeline_mode<synchronous>, transform_indices = @transform_5, window_bounds = array<i64: 2, 1, 128>}, {pipeline_mode = #tpu.pipeline_mode<synchronous>, transform_indices = @transform_6, window_bounds = array<i64: 32, 32>}, {pipeline_mode = #tpu.pipeline_mode<synchronous>, transform_indices = @transform_7, window_bounds = array<i64: 1, 32>}, {transform_indices = @transform_8, window_bounds = array<i64: 2, 8, 32>}, {transform_indices = @transform_9, window_bounds = array<i64: 2, 32>}]} {
    %c0 = arith.constant 0 : index
    %c0_0 = arith.constant 0 : index
    %c0_1 = arith.constant 0 : index
    %0 = vector.load %arg1[%c0, %c0_0, %c0_1] : memref<2x8x32xf32, #tpu.memory_space<vmem>>, vector<2x8x32xf32>
    %cst = arith.constant dense<0.000000e+00> : vector<2x32xf32>
    %1 = vector.multi_reduction <add>, %0, %cst [1] : vector<2x8x32xf32> to vector<2x32xf32>
    %2 = vector.shape_cast %1 : vector<2x32xf32> to vector<2x1x32xf32>
    %cst_2 = arith.constant 8.000000e+00 : f32
    %3 = vector.broadcast %cst_2 : f32 to vector<2x1x32xf32>
    %4 = arith.divf %2, %3 : vector<2x1x32xf32>
    %5 = vector.broadcast %4 : vector<2x1x32xf32> to vector<2x8x32xf32>
    %6 = arith.subf %0, %5 : vector<2x8x32xf32>
    %7 = arith.mulf %6, %6 : vector<2x8x32xf32>
    %cst_3 = arith.constant dense<0.000000e+00> : vector<2x32xf32>
    %8 = vector.multi_reduction <add>, %7, %cst_3 [1] : vector<2x8x32xf32> to vector<2x32xf32>
    %9 = vector.shape_cast %8 : vector<2x32xf32> to vector<2x1x32xf32>
    %cst_4 = arith.constant 8.000000e+00 : f32
    %10 = vector.broadcast %cst_4 : f32 to vector<2x1x32xf32>
    %11 = arith.divf %9, %10 : vector<2x1x32xf32>
    %cst_5 = arith.constant 9.99999974E-6 : f32
    %12 = vector.broadcast %cst_5 : f32 to vector<2x1x32xf32>
    %13 = arith.addf %11, %12 : vector<2x1x32xf32>
    %14 = math.rsqrt %13 : vector<2x1x32xf32>
    %cst_6 = arith.constant 9.99999974E-6 : f32
    %15 = vector.broadcast %cst_6 : f32 to vector<2x1x32xf32>
    %16 = arith.addf %11, %15 : vector<2x1x32xf32>
    %17 = arith.mulf %16, %14 : vector<2x1x32xf32>
    %18 = vector.broadcast %14 : vector<2x1x32xf32> to vector<2x8x32xf32>
    %19 = arith.mulf %6, %18 : vector<2x8x32xf32>
    %20 = vector.shape_cast %19 : vector<2x8x32xf32> to vector<16x32xf32>
    %c0_7 = arith.constant 0 : index
    %c0_8 = arith.constant 0 : index
    %21 = vector.load %arg2[%c0_7, %c0_8] : memref<32x32xf32, #tpu.memory_space<vmem>>, vector<32x32xf32>
    %cst_9 = arith.constant dense<0.000000e+00> : vector<16x32xf32>
    %22 = tpu.matmul %20, %21, %cst_9 {dimension_numbers = #tpu.dot_dimension_numbers<[1], [0], [0], [1], [0, 0, 1, 1], [], []>} : vector<16x32xf32>, vector<32x32xf32>, vector<16x32xf32> -> vector<16x32xf32>
    %c0_10 = arith.constant 0 : index
    %c0_11 = arith.constant 0 : index
    %23 = vector.load %arg3[%c0_10, %c0_11] : memref<1x32xf32, #tpu.memory_space<vmem>>, vector<1x32xf32>
    %24 = vector.broadcast %23 : vector<1x32xf32> to vector<16x32xf32>
    %25 = arith.addf %22, %24 : vector<16x32xf32>
    %26 = vector.shape_cast %25 : vector<16x32xf32> to vector<2x8x32xf32>
    %27 = tpu.iota {dimensions = array<i32: 1>} : vector<1x128xi32>
    %c64_i32 = arith.constant 64 : i32
    %28 = vector.broadcast %c64_i32 : i32 to vector<1x128xi32>
    %29 = arith.cmpi sge, %27, %28 : vector<1x128xi32>
    %c96_i32 = arith.constant 96 : i32
    %30 = vector.broadcast %c96_i32 : i32 to vector<1x128xi32>
    %31 = arith.cmpi slt, %27, %30 : vector<1x128xi32>
    %32 = arith.andi %29, %31 : vector<1x128xi1>
    %cst_12 = arith.constant 1.000000e+00 : f32
    %cst_13 = arith.constant 5.000000e-01 : f32
    %33 = vector.broadcast %cst_12 : f32 to vector<1x128xf32>
    %34 = vector.broadcast %cst_13 : f32 to vector<1x128xf32>
    %35 = arith.select %32, %33, %34 : vector<1x128xi1>, vector<1x128xf32>
    %c0_14 = arith.constant 0 : index
    %c0_15 = arith.constant 0 : index
    %c0_16 = arith.constant 0 : index
    %36 = vector.load %arg4[%c0_14, %c0_15, %c0_16] : memref<2x32x128xf32, #tpu.memory_space<vmem>>, vector<1x32x128xf32>
    %37 = vector.shape_cast %36 : vector<1x32x128xf32> to vector<32x128xf32>
    %c0_17 = arith.constant 0 : index
    %c0_18 = arith.constant 0 : index
    %c0_19 = arith.constant 0 : index
    %38 = vector.load %arg5[%c0_17, %c0_18, %c0_19] : memref<2x32x128xf32, #tpu.memory_space<vmem>>, vector<1x32x128xf32>
    %39 = vector.shape_cast %38 : vector<1x32x128xf32> to vector<32x128xf32>
    %40 = vector.broadcast %35 : vector<1x128xf32> to vector<32x128xf32>
    %41 = arith.mulf %39, %40 : vector<32x128xf32>
    %c0_20 = arith.constant 0 : index
    %c0_21 = arith.constant 0 : index
    %c0_22 = arith.constant 0 : index
    %42 = vector.load %arg6[%c0_20, %c0_21, %c0_22] : memref<2x1x128xf32, #tpu.memory_space<vmem>>, vector<1x1x128xf32>
    %43 = vector.shape_cast %42 : vector<1x1x128xf32> to vector<1x128xf32>
    %44 = vector.shape_cast %26 : vector<2x8x32xf32> to vector<16x32xf32>
    %cst_23 = arith.constant dense<0.000000e+00> : vector<16x128xf32>
    %45 = tpu.matmul %44, %37, %cst_23 {dimension_numbers = #tpu.dot_dimension_numbers<[1], [0], [0], [1], [0, 0, 1, 1], [], []>} : vector<16x32xf32>, vector<32x128xf32>, vector<16x128xf32> -> vector<16x128xf32>
    %46 = vector.broadcast %43 : vector<1x128xf32> to vector<16x128xf32>
    %47 = arith.addf %45, %46 : vector<16x128xf32>
    %48 = vector.broadcast %35 : vector<1x128xf32> to vector<16x128xf32>
    %49 = arith.mulf %47, %48 : vector<16x128xf32>
    %50 = vector.shape_cast %49 : vector<16x128xf32> to vector<2x8x128xf32>
    %cst_24 = arith.constant 0.000000e+00 : f32
    %51 = vector.broadcast %cst_24 : f32 to vector<2x32xf32>
    %cst_25 = arith.constant 0.000000e+00 : f32
    %52 = vector.broadcast %cst_25 : f32 to vector<2x32xf32>
    %53 = vector.extract_strided_slice %50 {offsets = [0, 0, 0], sizes = [2, 1, 128], strides = [1, 1, 1]} : vector<2x8x128xf32> to vector<2x1x128xf32>
    %54 = vector.shape_cast %53 : vector<2x1x128xf32> to vector<2x128xf32>
    %cst_26 = arith.constant dense<0.000000e+00> : vector<2x128xf32>
    %55 = tpu.matmul %51, %41, %cst_26 {dimension_numbers = #tpu.dot_dimension_numbers<[1], [0], [0], [1], [0, 0, 1, 1], [], []>} : vector<2x32xf32>, vector<32x128xf32>, vector<2x128xf32> -> vector<2x128xf32>
    %56 = arith.addf %54, %55 : vector<2x128xf32>
    %57 = math.tanh %56 : vector<2x128xf32>
    %cst_27 = arith.constant 5.000000e-01 : f32
    %58 = vector.broadcast %cst_27 : f32 to vector<2x128xf32>
    %59 = arith.mulf %58, %57 : vector<2x128xf32>
    %cst_28 = arith.constant 5.000000e-01 : f32
    %60 = vector.broadcast %cst_28 : f32 to vector<2x128xf32>
    %61 = arith.addf %59, %60 : vector<2x128xf32>
    %62 = vector.extract_strided_slice %61 {offsets = [0, 0], sizes = [2, 32], strides = [1, 1]} : vector<2x128xf32> to vector<2x32xf32>
    %63 = vector.extract_strided_slice %61 {offsets = [0, 32], sizes = [2, 32], strides = [1, 1]} : vector<2x128xf32> to vector<2x32xf32>
    %64 = vector.extract_strided_slice %61 {offsets = [0, 96], sizes = [2, 32], strides = [1, 1]} : vector<2x128xf32> to vector<2x32xf32>
    %65 = vector.extract_strided_slice %57 {offsets = [0, 64], sizes = [2, 32], strides = [1, 1]} : vector<2x128xf32> to vector<2x32xf32>
    %66 = arith.mulf %63, %52 : vector<2x32xf32>
    %67 = arith.mulf %62, %65 : vector<2x32xf32>
    %68 = arith.addf %66, %67 : vector<2x32xf32>
    %69 = math.tanh %68 : vector<2x32xf32>
    %70 = arith.mulf %64, %69 : vector<2x32xf32>
    %71 = vector.extract_strided_slice %50 {offsets = [0, 1, 0], sizes = [2, 1, 128], strides = [1, 1, 1]} : vector<2x8x128xf32> to vector<2x1x128xf32>
    %72 = vector.shape_cast %71 : vector<2x1x128xf32> to vector<2x128xf32>
    %cst_29 = arith.constant dense<0.000000e+00> : vector<2x128xf32>
    %73 = tpu.matmul %70, %41, %cst_29 {dimension_numbers = #tpu.dot_dimension_numbers<[1], [0], [0], [1], [0, 0, 1, 1], [], []>} : vector<2x32xf32>, vector<32x128xf32>, vector<2x128xf32> -> vector<2x128xf32>
    %74 = arith.addf %72, %73 : vector<2x128xf32>
    %75 = math.tanh %74 : vector<2x128xf32>
    %cst_30 = arith.constant 5.000000e-01 : f32
    %76 = vector.broadcast %cst_30 : f32 to vector<2x128xf32>
    %77 = arith.mulf %76, %75 : vector<2x128xf32>
    %cst_31 = arith.constant 5.000000e-01 : f32
    %78 = vector.broadcast %cst_31 : f32 to vector<2x128xf32>
    %79 = arith.addf %77, %78 : vector<2x128xf32>
    %80 = vector.extract_strided_slice %79 {offsets = [0, 0], sizes = [2, 32], strides = [1, 1]} : vector<2x128xf32> to vector<2x32xf32>
    %81 = vector.extract_strided_slice %79 {offsets = [0, 32], sizes = [2, 32], strides = [1, 1]} : vector<2x128xf32> to vector<2x32xf32>
    %82 = vector.extract_strided_slice %79 {offsets = [0, 96], sizes = [2, 32], strides = [1, 1]} : vector<2x128xf32> to vector<2x32xf32>
    %83 = vector.extract_strided_slice %75 {offsets = [0, 64], sizes = [2, 32], strides = [1, 1]} : vector<2x128xf32> to vector<2x32xf32>
    %84 = arith.mulf %81, %68 : vector<2x32xf32>
    %85 = arith.mulf %80, %83 : vector<2x32xf32>
    %86 = arith.addf %84, %85 : vector<2x32xf32>
    %87 = math.tanh %86 : vector<2x32xf32>
    %88 = arith.mulf %82, %87 : vector<2x32xf32>
    %89 = vector.extract_strided_slice %50 {offsets = [0, 2, 0], sizes = [2, 1, 128], strides = [1, 1, 1]} : vector<2x8x128xf32> to vector<2x1x128xf32>
    %90 = vector.shape_cast %89 : vector<2x1x128xf32> to vector<2x128xf32>
    %cst_32 = arith.constant dense<0.000000e+00> : vector<2x128xf32>
    %91 = tpu.matmul %88, %41, %cst_32 {dimension_numbers = #tpu.dot_dimension_numbers<[1], [0], [0], [1], [0, 0, 1, 1], [], []>} : vector<2x32xf32>, vector<32x128xf32>, vector<2x128xf32> -> vector<2x128xf32>
    %92 = arith.addf %90, %91 : vector<2x128xf32>
    %93 = math.tanh %92 : vector<2x128xf32>
    %cst_33 = arith.constant 5.000000e-01 : f32
    %94 = vector.broadcast %cst_33 : f32 to vector<2x128xf32>
    %95 = arith.mulf %94, %93 : vector<2x128xf32>
    %cst_34 = arith.constant 5.000000e-01 : f32
    %96 = vector.broadcast %cst_34 : f32 to vector<2x128xf32>
    %97 = arith.addf %95, %96 : vector<2x128xf32>
    %98 = vector.extract_strided_slice %97 {offsets = [0, 0], sizes = [2, 32], strides = [1, 1]} : vector<2x128xf32> to vector<2x32xf32>
    %99 = vector.extract_strided_slice %97 {offsets = [0, 32], sizes = [2, 32], strides = [1, 1]} : vector<2x128xf32> to vector<2x32xf32>
    %100 = vector.extract_strided_slice %97 {offsets = [0, 96], sizes = [2, 32], strides = [1, 1]} : vector<2x128xf32> to vector<2x32xf32>
    %101 = vector.extract_strided_slice %93 {offsets = [0, 64], sizes = [2, 32], strides = [1, 1]} : vector<2x128xf32> to vector<2x32xf32>
    %102 = arith.mulf %99, %86 : vector<2x32xf32>
    %103 = arith.mulf %98, %101 : vector<2x32xf32>
    %104 = arith.addf %102, %103 : vector<2x32xf32>
    %105 = math.tanh %104 : vector<2x32xf32>
    %106 = arith.mulf %100, %105 : vector<2x32xf32>
    %107 = vector.extract_strided_slice %50 {offsets = [0, 3, 0], sizes = [2, 1, 128], strides = [1, 1, 1]} : vector<2x8x128xf32> to vector<2x1x128xf32>
    %108 = vector.shape_cast %107 : vector<2x1x128xf32> to vector<2x128xf32>
    %cst_35 = arith.constant dense<0.000000e+00> : vector<2x128xf32>
    %109 = tpu.matmul %106, %41, %cst_35 {dimension_numbers = #tpu.dot_dimension_numbers<[1], [0], [0], [1], [0, 0, 1, 1], [], []>} : vector<2x32xf32>, vector<32x128xf32>, vector<2x128xf32> -> vector<2x128xf32>
    %110 = arith.addf %108, %109 : vector<2x128xf32>
    %111 = math.tanh %110 : vector<2x128xf32>
    %cst_36 = arith.constant 5.000000e-01 : f32
    %112 = vector.broadcast %cst_36 : f32 to vector<2x128xf32>
    %113 = arith.mulf %112, %111 : vector<2x128xf32>
    %cst_37 = arith.constant 5.000000e-01 : f32
    %114 = vector.broadcast %cst_37 : f32 to vector<2x128xf32>
    %115 = arith.addf %113, %114 : vector<2x128xf32>
    %116 = vector.extract_strided_slice %115 {offsets = [0, 0], sizes = [2, 32], strides = [1, 1]} : vector<2x128xf32> to vector<2x32xf32>
    %117 = vector.extract_strided_slice %115 {offsets = [0, 32], sizes = [2, 32], strides = [1, 1]} : vector<2x128xf32> to vector<2x32xf32>
    %118 = vector.extract_strided_slice %115 {offsets = [0, 96], sizes = [2, 32], strides = [1, 1]} : vector<2x128xf32> to vector<2x32xf32>
    %119 = vector.extract_strided_slice %111 {offsets = [0, 64], sizes = [2, 32], strides = [1, 1]} : vector<2x128xf32> to vector<2x32xf32>
    %120 = arith.mulf %117, %104 : vector<2x32xf32>
    %121 = arith.mulf %116, %119 : vector<2x32xf32>
    %122 = arith.addf %120, %121 : vector<2x32xf32>
    %123 = math.tanh %122 : vector<2x32xf32>
    %124 = arith.mulf %118, %123 : vector<2x32xf32>
    %125 = vector.extract_strided_slice %50 {offsets = [0, 4, 0], sizes = [2, 1, 128], strides = [1, 1, 1]} : vector<2x8x128xf32> to vector<2x1x128xf32>
    %126 = vector.shape_cast %125 : vector<2x1x128xf32> to vector<2x128xf32>
    %cst_38 = arith.constant dense<0.000000e+00> : vector<2x128xf32>
    %127 = tpu.matmul %124, %41, %cst_38 {dimension_numbers = #tpu.dot_dimension_numbers<[1], [0], [0], [1], [0, 0, 1, 1], [], []>} : vector<2x32xf32>, vector<32x128xf32>, vector<2x128xf32> -> vector<2x128xf32>
    %128 = arith.addf %126, %127 : vector<2x128xf32>
    %129 = math.tanh %128 : vector<2x128xf32>
    %cst_39 = arith.constant 5.000000e-01 : f32
    %130 = vector.broadcast %cst_39 : f32 to vector<2x128xf32>
    %131 = arith.mulf %130, %129 : vector<2x128xf32>
    %cst_40 = arith.constant 5.000000e-01 : f32
    %132 = vector.broadcast %cst_40 : f32 to vector<2x128xf32>
    %133 = arith.addf %131, %132 : vector<2x128xf32>
    %134 = vector.extract_strided_slice %133 {offsets = [0, 0], sizes = [2, 32], strides = [1, 1]} : vector<2x128xf32> to vector<2x32xf32>
    %135 = vector.extract_strided_slice %133 {offsets = [0, 32], sizes = [2, 32], strides = [1, 1]} : vector<2x128xf32> to vector<2x32xf32>
    %136 = vector.extract_strided_slice %133 {offsets = [0, 96], sizes = [2, 32], strides = [1, 1]} : vector<2x128xf32> to vector<2x32xf32>
    %137 = vector.extract_strided_slice %129 {offsets = [0, 64], sizes = [2, 32], strides = [1, 1]} : vector<2x128xf32> to vector<2x32xf32>
    %138 = arith.mulf %135, %122 : vector<2x32xf32>
    %139 = arith.mulf %134, %137 : vector<2x32xf32>
    %140 = arith.addf %138, %139 : vector<2x32xf32>
    %141 = math.tanh %140 : vector<2x32xf32>
    %142 = arith.mulf %136, %141 : vector<2x32xf32>
    %143 = vector.extract_strided_slice %50 {offsets = [0, 5, 0], sizes = [2, 1, 128], strides = [1, 1, 1]} : vector<2x8x128xf32> to vector<2x1x128xf32>
    %144 = vector.shape_cast %143 : vector<2x1x128xf32> to vector<2x128xf32>
    %cst_41 = arith.constant dense<0.000000e+00> : vector<2x128xf32>
    %145 = tpu.matmul %142, %41, %cst_41 {dimension_numbers = #tpu.dot_dimension_numbers<[1], [0], [0], [1], [0, 0, 1, 1], [], []>} : vector<2x32xf32>, vector<32x128xf32>, vector<2x128xf32> -> vector<2x128xf32>
    %146 = arith.addf %144, %145 : vector<2x128xf32>
    %147 = math.tanh %146 : vector<2x128xf32>
    %cst_42 = arith.constant 5.000000e-01 : f32
    %148 = vector.broadcast %cst_42 : f32 to vector<2x128xf32>
    %149 = arith.mulf %148, %147 : vector<2x128xf32>
    %cst_43 = arith.constant 5.000000e-01 : f32
    %150 = vector.broadcast %cst_43 : f32 to vector<2x128xf32>
    %151 = arith.addf %149, %150 : vector<2x128xf32>
    %152 = vector.extract_strided_slice %151 {offsets = [0, 0], sizes = [2, 32], strides = [1, 1]} : vector<2x128xf32> to vector<2x32xf32>
    %153 = vector.extract_strided_slice %151 {offsets = [0, 32], sizes = [2, 32], strides = [1, 1]} : vector<2x128xf32> to vector<2x32xf32>
    %154 = vector.extract_strided_slice %151 {offsets = [0, 96], sizes = [2, 32], strides = [1, 1]} : vector<2x128xf32> to vector<2x32xf32>
    %155 = vector.extract_strided_slice %147 {offsets = [0, 64], sizes = [2, 32], strides = [1, 1]} : vector<2x128xf32> to vector<2x32xf32>
    %156 = arith.mulf %153, %140 : vector<2x32xf32>
    %157 = arith.mulf %152, %155 : vector<2x32xf32>
    %158 = arith.addf %156, %157 : vector<2x32xf32>
    %159 = math.tanh %158 : vector<2x32xf32>
    %160 = arith.mulf %154, %159 : vector<2x32xf32>
    %161 = vector.extract_strided_slice %50 {offsets = [0, 6, 0], sizes = [2, 1, 128], strides = [1, 1, 1]} : vector<2x8x128xf32> to vector<2x1x128xf32>
    %162 = vector.shape_cast %161 : vector<2x1x128xf32> to vector<2x128xf32>
    %cst_44 = arith.constant dense<0.000000e+00> : vector<2x128xf32>
    %163 = tpu.matmul %160, %41, %cst_44 {dimension_numbers = #tpu.dot_dimension_numbers<[1], [0], [0], [1], [0, 0, 1, 1], [], []>} : vector<2x32xf32>, vector<32x128xf32>, vector<2x128xf32> -> vector<2x128xf32>
    %164 = arith.addf %162, %163 : vector<2x128xf32>
    %165 = math.tanh %164 : vector<2x128xf32>
    %cst_45 = arith.constant 5.000000e-01 : f32
    %166 = vector.broadcast %cst_45 : f32 to vector<2x128xf32>
    %167 = arith.mulf %166, %165 : vector<2x128xf32>
    %cst_46 = arith.constant 5.000000e-01 : f32
    %168 = vector.broadcast %cst_46 : f32 to vector<2x128xf32>
    %169 = arith.addf %167, %168 : vector<2x128xf32>
    %170 = vector.extract_strided_slice %169 {offsets = [0, 0], sizes = [2, 32], strides = [1, 1]} : vector<2x128xf32> to vector<2x32xf32>
    %171 = vector.extract_strided_slice %169 {offsets = [0, 32], sizes = [2, 32], strides = [1, 1]} : vector<2x128xf32> to vector<2x32xf32>
    %172 = vector.extract_strided_slice %169 {offsets = [0, 96], sizes = [2, 32], strides = [1, 1]} : vector<2x128xf32> to vector<2x32xf32>
    %173 = vector.extract_strided_slice %165 {offsets = [0, 64], sizes = [2, 32], strides = [1, 1]} : vector<2x128xf32> to vector<2x32xf32>
    %174 = arith.mulf %171, %158 : vector<2x32xf32>
    %175 = arith.mulf %170, %173 : vector<2x32xf32>
    %176 = arith.addf %174, %175 : vector<2x32xf32>
    %177 = math.tanh %176 : vector<2x32xf32>
    %178 = arith.mulf %172, %177 : vector<2x32xf32>
    %179 = vector.extract_strided_slice %50 {offsets = [0, 7, 0], sizes = [2, 1, 128], strides = [1, 1, 1]} : vector<2x8x128xf32> to vector<2x1x128xf32>
    %180 = vector.shape_cast %179 : vector<2x1x128xf32> to vector<2x128xf32>
    %cst_47 = arith.constant dense<0.000000e+00> : vector<2x128xf32>
    %181 = tpu.matmul %178, %41, %cst_47 {dimension_numbers = #tpu.dot_dimension_numbers<[1], [0], [0], [1], [0, 0, 1, 1], [], []>} : vector<2x32xf32>, vector<32x128xf32>, vector<2x128xf32> -> vector<2x128xf32>
    %182 = arith.addf %180, %181 : vector<2x128xf32>
    %183 = math.tanh %182 : vector<2x128xf32>
    %cst_48 = arith.constant 5.000000e-01 : f32
    %184 = vector.broadcast %cst_48 : f32 to vector<2x128xf32>
    %185 = arith.mulf %184, %183 : vector<2x128xf32>
    %cst_49 = arith.constant 5.000000e-01 : f32
    %186 = vector.broadcast %cst_49 : f32 to vector<2x128xf32>
    %187 = arith.addf %185, %186 : vector<2x128xf32>
    %188 = vector.extract_strided_slice %187 {offsets = [0, 0], sizes = [2, 32], strides = [1, 1]} : vector<2x128xf32> to vector<2x32xf32>
    %189 = vector.extract_strided_slice %187 {offsets = [0, 32], sizes = [2, 32], strides = [1, 1]} : vector<2x128xf32> to vector<2x32xf32>
    %190 = vector.extract_strided_slice %187 {offsets = [0, 96], sizes = [2, 32], strides = [1, 1]} : vector<2x128xf32> to vector<2x32xf32>
    %191 = vector.extract_strided_slice %183 {offsets = [0, 64], sizes = [2, 32], strides = [1, 1]} : vector<2x128xf32> to vector<2x32xf32>
    %192 = arith.mulf %189, %176 : vector<2x32xf32>
    %193 = arith.mulf %188, %191 : vector<2x32xf32>
    %194 = arith.addf %192, %193 : vector<2x32xf32>
    %195 = math.tanh %194 : vector<2x32xf32>
    %196 = arith.mulf %190, %195 : vector<2x32xf32>
    %197 = vector.shape_cast %70 : vector<2x32xf32> to vector<2x1x32xf32>
    %198 = vector.shape_cast %88 : vector<2x32xf32> to vector<2x1x32xf32>
    %199 = vector.shape_cast %106 : vector<2x32xf32> to vector<2x1x32xf32>
    %200 = vector.shape_cast %124 : vector<2x32xf32> to vector<2x1x32xf32>
    %201 = vector.shape_cast %142 : vector<2x32xf32> to vector<2x1x32xf32>
    %202 = vector.shape_cast %160 : vector<2x32xf32> to vector<2x1x32xf32>
    %203 = vector.shape_cast %178 : vector<2x32xf32> to vector<2x1x32xf32>
    %204 = vector.shape_cast %196 : vector<2x32xf32> to vector<2x1x32xf32>
    %205 = tpu.concatenate %197, %198, %199, %200, %201, %202, %203, %204 in 1 : vector<2x1x32xf32>, vector<2x1x32xf32>, vector<2x1x32xf32>, vector<2x1x32xf32>, vector<2x1x32xf32>, vector<2x1x32xf32>, vector<2x1x32xf32>, vector<2x1x32xf32> -> vector<2x8x32xf32>
    %c1 = arith.constant 1 : index
    %c0_50 = arith.constant 0 : index
    %c0_51 = arith.constant 0 : index
    %206 = vector.load %arg4[%c1, %c0_50, %c0_51] : memref<2x32x128xf32, #tpu.memory_space<vmem>>, vector<1x32x128xf32>
    %207 = vector.shape_cast %206 : vector<1x32x128xf32> to vector<32x128xf32>
    %c1_52 = arith.constant 1 : index
    %c0_53 = arith.constant 0 : index
    %c0_54 = arith.constant 0 : index
    %208 = vector.load %arg5[%c1_52, %c0_53, %c0_54] : memref<2x32x128xf32, #tpu.memory_space<vmem>>, vector<1x32x128xf32>
    %209 = vector.shape_cast %208 : vector<1x32x128xf32> to vector<32x128xf32>
    %210 = vector.broadcast %35 : vector<1x128xf32> to vector<32x128xf32>
    %211 = arith.mulf %209, %210 : vector<32x128xf32>
    %c1_55 = arith.constant 1 : index
    %c0_56 = arith.constant 0 : index
    %c0_57 = arith.constant 0 : index
    %212 = vector.load %arg6[%c1_55, %c0_56, %c0_57] : memref<2x1x128xf32, #tpu.memory_space<vmem>>, vector<1x1x128xf32>
    %213 = vector.shape_cast %212 : vector<1x1x128xf32> to vector<1x128xf32>
    %214 = vector.shape_cast %205 : vector<2x8x32xf32> to vector<16x32xf32>
    %cst_58 = arith.constant dense<0.000000e+00> : vector<16x128xf32>
    %215 = tpu.matmul %214, %207, %cst_58 {dimension_numbers = #tpu.dot_dimension_numbers<[1], [0], [0], [1], [0, 0, 1, 1], [], []>} : vector<16x32xf32>, vector<32x128xf32>, vector<16x128xf32> -> vector<16x128xf32>
    %216 = vector.broadcast %213 : vector<1x128xf32> to vector<16x128xf32>
    %217 = arith.addf %215, %216 : vector<16x128xf32>
    %218 = vector.broadcast %35 : vector<1x128xf32> to vector<16x128xf32>
    %219 = arith.mulf %217, %218 : vector<16x128xf32>
    %220 = vector.shape_cast %219 : vector<16x128xf32> to vector<2x8x128xf32>
    %cst_59 = arith.constant 0.000000e+00 : f32
    %221 = vector.broadcast %cst_59 : f32 to vector<2x32xf32>
    %cst_60 = arith.constant 0.000000e+00 : f32
    %222 = vector.broadcast %cst_60 : f32 to vector<2x32xf32>
    %223 = vector.extract_strided_slice %220 {offsets = [0, 0, 0], sizes = [2, 1, 128], strides = [1, 1, 1]} : vector<2x8x128xf32> to vector<2x1x128xf32>
    %224 = vector.shape_cast %223 : vector<2x1x128xf32> to vector<2x128xf32>
    %cst_61 = arith.constant dense<0.000000e+00> : vector<2x128xf32>
    %225 = tpu.matmul %221, %211, %cst_61 {dimension_numbers = #tpu.dot_dimension_numbers<[1], [0], [0], [1], [0, 0, 1, 1], [], []>} : vector<2x32xf32>, vector<32x128xf32>, vector<2x128xf32> -> vector<2x128xf32>
    %226 = arith.addf %224, %225 : vector<2x128xf32>
    %227 = math.tanh %226 : vector<2x128xf32>
    %cst_62 = arith.constant 5.000000e-01 : f32
    %228 = vector.broadcast %cst_62 : f32 to vector<2x128xf32>
    %229 = arith.mulf %228, %227 : vector<2x128xf32>
    %cst_63 = arith.constant 5.000000e-01 : f32
    %230 = vector.broadcast %cst_63 : f32 to vector<2x128xf32>
    %231 = arith.addf %229, %230 : vector<2x128xf32>
    %232 = vector.extract_strided_slice %231 {offsets = [0, 0], sizes = [2, 32], strides = [1, 1]} : vector<2x128xf32> to vector<2x32xf32>
    %233 = vector.extract_strided_slice %231 {offsets = [0, 32], sizes = [2, 32], strides = [1, 1]} : vector<2x128xf32> to vector<2x32xf32>
    %234 = vector.extract_strided_slice %231 {offsets = [0, 96], sizes = [2, 32], strides = [1, 1]} : vector<2x128xf32> to vector<2x32xf32>
    %235 = vector.extract_strided_slice %227 {offsets = [0, 64], sizes = [2, 32], strides = [1, 1]} : vector<2x128xf32> to vector<2x32xf32>
    %236 = arith.mulf %233, %222 : vector<2x32xf32>
    %237 = arith.mulf %232, %235 : vector<2x32xf32>
    %238 = arith.addf %236, %237 : vector<2x32xf32>
    %239 = math.tanh %238 : vector<2x32xf32>
    %240 = arith.mulf %234, %239 : vector<2x32xf32>
    %241 = vector.extract_strided_slice %220 {offsets = [0, 1, 0], sizes = [2, 1, 128], strides = [1, 1, 1]} : vector<2x8x128xf32> to vector<2x1x128xf32>
    %242 = vector.shape_cast %241 : vector<2x1x128xf32> to vector<2x128xf32>
    %cst_64 = arith.constant dense<0.000000e+00> : vector<2x128xf32>
    %243 = tpu.matmul %240, %211, %cst_64 {dimension_numbers = #tpu.dot_dimension_numbers<[1], [0], [0], [1], [0, 0, 1, 1], [], []>} : vector<2x32xf32>, vector<32x128xf32>, vector<2x128xf32> -> vector<2x128xf32>
    %244 = arith.addf %242, %243 : vector<2x128xf32>
    %245 = math.tanh %244 : vector<2x128xf32>
    %cst_65 = arith.constant 5.000000e-01 : f32
    %246 = vector.broadcast %cst_65 : f32 to vector<2x128xf32>
    %247 = arith.mulf %246, %245 : vector<2x128xf32>
    %cst_66 = arith.constant 5.000000e-01 : f32
    %248 = vector.broadcast %cst_66 : f32 to vector<2x128xf32>
    %249 = arith.addf %247, %248 : vector<2x128xf32>
    %250 = vector.extract_strided_slice %249 {offsets = [0, 0], sizes = [2, 32], strides = [1, 1]} : vector<2x128xf32> to vector<2x32xf32>
    %251 = vector.extract_strided_slice %249 {offsets = [0, 32], sizes = [2, 32], strides = [1, 1]} : vector<2x128xf32> to vector<2x32xf32>
    %252 = vector.extract_strided_slice %249 {offsets = [0, 96], sizes = [2, 32], strides = [1, 1]} : vector<2x128xf32> to vector<2x32xf32>
    %253 = vector.extract_strided_slice %245 {offsets = [0, 64], sizes = [2, 32], strides = [1, 1]} : vector<2x128xf32> to vector<2x32xf32>
    %254 = arith.mulf %251, %238 : vector<2x32xf32>
    %255 = arith.mulf %250, %253 : vector<2x32xf32>
    %256 = arith.addf %254, %255 : vector<2x32xf32>
    %257 = math.tanh %256 : vector<2x32xf32>
    %258 = arith.mulf %252, %257 : vector<2x32xf32>
    %259 = vector.extract_strided_slice %220 {offsets = [0, 2, 0], sizes = [2, 1, 128], strides = [1, 1, 1]} : vector<2x8x128xf32> to vector<2x1x128xf32>
    %260 = vector.shape_cast %259 : vector<2x1x128xf32> to vector<2x128xf32>
    %cst_67 = arith.constant dense<0.000000e+00> : vector<2x128xf32>
    %261 = tpu.matmul %258, %211, %cst_67 {dimension_numbers = #tpu.dot_dimension_numbers<[1], [0], [0], [1], [0, 0, 1, 1], [], []>} : vector<2x32xf32>, vector<32x128xf32>, vector<2x128xf32> -> vector<2x128xf32>
    %262 = arith.addf %260, %261 : vector<2x128xf32>
    %263 = math.tanh %262 : vector<2x128xf32>
    %cst_68 = arith.constant 5.000000e-01 : f32
    %264 = vector.broadcast %cst_68 : f32 to vector<2x128xf32>
    %265 = arith.mulf %264, %263 : vector<2x128xf32>
    %cst_69 = arith.constant 5.000000e-01 : f32
    %266 = vector.broadcast %cst_69 : f32 to vector<2x128xf32>
    %267 = arith.addf %265, %266 : vector<2x128xf32>
    %268 = vector.extract_strided_slice %267 {offsets = [0, 0], sizes = [2, 32], strides = [1, 1]} : vector<2x128xf32> to vector<2x32xf32>
    %269 = vector.extract_strided_slice %267 {offsets = [0, 32], sizes = [2, 32], strides = [1, 1]} : vector<2x128xf32> to vector<2x32xf32>
    %270 = vector.extract_strided_slice %267 {offsets = [0, 96], sizes = [2, 32], strides = [1, 1]} : vector<2x128xf32> to vector<2x32xf32>
    %271 = vector.extract_strided_slice %263 {offsets = [0, 64], sizes = [2, 32], strides = [1, 1]} : vector<2x128xf32> to vector<2x32xf32>
    %272 = arith.mulf %269, %256 : vector<2x32xf32>
    %273 = arith.mulf %268, %271 : vector<2x32xf32>
    %274 = arith.addf %272, %273 : vector<2x32xf32>
    %275 = math.tanh %274 : vector<2x32xf32>
    %276 = arith.mulf %270, %275 : vector<2x32xf32>
    %277 = vector.extract_strided_slice %220 {offsets = [0, 3, 0], sizes = [2, 1, 128], strides = [1, 1, 1]} : vector<2x8x128xf32> to vector<2x1x128xf32>
    %278 = vector.shape_cast %277 : vector<2x1x128xf32> to vector<2x128xf32>
    %cst_70 = arith.constant dense<0.000000e+00> : vector<2x128xf32>
    %279 = tpu.matmul %276, %211, %cst_70 {dimension_numbers = #tpu.dot_dimension_numbers<[1], [0], [0], [1], [0, 0, 1, 1], [], []>} : vector<2x32xf32>, vector<32x128xf32>, vector<2x128xf32> -> vector<2x128xf32>
    %280 = arith.addf %278, %279 : vector<2x128xf32>
    %281 = math.tanh %280 : vector<2x128xf32>
    %cst_71 = arith.constant 5.000000e-01 : f32
    %282 = vector.broadcast %cst_71 : f32 to vector<2x128xf32>
    %283 = arith.mulf %282, %281 : vector<2x128xf32>
    %cst_72 = arith.constant 5.000000e-01 : f32
    %284 = vector.broadcast %cst_72 : f32 to vector<2x128xf32>
    %285 = arith.addf %283, %284 : vector<2x128xf32>
    %286 = vector.extract_strided_slice %285 {offsets = [0, 0], sizes = [2, 32], strides = [1, 1]} : vector<2x128xf32> to vector<2x32xf32>
    %287 = vector.extract_strided_slice %285 {offsets = [0, 32], sizes = [2, 32], strides = [1, 1]} : vector<2x128xf32> to vector<2x32xf32>
    %288 = vector.extract_strided_slice %285 {offsets = [0, 96], sizes = [2, 32], strides = [1, 1]} : vector<2x128xf32> to vector<2x32xf32>
    %289 = vector.extract_strided_slice %281 {offsets = [0, 64], sizes = [2, 32], strides = [1, 1]} : vector<2x128xf32> to vector<2x32xf32>
    %290 = arith.mulf %287, %274 : vector<2x32xf32>
    %291 = arith.mulf %286, %289 : vector<2x32xf32>
    %292 = arith.addf %290, %291 : vector<2x32xf32>
    %293 = math.tanh %292 : vector<2x32xf32>
    %294 = arith.mulf %288, %293 : vector<2x32xf32>
    %295 = vector.extract_strided_slice %220 {offsets = [0, 4, 0], sizes = [2, 1, 128], strides = [1, 1, 1]} : vector<2x8x128xf32> to vector<2x1x128xf32>
    %296 = vector.shape_cast %295 : vector<2x1x128xf32> to vector<2x128xf32>
    %cst_73 = arith.constant dense<0.000000e+00> : vector<2x128xf32>
    %297 = tpu.matmul %294, %211, %cst_73 {dimension_numbers = #tpu.dot_dimension_numbers<[1], [0], [0], [1], [0, 0, 1, 1], [], []>} : vector<2x32xf32>, vector<32x128xf32>, vector<2x128xf32> -> vector<2x128xf32>
    %298 = arith.addf %296, %297 : vector<2x128xf32>
    %299 = math.tanh %298 : vector<2x128xf32>
    %cst_74 = arith.constant 5.000000e-01 : f32
    %300 = vector.broadcast %cst_74 : f32 to vector<2x128xf32>
    %301 = arith.mulf %300, %299 : vector<2x128xf32>
    %cst_75 = arith.constant 5.000000e-01 : f32
    %302 = vector.broadcast %cst_75 : f32 to vector<2x128xf32>
    %303 = arith.addf %301, %302 : vector<2x128xf32>
    %304 = vector.extract_strided_slice %303 {offsets = [0, 0], sizes = [2, 32], strides = [1, 1]} : vector<2x128xf32> to vector<2x32xf32>
    %305 = vector.extract_strided_slice %303 {offsets = [0, 32], sizes = [2, 32], strides = [1, 1]} : vector<2x128xf32> to vector<2x32xf32>
    %306 = vector.extract_strided_slice %303 {offsets = [0, 96], sizes = [2, 32], strides = [1, 1]} : vector<2x128xf32> to vector<2x32xf32>
    %307 = vector.extract_strided_slice %299 {offsets = [0, 64], sizes = [2, 32], strides = [1, 1]} : vector<2x128xf32> to vector<2x32xf32>
    %308 = arith.mulf %305, %292 : vector<2x32xf32>
    %309 = arith.mulf %304, %307 : vector<2x32xf32>
    %310 = arith.addf %308, %309 : vector<2x32xf32>
    %311 = math.tanh %310 : vector<2x32xf32>
    %312 = arith.mulf %306, %311 : vector<2x32xf32>
    %313 = vector.extract_strided_slice %220 {offsets = [0, 5, 0], sizes = [2, 1, 128], strides = [1, 1, 1]} : vector<2x8x128xf32> to vector<2x1x128xf32>
    %314 = vector.shape_cast %313 : vector<2x1x128xf32> to vector<2x128xf32>
    %cst_76 = arith.constant dense<0.000000e+00> : vector<2x128xf32>
    %315 = tpu.matmul %312, %211, %cst_76 {dimension_numbers = #tpu.dot_dimension_numbers<[1], [0], [0], [1], [0, 0, 1, 1], [], []>} : vector<2x32xf32>, vector<32x128xf32>, vector<2x128xf32> -> vector<2x128xf32>
    %316 = arith.addf %314, %315 : vector<2x128xf32>
    %317 = math.tanh %316 : vector<2x128xf32>
    %cst_77 = arith.constant 5.000000e-01 : f32
    %318 = vector.broadcast %cst_77 : f32 to vector<2x128xf32>
    %319 = arith.mulf %318, %317 : vector<2x128xf32>
    %cst_78 = arith.constant 5.000000e-01 : f32
    %320 = vector.broadcast %cst_78 : f32 to vector<2x128xf32>
    %321 = arith.addf %319, %320 : vector<2x128xf32>
    %322 = vector.extract_strided_slice %321 {offsets = [0, 0], sizes = [2, 32], strides = [1, 1]} : vector<2x128xf32> to vector<2x32xf32>
    %323 = vector.extract_strided_slice %321 {offsets = [0, 32], sizes = [2, 32], strides = [1, 1]} : vector<2x128xf32> to vector<2x32xf32>
    %324 = vector.extract_strided_slice %321 {offsets = [0, 96], sizes = [2, 32], strides = [1, 1]} : vector<2x128xf32> to vector<2x32xf32>
    %325 = vector.extract_strided_slice %317 {offsets = [0, 64], sizes = [2, 32], strides = [1, 1]} : vector<2x128xf32> to vector<2x32xf32>
    %326 = arith.mulf %323, %310 : vector<2x32xf32>
    %327 = arith.mulf %322, %325 : vector<2x32xf32>
    %328 = arith.addf %326, %327 : vector<2x32xf32>
    %329 = math.tanh %328 : vector<2x32xf32>
    %330 = arith.mulf %324, %329 : vector<2x32xf32>
    %331 = vector.extract_strided_slice %220 {offsets = [0, 6, 0], sizes = [2, 1, 128], strides = [1, 1, 1]} : vector<2x8x128xf32> to vector<2x1x128xf32>
    %332 = vector.shape_cast %331 : vector<2x1x128xf32> to vector<2x128xf32>
    %cst_79 = arith.constant dense<0.000000e+00> : vector<2x128xf32>
    %333 = tpu.matmul %330, %211, %cst_79 {dimension_numbers = #tpu.dot_dimension_numbers<[1], [0], [0], [1], [0, 0, 1, 1], [], []>} : vector<2x32xf32>, vector<32x128xf32>, vector<2x128xf32> -> vector<2x128xf32>
    %334 = arith.addf %332, %333 : vector<2x128xf32>
    %335 = math.tanh %334 : vector<2x128xf32>
    %cst_80 = arith.constant 5.000000e-01 : f32
    %336 = vector.broadcast %cst_80 : f32 to vector<2x128xf32>
    %337 = arith.mulf %336, %335 : vector<2x128xf32>
    %cst_81 = arith.constant 5.000000e-01 : f32
    %338 = vector.broadcast %cst_81 : f32 to vector<2x128xf32>
    %339 = arith.addf %337, %338 : vector<2x128xf32>
    %340 = vector.extract_strided_slice %339 {offsets = [0, 0], sizes = [2, 32], strides = [1, 1]} : vector<2x128xf32> to vector<2x32xf32>
    %341 = vector.extract_strided_slice %339 {offsets = [0, 32], sizes = [2, 32], strides = [1, 1]} : vector<2x128xf32> to vector<2x32xf32>
    %342 = vector.extract_strided_slice %339 {offsets = [0, 96], sizes = [2, 32], strides = [1, 1]} : vector<2x128xf32> to vector<2x32xf32>
    %343 = vector.extract_strided_slice %335 {offsets = [0, 64], sizes = [2, 32], strides = [1, 1]} : vector<2x128xf32> to vector<2x32xf32>
    %344 = arith.mulf %341, %328 : vector<2x32xf32>
    %345 = arith.mulf %340, %343 : vector<2x32xf32>
    %346 = arith.addf %344, %345 : vector<2x32xf32>
    %347 = math.tanh %346 : vector<2x32xf32>
    %348 = arith.mulf %342, %347 : vector<2x32xf32>
    %349 = vector.extract_strided_slice %220 {offsets = [0, 7, 0], sizes = [2, 1, 128], strides = [1, 1, 1]} : vector<2x8x128xf32> to vector<2x1x128xf32>
    %350 = vector.shape_cast %349 : vector<2x1x128xf32> to vector<2x128xf32>
    %cst_82 = arith.constant dense<0.000000e+00> : vector<2x128xf32>
    %351 = tpu.matmul %348, %211, %cst_82 {dimension_numbers = #tpu.dot_dimension_numbers<[1], [0], [0], [1], [0, 0, 1, 1], [], []>} : vector<2x32xf32>, vector<32x128xf32>, vector<2x128xf32> -> vector<2x128xf32>
    %352 = arith.addf %350, %351 : vector<2x128xf32>
    %353 = math.tanh %352 : vector<2x128xf32>
    %cst_83 = arith.constant 5.000000e-01 : f32
    %354 = vector.broadcast %cst_83 : f32 to vector<2x128xf32>
    %355 = arith.mulf %354, %353 : vector<2x128xf32>
    %cst_84 = arith.constant 5.000000e-01 : f32
    %356 = vector.broadcast %cst_84 : f32 to vector<2x128xf32>
    %357 = arith.addf %355, %356 : vector<2x128xf32>
    %358 = vector.extract_strided_slice %357 {offsets = [0, 0], sizes = [2, 32], strides = [1, 1]} : vector<2x128xf32> to vector<2x32xf32>
    %359 = vector.extract_strided_slice %357 {offsets = [0, 32], sizes = [2, 32], strides = [1, 1]} : vector<2x128xf32> to vector<2x32xf32>
    %360 = vector.extract_strided_slice %357 {offsets = [0, 96], sizes = [2, 32], strides = [1, 1]} : vector<2x128xf32> to vector<2x32xf32>
    %361 = vector.extract_strided_slice %353 {offsets = [0, 64], sizes = [2, 32], strides = [1, 1]} : vector<2x128xf32> to vector<2x32xf32>
    %362 = arith.mulf %359, %346 : vector<2x32xf32>
    %363 = arith.mulf %358, %361 : vector<2x32xf32>
    %364 = arith.addf %362, %363 : vector<2x32xf32>
    %365 = math.tanh %364 : vector<2x32xf32>
    %366 = arith.mulf %360, %365 : vector<2x32xf32>
    %367 = vector.shape_cast %240 : vector<2x32xf32> to vector<2x1x32xf32>
    %368 = vector.shape_cast %258 : vector<2x32xf32> to vector<2x1x32xf32>
    %369 = vector.shape_cast %276 : vector<2x32xf32> to vector<2x1x32xf32>
    %370 = vector.shape_cast %294 : vector<2x32xf32> to vector<2x1x32xf32>
    %371 = vector.shape_cast %312 : vector<2x32xf32> to vector<2x1x32xf32>
    %372 = vector.shape_cast %330 : vector<2x32xf32> to vector<2x1x32xf32>
    %373 = vector.shape_cast %348 : vector<2x32xf32> to vector<2x1x32xf32>
    %374 = vector.shape_cast %366 : vector<2x32xf32> to vector<2x1x32xf32>
    %375 = tpu.concatenate %367, %368, %369, %370, %371, %372, %373, %374 in 1 : vector<2x1x32xf32>, vector<2x1x32xf32>, vector<2x1x32xf32>, vector<2x1x32xf32>, vector<2x1x32xf32>, vector<2x1x32xf32>, vector<2x1x32xf32>, vector<2x1x32xf32> -> vector<2x8x32xf32>
    %376 = vector.shape_cast %375 : vector<2x8x32xf32> to vector<16x32xf32>
    %c0_85 = arith.constant 0 : index
    %c0_86 = arith.constant 0 : index
    %377 = vector.load %arg7[%c0_85, %c0_86] : memref<32x32xf32, #tpu.memory_space<vmem>>, vector<32x32xf32>
    %cst_87 = arith.constant dense<0.000000e+00> : vector<16x32xf32>
    %378 = tpu.matmul %376, %377, %cst_87 {dimension_numbers = #tpu.dot_dimension_numbers<[1], [0], [0], [1], [0, 0, 1, 1], [], []>} : vector<16x32xf32>, vector<32x32xf32>, vector<16x32xf32> -> vector<16x32xf32>
    %c0_88 = arith.constant 0 : index
    %c0_89 = arith.constant 0 : index
    %379 = vector.load %arg8[%c0_88, %c0_89] : memref<1x32xf32, #tpu.memory_space<vmem>>, vector<1x32xf32>
    %380 = vector.broadcast %379 : vector<1x32xf32> to vector<16x32xf32>
    %381 = arith.addf %378, %380 : vector<16x32xf32>
    %382 = vector.shape_cast %381 : vector<16x32xf32> to vector<2x8x32xf32>
    %383 = vector.broadcast %17 : vector<2x1x32xf32> to vector<2x8x32xf32>
    %384 = arith.mulf %382, %383 : vector<2x8x32xf32>
    %385 = vector.broadcast %4 : vector<2x1x32xf32> to vector<2x8x32xf32>
    %386 = arith.addf %384, %385 : vector<2x8x32xf32>
    %c0_90 = arith.constant 0 : index
    %c0_91 = arith.constant 0 : index
    %c0_92 = arith.constant 0 : index
    %387 = vector.load %arg9[%c0_90, %c0_91, %c0_92] : memref<2x8x32xf32, #tpu.memory_space<vmem>>, vector<2x8x32xf32>
    tpu.vector_store %arg9[%c0_90, %c0_91, %c0_92], %386 {strides = array<i32>} : memref<2x8x32xf32, #tpu.memory_space<vmem>>, vector<2x8x32xf32>,
    %388 = vector.shape_cast %17 : vector<2x1x32xf32> to vector<2x32xf32>
    %389 = arith.mulf %366, %388 : vector<2x32xf32>
    %390 = vector.shape_cast %4 : vector<2x1x32xf32> to vector<2x32xf32>
    %391 = arith.addf %389, %390 : vector<2x32xf32>
    %c0_93 = arith.constant 0 : index
    %c0_94 = arith.constant 0 : index
    %392 = vector.load %arg10[%c0_93, %c0_94] : memref<2x32xf32, #tpu.memory_space<vmem>>, vector<2x32xf32>
    tpu.vector_store %arg10[%c0_93, %c0_94], %391 {strides = array<i32>} : memref<2x32xf32, #tpu.memory_space<vmem>>, vector<2x32xf32>,
    return
  }
  func.func @transform_0(%arg0: i32) -> (i32, i32, i32) {
    %c0_i32 = arith.constant 0 : i32
    %c0_i32_0 = arith.constant 0 : i32
    %c0_i32_1 = arith.constant 0 : i32
    return %arg0, %c0_i32, %c0_i32_0 : i32, i32, i32
  }
  func.func @transform_1(%arg0: i32) -> (i32, i32) {
    %c0_i32 = arith.constant 0 : i32
    %c0_i32_0 = arith.constant 0 : i32
    %c0_i32_1 = arith.constant 0 : i32
    return %c0_i32, %c0_i32_0 : i32, i32
  }
  func.func @transform_2(%arg0: i32) -> (i32, i32) {
    %c0_i32 = arith.constant 0 : i32
    %c0_i32_0 = arith.constant 0 : i32
    %c0_i32_1 = arith.constant 0 : i32
    return %c0_i32, %c0_i32_0 : i32, i32
  }
  func.func @transform_3(%arg0: i32) -> (i32, i32, i32) {
    %c0_i32 = arith.constant 0 : i32
    %c0_i32_0 = arith.constant 0 : i32
    %c0_i32_1 = arith.constant 0 : i32
    %c0_i32_2 = arith.constant 0 : i32
    return %c0_i32, %c0_i32_0, %c0_i32_1 : i32, i32, i32
  }
  func.func @transform_4(%arg0: i32) -> (i32, i32, i32) {
    %c0_i32 = arith.constant 0 : i32
    %c0_i32_0 = arith.constant 0 : i32
    %c0_i32_1 = arith.constant 0 : i32
    %c0_i32_2 = arith.constant 0 : i32
    return %c0_i32, %c0_i32_0, %c0_i32_1 : i32, i32, i32
  }
  func.func @transform_5(%arg0: i32) -> (i32, i32, i32) {
    %c0_i32 = arith.constant 0 : i32
    %c0_i32_0 = arith.constant 0 : i32
    %c0_i32_1 = arith.constant 0 : i32
    %c0_i32_2 = arith.constant 0 : i32
    return %c0_i32, %c0_i32_0, %c0_i32_1 : i32, i32, i32
  }
  func.func @transform_6(%arg0: i32) -> (i32, i32) {
    %c0_i32 = arith.constant 0 : i32
    %c0_i32_0 = arith.constant 0 : i32
    %c0_i32_1 = arith.constant 0 : i32
    return %c0_i32, %c0_i32_0 : i32, i32
  }
  func.func @transform_7(%arg0: i32) -> (i32, i32) {
    %c0_i32 = arith.constant 0 : i32
    %c0_i32_0 = arith.constant 0 : i32
    %c0_i32_1 = arith.constant 0 : i32
    return %c0_i32, %c0_i32_0 : i32, i32
  }
  func.func @transform_8(%arg0: i32) -> (i32, i32, i32) {
    %c0_i32 = arith.constant 0 : i32
    %c0_i32_0 = arith.constant 0 : i32
    %c0_i32_1 = arith.constant 0 : i32
    return %arg0, %c0_i32, %c0_i32_0 : i32, i32, i32
  }
  func.func @transform_9(%arg0: i32) -> (i32, i32) {
    %c0_i32 = arith.constant 0 : i32
    %c0_i32_0 = arith.constant 0 : i32
    return %arg0, %c0_i32 : i32, i32
  }
}

</mosaic_0001>

<llo_original>
// kernel: tpu_custom_call.1
$region0: #{tpu_custom_call.1}
  #allocation0 [shape = 'u32[]', space=smem, size = 0x4, offset = 0x4, fixed_abs, tag = 'smem constant byte address 0x4 - core index']
  #allocation1 [shape = 'u32[144,128]{1,0:T(1,128)}', space=vmem, size = 0x12000, scoped, tag = 'internal scratch']
  %s0 = inlined_call_operand.hbm [shape: f32[2,8,32], index: 0, kind: input, shape index: {}]
  %s1 = inlined_call_operand.hbm [shape: f32[32,32], index: 1, kind: input, shape index: {}]
  %s2 = inlined_call_operand.vmem [shape: f32[1,32], index: 2, kind: input, shape index: {}]
  %s3 = inlined_call_operand.hbm [shape: f32[2,32,128], index: 3, kind: input, shape index: {}]
  %s4 = inlined_call_operand.hbm [shape: f32[2,32,128], index: 4, kind: input, shape index: {}]
  %s5 = inlined_call_operand.vmem [shape: f32[2,1,128], index: 5, kind: input, shape index: {}]
  %s6 = inlined_call_operand.hbm [shape: f32[32,32], index: 6, kind: input, shape index: {}]
  %s7 = inlined_call_operand.vmem [shape: f32[1,32], index: 7, kind: input, shape index: {}]
  %s8 = inlined_call_operand.hbm [shape: f32[2,8,32], index: 8, kind: output, shape index: {0}]
  %s9 = inlined_call_operand.hbm [shape: f32[2,32], index: 9, kind: output, shape index: {1}]
  %10 = xla_tuple %s8, %s9
  %s11 = sld [smem:[#allocation0]]
  $region70: #{tpu_custom_call.1} parent=0
    _
  %s13 = ssub.s32 1, %s11
  %s14 = scalar_select 0, %s13, %s11
  $region1: #{tpu_custom_call.1} parent=0
    #allocation2 [shape = 'u8[8192]{0}', space=vmem, size = 0x2000, scoped, tag = 'input window, operand 0, single buffered']
    #allocation3 [shape = 's32[1]{0}', space=sflag, size = 0x4, scoped, tag = 'scoped memory for tpu_custom_call.1']
    #allocation4 [shape = 's32[1]{0}', space=sflag, size = 0x4, scoped, tag = 'scoped memory for tpu_custom_call.1']
    #allocation5 [shape = 'u8[16384]{0}', space=vmem, size = 0x4000, scoped, tag = 'input window, operand 1, single buffered']
    #allocation6 [shape = 's32[1]{0}', space=sflag, size = 0x4, scoped, tag = 'scoped memory for tpu_custom_call.1']
    #allocation7 [shape = 'u8[32768]{0}', space=vmem, size = 0x8000, scoped, tag = 'input window, operand 3, single buffered']
    #allocation8 [shape = 'u8[32768]{0}', space=vmem, size = 0x8000, scoped, tag = 'input window, operand 4, single buffered']
    #allocation9 [shape = 's32[1]{0}', space=sflag, size = 0x4, scoped, tag = 'scoped memory for tpu_custom_call.1']
    #allocation10 [shape = 'u8[16384]{0}', space=vmem, size = 0x4000, scoped, tag = 'input window, operand 6, single buffered']
    #allocation11 [shape = 'u8[8192]{0}', space=vmem, size = 0x2000, scoped, tag = 'output window, operand 0, single buffered']
    #allocation12 [shape = 'u8[1024]{0}', space=vmem, size = 0x400, scoped, tag = 'output window, operand 1, single buffered']
    #allocation13 [shape = 's32[1]{0}', space=sflag, size = 0x4, scoped, tag = 'scoped memory for tpu_custom_call.1']
    %15 = vsyncpa [#allocation3], 0
    %16 = vsyncpa [#allocation6], 0
    %17 = vsyncpa [#allocation9], 0
    %18 = vsyncpa [#allocation4], 0
    %19 = vsyncpa [#allocation13], 0
    // Predicated region
    $region2: #{tpu_custom_call.1} parent=1 // pred_check
      _
    $region3: #{tpu_custom_call.1} parent=1 // pred_check_branch
      %21 = sbr.rel (0) target = $region5
    $region4: #{tpu_custom_call.1} parent=1 // pred_region
      %s23 = ssub.s32 256, 256
      %24 = vsyncadd [#allocation3], %s23
      %s25 = sshll.u32 [#allocation2], 4
      %s26 = int_to_ptr.vmem [resolvable:$true] %s25
      %31 = dma.hbm_to_vmem [thread:$0]  %s0, 256, %s26, [#allocation3], 128, 128, 8
    $region5: #{tpu_custom_call.1} parent=1 // pred_fallthru
      _
    // Predicated region
    $region6: #{tpu_custom_call.1} parent=1 // pred_check
      _
    $region7: #{tpu_custom_call.1} parent=1 // pred_check_branch
      %33 = sbr.rel (0) target = $region9
    $region8: #{tpu_custom_call.1} parent=1 // pred_region
      %s35 = ssub.s32 512, 512
      %36 = vsyncadd [#allocation6], %s35
      %s37 = sshll.u32 [#allocation5], 4
      %s38 = int_to_ptr.vmem [resolvable:$true] %s37
      %43 = dma.hbm_to_vmem [thread:$0]  %s1, 512, %s38, [#allocation6], 128, 128, 8
    $region9: #{tpu_custom_call.1} parent=1 // pred_fallthru
      _
    // Predicated region
    $region10: #{tpu_custom_call.1} parent=1 // pred_check
      _
    $region11: #{tpu_custom_call.1} parent=1 // pred_check_branch
      %45 = sbr.rel (0) target = $region13
    $region12: #{tpu_custom_call.1} parent=1 // pred_region
      _
    $region13: #{tpu_custom_call.1} parent=1 // pred_fallthru
      _
    // Predicated region
    $region14: #{tpu_custom_call.1} parent=1 // pred_check
      _
    $region15: #{tpu_custom_call.1} parent=1 // pred_check_branch
      %47 = sbr.rel (0) target = $region17
    $region16: #{tpu_custom_call.1} parent=1 // pred_region
      %s49 = ssub.s32 1024, 1024
      %50 = vsyncadd [#allocation6], %s49
      %s51 = sshll.u32 [#allocation7], 4
      %s52 = int_to_ptr.vmem [resolvable:$true] %s51
      %57 = dma.hbm_to_vmem [thread:$0]  %s3, 1024, %s52, [#allocation6], 128, 128, 8
    $region17: #{tpu_custom_call.1} parent=1 // pred_fallthru
      _
    // Predicated region
    $region18: #{tpu_custom_call.1} parent=1 // pred_check
      _
    $region19: #{tpu_custom_call.1} parent=1 // pred_check_branch
      %59 = sbr.rel (0) target = $region21
    $region20: #{tpu_custom_call.1} parent=1 // pred_region
      %s61 = ssub.s32 1024, 1024
      %62 = vsyncadd [#allocation9], %s61
      %s63 = sshll.u32 [#allocation8], 4
      %s64 = int_to_ptr.vmem [resolvable:$true] %s63
      %69 = dma.hbm_to_vmem [thread:$0]  %s4, 1024, %s64, [#allocation9], 128, 128, 8
    $region21: #{tpu_custom_call.1} parent=1 // pred_fallthru
      _
    // Predicated region
    $region22: #{tpu_custom_call.1} parent=1 // pred_check
      _
    $region23: #{tpu_custom_call.1} parent=1 // pred_check_branch
      %71 = sbr.rel (0) target = $region25
    $region24: #{tpu_custom_call.1} parent=1 // pred_region
      _
    $region25: #{tpu_custom_call.1} parent=1 // pred_fallthru
      _
    // Predicated region
    $region26: #{tpu_custom_call.1} parent=1 // pred_check
      _
    $region27: #{tpu_custom_call.1} parent=1 // pred_check_branch
      %73 = sbr.rel (0) target = $region29
    $region28: #{tpu_custom_call.1} parent=1 // pred_region
      %s75 = ssub.s32 512, 512
      %76 = vsyncadd [#allocation9], %s75
      %s77 = sshll.u32 [#allocation10], 4
      %s78 = int_to_ptr.vmem [resolvable:$true] %s77
      %83 = dma.hbm_to_vmem [thread:$0]  %s6, 512, %s78, [#allocation9], 128, 128, 8
    $region29: #{tpu_custom_call.1} parent=1 // pred_fallthru
      _
    // Predicated region
    $region30: #{tpu_custom_call.1} parent=1 // pred_check
      _
    $region31: #{tpu_custom_call.1} parent=1 // pred_check_branch
      %85 = sbr.rel (0) target = $region33
    $region32: #{tpu_custom_call.1} parent=1 // pred_region
      _
    $region33: #{tpu_custom_call.1} parent=1 // pred_fallthru
      _
    // Predicated region
    $region34: #{tpu_custom_call.1} parent=1 // pred_check
      _
    $region35: #{tpu_custom_call.1} parent=1 // pred_check_branch
      %87 = sbr.rel (0) target = $region37
    $region36: #{tpu_custom_call.1} parent=1 // pred_region
      %88 = dma.done [#allocation3], 256
    $region37: #{tpu_custom_call.1} parent=1 // pred_fallthru
      _
    // Predicated region
    $region38: #{tpu_custom_call.1} parent=1 // pred_check
      _
    $region39: #{tpu_custom_call.1} parent=1 // pred_check_branch
      %90 = sbr.rel (0) target = $region41
    $region40: #{tpu_custom_call.1} parent=1 // pred_region
      %91 = dma.done [#allocation6], 512
    $region41: #{tpu_custom_call.1} parent=1 // pred_fallthru
      _
    // Predicated region
    $region42: #{tpu_custom_call.1} parent=1 // pred_check
      _
    $region43: #{tpu_custom_call.1} parent=1 // pred_check_branch
      %93 = sbr.rel (0) target = $region45
    $region44: #{tpu_custom_call.1} parent=1 // pred_region
      %94 = dma.done [#allocation6], 1024
    $region45: #{tpu_custom_call.1} parent=1 // pred_fallthru
      _
    // Predicated region
    $region46: #{tpu_custom_call.1} parent=1 // pred_check
      _
    $region47: #{tpu_custom_call.1} parent=1 // pred_check_branch
      %96 = sbr.rel (0) target = $region49
    $region48: #{tpu_custom_call.1} parent=1 // pred_region
      %97 = dma.done [#allocation9], 1024
    $region49: #{tpu_custom_call.1} parent=1 // pred_fallthru
      _
    // Predicated region
    $region50: #{tpu_custom_call.1} parent=1 // pred_check
      _
    $region51: #{tpu_custom_call.1} parent=1 // pred_check_branch
      %99 = sbr.rel (0) target = $region53
    $region52: #{tpu_custom_call.1} parent=1 // pred_region
      %100 = dma.done [#allocation9], 512
    $region53: #{tpu_custom_call.1} parent=1 // pred_fallthru
      _
    %v101 = vld [vmem:[#allocation2] sm:$0xff]
    %v102 = vld [vmem:[#allocation2 + $0x8] sm:$0xff]
    %vm103 = vcmask 261120
    %v104 = vsel %vm103, %v101, 0.0
    %v105 = vrot.slane %v104, 4
    %v106 = vadd.f32 %v104, %v105
    %v107 = vrot.slane %v106, 2
    %v108 = vadd.f32 %v106, %v107
    %v109 = vrot.slane %v108, 1
    %v110 = vadd.f32 %v108, %v109
    %v111 = vsel %vm103, %v102, 0.0
    %v112 = vrot.slane %v111, 4
    %v113 = vadd.f32 %v111, %v112
    %v114 = vrot.slane %v113, 2
    %v115 = vadd.f32 %v113, %v114
    %v116 = vrot.slane %v115, 1
    %v117 = vadd.f32 %v115, %v116
    %v118 = vrcp.pop 8.0
    %v119 = vmul.f32 %v110, %v118
    %v120 = vmul.f32 %v117, %v118
    %v121 = vsub.f32 %v101, %v119
    %v122 = vsub.f32 %v102, %v120
    %v123 = vmul.f32 %v121, %v121
    %v124 = vmul.f32 %v122, %v122
    %v125 = vsel %vm103, %v123, 0.0
    %v126 = vrot.slane %v125, 4
    %v127 = vadd.f32 %v125, %v126
    %v128 = vrot.slane %v127, 2
    %v129 = vadd.f32 %v127, %v128
    %v130 = vrot.slane %v129, 1
    %v131 = vadd.f32 %v129, %v130
    %v132 = vsel %vm103, %v124, 0.0
    %v133 = vrot.slane %v132, 4
    %v134 = vadd.f32 %v132, %v133
    %v135 = vrot.slane %v134, 2
    %v136 = vadd.f32 %v134, %v135
    %v137 = vrot.slane %v136, 1
    %v138 = vadd.f32 %v136, %v137
    %v139 = vmul.f32 %v131, %v118
    %v140 = vmul.f32 %v138, %v118
    %v141 = vadd.f32 %v139, 1e-05
    %v142 = vadd.f32 %v140, 1e-05
    %v143 = vrsqrt.pop %v141
    %v144 = vrsqrt.pop %v142
    %v145 = vmul.f32 %v141, %v143
    %v146 = vmul.f32 %v142, %v144
    %v147 = vmul.f32 %v121, %v143
    %v148 = vmul.f32 %v122, %v144
    %v149 = vld [vmem:[#allocation5] sm:$0xff]
    %v150 = vld [vmem:[#allocation5 + $0x8] sm:$0xff]
    %v151 = vld [vmem:[#allocation5 + $0x10] sm:$0xff]
    %v152 = vld [vmem:[#allocation5 + $0x18] sm:$0xff]
    %v153 = vld [vmem:[%s2] sm:$0x1]
    %v155 = vlaneseq
    %v156 = vshrl.u32 %v155, 7
    %v157 = vsub.s32 0, %v156
    %v158 = vrot.slane %v153, %v157
    %v161 = vsel %vm103, %v147, 0
    %v164 = vsel %vm103, %v148, 0
    %166 = vmatprep.subr.mxu0 0.0
    %167 = vmatpush1.msra.mxu0 0.0
    %168 = vmatprep.subr.mxu0 0.0
    %169 = vmatpush1.msra.mxu0 0.0
    %170 = vmatprep.subr.mxu0 0.0
    %171 = vmatpush1.msra.mxu0 0.0
    %172 = vmatprep.subr.mxu0 0.0
    %173 = vmatpush1.msra.mxu0 0.0
    %174 = vmatprep.subr.mxu0 0.0
    %175 = vmatpush1.msra.mxu0 0.0
    %176 = vmatprep.subr.mxu0 0.0
    %177 = vmatpush1.msra.mxu0 0.0
    %178 = vmatprep.subr.mxu0 0.0
    %179 = vmatpush1.msra.mxu0 0.0
    %180 = vmatprep.subr.mxu0 0.0
    %181 = vmatpush1.msra.mxu0 0.0
    %182 = vmatprep.subr.mxu0 0.0
    %183 = vmatpush1.msra.mxu0 0.0
    %184 = vmatprep.subr.mxu0 0.0
    %185 = vmatpush1.msra.mxu0 0.0
    %186 = vmatprep.subr.mxu0 0.0
    %187 = vmatpush1.msra.mxu0 0.0
    %188 = vmatprep.subr.mxu0 0.0
    %189 = vmatpush1.msra.mxu0 0.0
    %190 = vmatprep.subr.mxu0 0.0
    %191 = vmatpush1.msra.mxu0 %v152
    %192 = vmatprep.subr.mxu0 0.0
    %193 = vmatpush1.msra.mxu0 %v151
    %194 = vmatprep.subr.mxu0 0.0
    %195 = vmatpush1.msra.mxu0 %v150
    %196 = vmatprep.subr.mxu0 0.0
    %197 = vmatpush1.msra.mxu0 %v149
    %198 = vmatprep.subr.mxu0 0.0
    %199 = vmatpush2.msra.mxu0 0.0
    %200 = vmatprep.subr.mxu0 0.0
    %201 = vmatpush2.msra.mxu0 0.0
    %202 = vmatprep.subr.mxu0 0.0
    %203 = vmatpush2.msra.mxu0 0.0
    %204 = vmatprep.subr.mxu0 0.0
    %205 = vmatpush2.msra.mxu0 0.0
    %206 = vmatprep.subr.mxu0 0.0
    %207 = vmatpush2.msra.mxu0 0.0
    %208 = vmatprep.subr.mxu0 0.0
    %209 = vmatpush2.msra.mxu0 0.0
    %210 = vmatprep.subr.mxu0 0.0
    %211 = vmatpush2.msra.mxu0 0.0
    %212 = vmatprep.subr.mxu0 0.0
    %213 = vmatpush2.msra.mxu0 0.0
    %214 = vmatprep.subr.mxu0 0.0
    %215 = vmatpush2.msra.mxu0 0.0
    %216 = vmatprep.subr.mxu0 0.0
    %217 = vmatpush2.msra.mxu0 0.0
    %218 = vmatprep.subr.mxu0 0.0
    %219 = vmatpush2.msra.mxu0 0.0
    %220 = vmatprep.subr.mxu0 0.0
    %221 = vmatpush2.msra.mxu0 0.0
    %222 = vmatprep.subr.mxu0 0.0
    %223 = vmatpush2.msra.mxu0 0.0
    %224 = vmatprep.subr.mxu0 0.0
    %225 = vmatpush2.msra.mxu0 0.0
    %226 = vmatprep.subr.mxu0 0.0
    %227 = vmatpush2.msra.mxu0 0.0
    %228 = vmatprep.subr.mxu0 0.0
    %229 = vmatpush2.msra.mxu0 0.0
    %230 = vmatprep.mubr.f32.mxu0 0.0
    %231 = vmatmul.mubr.f32.gmra.mxu0 %v161
    %v232 = vpop.f32.mrf.mxu0
    %v233 = vadd.f32 %v158, %v232
    %v234 = vpop.f32.mrf.mxu0
    %235 = vmatprep.mubr.f32.mxu0 0.0
    %236 = vmatmul.mubr.f32.gmra.mxu0 %v164
    %v237 = vpop.f32.mrf.mxu0
    %v238 = vadd.f32 %v158, %v237
    %v239 = vpop.f32.mrf.mxu0
    %240 = vdwg.mxu0
    %v241 = vlaneseq
    %v242 = vand.u32 %v241, 127
    %vm243 = vcmp.ge.s32.totalorder %v242, 64
    %vm244 = vcmp.lt.s32.totalorder %v242, 96
    %vm245 = vmand %vm243, %vm244
    %v246 = vsel %vm245, 1.0, 0.5
    %v247 = vld [vmem:[#allocation7] sm:$0xff]
    %v248 = vld [vmem:[#allocation7 + $0x8] sm:$0xff]
    %v249 = vld [vmem:[#allocation7 + $0x10] sm:$0xff]
    %v250 = vld [vmem:[#allocation7 + $0x18] sm:$0xff]
    %v251 = vld [vmem:[#allocation8] sm:$0xff]
    %v252 = vld [vmem:[#allocation8 + $0x8] sm:$0xff]
    %v253 = vld [vmem:[#allocation8 + $0x10] sm:$0xff]
    %v254 = vld [vmem:[#allocation8 + $0x18] sm:$0xff]
    %v255 = vmul.f32 %v251, %v246
    %v256 = vmul.f32 %v252, %v246
    %v257 = vmul.f32 %v253, %v246
    %v258 = vmul.f32 %v254, %v246
    %v259 = vld [vmem:[%s5] sm:$0x1]
    %v261 = vlaneseq
    %v262 = vshrl.u32 %v261, 7
    %v263 = vsub.s32 0, %v262
    %v264 = vrot.slane %v259, %v263
    %v267 = vsel %vm103, %v233, 0
    %v270 = vsel %vm103, %v238, 0
    %272 = vmatprep.subr.mxu0 0.0
    %273 = vmatpush1.msra.mxu0 0.0
    %274 = vmatprep.subr.mxu0 0.0
    %275 = vmatpush1.msra.mxu0 0.0
    %276 = vmatprep.subr.mxu0 0.0
    %277 = vmatpush1.msra.mxu0 0.0
    %278 = vmatprep.subr.mxu0 0.0
    %279 = vmatpush1.msra.mxu0 0.0
    %280 = vmatprep.subr.mxu0 0.0
    %281 = vmatpush1.msra.mxu0 0.0
    %282 = vmatprep.subr.mxu0 0.0
    %283 = vmatpush1.msra.mxu0 0.0
    %284 = vmatprep.subr.mxu0 0.0
    %285 = vmatpush1.msra.mxu0 0.0
    %286 = vmatprep.subr.mxu0 0.0
    %287 = vmatpush1.msra.mxu0 0.0
    %288 = vmatprep.subr.mxu0 0.0
    %289 = vmatpush1.msra.mxu0 0.0
    %290 = vmatprep.subr.mxu0 0.0
    %291 = vmatpush1.msra.mxu0 0.0
    %292 = vmatprep.subr.mxu0 0.0
    %293 = vmatpush1.msra.mxu0 0.0
    %294 = vmatprep.subr.mxu0 0.0
    %295 = vmatpush1.msra.mxu0 0.0
    %296 = vmatprep.subr.mxu0 0.0
    %297 = vmatpush1.msra.mxu0 %v250
    %298 = vmatprep.subr.mxu0 0.0
    %299 = vmatpush1.msra.mxu0 %v249
    %300 = vmatprep.subr.mxu0 0.0
    %301 = vmatpush1.msra.mxu0 %v248
    %302 = vmatprep.subr.mxu0 0.0
    %303 = vmatpush1.msra.mxu0 %v247
    %304 = vmatprep.subr.mxu0 0.0
    %305 = vmatpush2.msra.mxu0 0.0
    %306 = vmatprep.subr.mxu0 0.0
    %307 = vmatpush2.msra.mxu0 0.0
    %308 = vmatprep.subr.mxu0 0.0
    %309 = vmatpush2.msra.mxu0 0.0
    %310 = vmatprep.subr.mxu0 0.0
    %311 = vmatpush2.msra.mxu0 0.0
    %312 = vmatprep.subr.mxu0 0.0
    %313 = vmatpush2.msra.mxu0 0.0
    %314 = vmatprep.subr.mxu0 0.0
    %315 = vmatpush2.msra.mxu0 0.0
    %316 = vmatprep.subr.mxu0 0.0
    %317 = vmatpush2.msra.mxu0 0.0
    %318 = vmatprep.subr.mxu0 0.0
    %319 = vmatpush2.msra.mxu0 0.0
    %320 = vmatprep.subr.mxu0 0.0
    %321 = vmatpush2.msra.mxu0 0.0
    %322 = vmatprep.subr.mxu0 0.0
    %323 = vmatpush2.msra.mxu0 0.0
    %324 = vmatprep.subr.mxu0 0.0
    %325 = vmatpush2.msra.mxu0 0.0
    %326 = vmatprep.subr.mxu0 0.0
    %327 = vmatpush2.msra.mxu0 0.0
    %328 = vmatprep.subr.mxu0 0.0
    %329 = vmatpush2.msra.mxu0 0.0
    %330 = vmatprep.subr.mxu0 0.0
    %331 = vmatpush2.msra.mxu0 0.0
    %332 = vmatprep.subr.mxu0 0.0
    %333 = vmatpush2.msra.mxu0 0.0
    %334 = vmatprep.subr.mxu0 0.0
    %335 = vmatpush2.msra.mxu0 0.0
    %336 = vmatprep.mubr.f32.mxu0 0.0
    %337 = vmatmul.mubr.f32.gmra.mxu0 %v267
    %v338 = vpop.f32.mrf.mxu0
    %v339 = vadd.f32 %v264, %v338
    %v340 = vpop.f32.mrf.mxu0
    %341 = vmatprep.mubr.f32.mxu0 0.0
    %342 = vmatmul.mubr.f32.gmra.mxu0 %v270
    %v343 = vpop.f32.mrf.mxu0
    %v344 = vadd.f32 %v264, %v343
    %v345 = vpop.f32.mrf.mxu0
    %346 = vdwg.mxu0
    %v347 = vmul.f32 %v339, %v246
    %v348 = vmul.f32 %v344, %v246
    %v350 = vsel %vm103, 0.0, 0
    %352 = vmatprep.subr.mxu0 0.0
    %353 = vmatpush1.msra.mxu0 0.0
    %354 = vmatprep.subr.mxu0 0.0
    %355 = vmatpush1.msra.mxu0 0.0
    %356 = vmatprep.subr.mxu0 0.0
    %357 = vmatpush1.msra.mxu0 0.0
    %358 = vmatprep.subr.mxu0 0.0
    %359 = vmatpush1.msra.mxu0 0.0
    %360 = vmatprep.subr.mxu0 0.0
    %361 = vmatpush1.msra.mxu0 0.0
    %362 = vmatprep.subr.mxu0 0.0
    %363 = vmatpush1.msra.mxu0 0.0
    %364 = vmatprep.subr.mxu0 0.0
    %365 = vmatpush1.msra.mxu0 0.0
    %366 = vmatprep.subr.mxu0 0.0
    %367 = vmatpush1.msra.mxu0 0.0
    %368 = vmatprep.subr.mxu0 0.0
    %369 = vmatpush1.msra.mxu0 0.0
    %370 = vmatprep.subr.mxu0 0.0
    %371 = vmatpush1.msra.mxu0 0.0
    %372 = vmatprep.subr.mxu0 0.0
    %373 = vmatpush1.msra.mxu0 0.0
    %374 = vmatprep.subr.mxu0 0.0
    %375 = vmatpush1.msra.mxu0 0.0
    %376 = vmatprep.subr.mxu0 0.0
    %377 = vmatpush1.msra.mxu0 %v258
    %378 = vmatprep.subr.mxu0 0.0
    %379 = vmatpush1.msra.mxu0 %v257
    %380 = vmatprep.subr.mxu0 0.0
    %381 = vmatpush1.msra.mxu0 %v256
    %382 = vmatprep.subr.mxu0 0.0
    %383 = vmatpush1.msra.mxu0 %v255
    %384 = vmatprep.subr.mxu0 0.0
    %385 = vmatpush2.msra.mxu0 0.0
    %386 = vmatprep.subr.mxu0 0.0
    %387 = vmatpush2.msra.mxu0 0.0
    %388 = vmatprep.subr.mxu0 0.0
    %389 = vmatpush2.msra.mxu0 0.0
    %390 = vmatprep.subr.mxu0 0.0
    %391 = vmatpush2.msra.mxu0 0.0
    %392 = vmatprep.subr.mxu0 0.0
    %393 = vmatpush2.msra.mxu0 0.0
    %394 = vmatprep.subr.mxu0 0.0
    %395 = vmatpush2.msra.mxu0 0.0
    %396 = vmatprep.subr.mxu0 0.0
    %397 = vmatpush2.msra.mxu0 0.0
    %398 = vmatprep.subr.mxu0 0.0
    %399 = vmatpush2.msra.mxu0 0.0
    %400 = vmatprep.subr.mxu0 0.0
    %401 = vmatpush2.msra.mxu0 0.0
    %402 = vmatprep.subr.mxu0 0.0
    %403 = vmatpush2.msra.mxu0 0.0
    %404 = vmatprep.subr.mxu0 0.0
    %405 = vmatpush2.msra.mxu0 0.0
    %406 = vmatprep.subr.mxu0 0.0
    %407 = vmatpush2.msra.mxu0 0.0
    %408 = vmatprep.subr.mxu0 0.0
    %409 = vmatpush2.msra.mxu0 0.0
    %410 = vmatprep.subr.mxu0 0.0
    %411 = vmatpush2.msra.mxu0 0.0
    %412 = vmatprep.subr.mxu0 0.0
    %413 = vmatpush2.msra.mxu0 0.0
    %414 = vmatprep.subr.mxu0 0.0
    %415 = vmatpush2.msra.mxu0 0.0
    %416 = vmatprep.mubr.f32.mxu0 0.0
    %417 = vmatmul.mubr.f32.gmra.mxu0 %v350
    %v418 = vpop.f32.mrf.mxu0
    %v419 = vadd.f32 0.0, %v418
    %v420 = vpop.f32.mrf.mxu0
    %421 = vdwg.mxu0
    %v423 = vrot.slane %v419, 1
    %v426 = vadd.f32 %v347, %v419
    %v427 = vadd.f32 %v348, %v423
    %v428 = vtanh.pop %v426
    %v429 = vtanh.pop %v427
    %v430 = vmul.f32 %v428, 0.5
    %v431 = vmul.f32 %v429, 0.5
    %v432 = vadd.f32 %v430, 0.5
    %v433 = vadd.f32 %v431, 0.5
    %v434 = vmul.f32 %v432, 0.0
    %v435 = vmul.f32 %v433, 0.0
    %438 = vrot.lane.b32.xlu0 %v428, 64
    %v439 = vpop.permute.xlu0 %438
    %440 = vrot.lane.b32.xlu0 %v429, 64
    %v441 = vpop.permute.xlu0 %440
    %v444 = vmul.f32 %v432, %v439
    %v445 = vmul.f32 %v433, %v441
    %448 = vrot.lane.b32.xlu0 %v444, 32
    %v449 = vpop.permute.xlu0 %448
    %450 = vrot.lane.b32.xlu0 %v445, 32
    %v451 = vpop.permute.xlu0 %450
    %v454 = vadd.f32 %v434, %v449
    %v455 = vadd.f32 %v435, %v451
    %v456 = vtanh.pop %v454
    %v457 = vtanh.pop %v455
    %460 = vrot.lane.b32.xlu0 %v456, 64
    %v461 = vpop.permute.xlu0 %460
    %462 = vrot.lane.b32.xlu0 %v457, 64
    %v463 = vpop.permute.xlu0 %462
    %v466 = vmul.f32 %v432, %v461
    %v467 = vmul.f32 %v433, %v463
    %v470 = vrot.slane %v467, 7
    %vm471 = vcmask 1041409
    %v472 = vsel %vm471, %v470, %v466
    %473 = vrot.lane.b32.xlu0 %v472, 32
    %v474 = vpop.permute.xlu0 %473
    %v475 = vsel %vm103, %v474, 0
    %477 = vmatprep.subr.mxu0 0.0
    %478 = vmatpush1.msra.mxu0 0.0
    %479 = vmatprep.subr.mxu0 0.0
    %480 = vmatpush1.msra.mxu0 0.0
    %481 = vmatprep.subr.mxu0 0.0
    %482 = vmatpush1.msra.mxu0 0.0
    %483 = vmatprep.subr.mxu0 0.0
    %484 = vmatpush1.msra.mxu0 0.0
    %485 = vmatprep.subr.mxu0 0.0
    %486 = vmatpush1.msra.mxu0 0.0
    %487 = vmatprep.subr.mxu0 0.0
    %488 = vmatpush1.msra.mxu0 0.0
    %489 = vmatprep.subr.mxu0 0.0
    %490 = vmatpush1.msra.mxu0 0.0
    %491 = vmatprep.subr.mxu0 0.0
    %492 = vmatpush1.msra.mxu0 0.0
    %493 = vmatprep.subr.mxu0 0.0
    %494 = vmatpush1.msra.mxu0 0.0
    %495 = vmatprep.subr.mxu0 0.0
    %496 = vmatpush1.msra.mxu0 0.0
    %497 = vmatprep.subr.mxu0 0.0
    %498 = vmatpush1.msra.mxu0 0.0
    %499 = vmatprep.subr.mxu0 0.0
    %500 = vmatpush1.msra.mxu0 0.0
    %501 = vmatprep.subr.mxu0 0.0
    %502 = vmatpush1.msra.mxu0 %v258
    %503 = vmatprep.subr.mxu0 0.0
    %504 = vmatpush1.msra.mxu0 %v257
    %505 = vmatprep.subr.mxu0 0.0
    %506 = vmatpush1.msra.mxu0 %v256
    %507 = vmatprep.subr.mxu0 0.0
    %508 = vmatpush1.msra.mxu0 %v255
    %509 = vmatprep.subr.mxu0 0.0
    %510 = vmatpush2.msra.mxu0 0.0
    %511 = vmatprep.subr.mxu0 0.0
    %512 = vmatpush2.msra.mxu0 0.0
    %513 = vmatprep.subr.mxu0 0.0
    %514 = vmatpush2.msra.mxu0 0.0
    %515 = vmatprep.subr.mxu0 0.0
    %516 = vmatpush2.msra.mxu0 0.0
    %517 = vmatprep.subr.mxu0 0.0
    %518 = vmatpush2.msra.mxu0 0.0
    %519 = vmatprep.subr.mxu0 0.0
    %520 = vmatpush2.msra.mxu0 0.0
    %521 = vmatprep.subr.mxu0 0.0
    %522 = vmatpush2.msra.mxu0 0.0
    %523 = vmatprep.subr.mxu0 0.0
    %524 = vmatpush2.msra.mxu0 0.0
    %525 = vmatprep.subr.mxu0 0.0
    %526 = vmatpush2.msra.mxu0 0.0
    %527 = vmatprep.subr.mxu0 0.0
    %528 = vmatpush2.msra.mxu0 0.0
    %529 = vmatprep.subr.mxu0 0.0
    %530 = vmatpush2.msra.mxu0 0.0
    %531 = vmatprep.subr.mxu0 0.0
    %532 = vmatpush2.msra.mxu0 0.0
    %533 = vmatprep.subr.mxu0 0.0
    %534 = vmatpush2.msra.mxu0 0.0
    %535 = vmatprep.subr.mxu0 0.0
    %536 = vmatpush2.msra.mxu0 0.0
    %537 = vmatprep.subr.mxu0 0.0
    %538 = vmatpush2.msra.mxu0 0.0
    %539 = vmatprep.subr.mxu0 0.0
    %540 = vmatpush2.msra.mxu0 0.0
    %541 = vmatprep.mubr.f32.mxu0 0.0
    %542 = vmatmul.mubr.f32.gmra.mxu0 %v475
    %v543 = vpop.f32.mrf.mxu0
    %v544 = vadd.f32 0.0, %v543
    %v545 = vpop.f32.mrf.mxu0
    %546 = vdwg.mxu0
    %v548 = vrot.slane %v544, 7
    %v551 = vadd.f32 %v347, %v548
    %v552 = vadd.f32 %v348, %v544
    %v553 = vtanh.pop %v551
    %v554 = vtanh.pop %v552
    %v555 = vmul.f32 %v553, 0.5
    %v556 = vmul.f32 %v554, 0.5
    %v557 = vadd.f32 %v555, 0.5
    %v558 = vadd.f32 %v556, 0.5
    %v561 = vrot.slane %v454, 7
    %v562 = vrot.slane %v455, 7
    %v565 = vmul.f32 %v557, %v561
    %v566 = vmul.f32 %v558, %v562
    %569 = vrot.lane.b32.xlu0 %v553, 64
    %v570 = vpop.permute.xlu0 %569
    %571 = vrot.lane.b32.xlu0 %v554, 64
    %v572 = vpop.permute.xlu0 %571
    %v575 = vmul.f32 %v557, %v570
    %v576 = vmul.f32 %v558, %v572
    %579 = vrot.lane.b32.xlu0 %v575, 32
    %v580 = vpop.permute.xlu0 %579
    %581 = vrot.lane.b32.xlu0 %v576, 32
    %v582 = vpop.permute.xlu0 %581
    %v585 = vadd.f32 %v565, %v580
    %v586 = vadd.f32 %v566, %v582
    %v587 = vtanh.pop %v585
    %v588 = vtanh.pop %v586
    %591 = vrot.lane.b32.xlu0 %v587, 64
    %v592 = vpop.permute.xlu0 %591
    %593 = vrot.lane.b32.xlu0 %v588, 64
    %v594 = vpop.permute.xlu0 %593
    %v597 = vmul.f32 %v557, %v592
    %v598 = vmul.f32 %v558, %v594
    %v601 = vrot.slane %v597, 1
    %v602 = vsel %vm471, %v598, %v601
    %603 = vrot.lane.b32.xlu0 %v602, 32
    %v604 = vpop.permute.xlu0 %603
    %v605 = vsel %vm103, %v604, 0
    %607 = vmatprep.subr.mxu0 0.0
    %608 = vmatpush1.msra.mxu0 0.0
    %609 = vmatprep.subr.mxu0 0.0
    %610 = vmatpush1.msra.mxu0 0.0
    %611 = vmatprep.subr.mxu0 0.0
    %612 = vmatpush1.msra.mxu0 0.0
    %613 = vmatprep.subr.mxu0 0.0
    %614 = vmatpush1.msra.mxu0 0.0
    %615 = vmatprep.subr.mxu0 0.0
    %616 = vmatpush1.msra.mxu0 0.0
    %617 = vmatprep.subr.mxu0 0.0
    %618 = vmatpush1.msra.mxu0 0.0
    %619 = vmatprep.subr.mxu0 0.0
    %620 = vmatpush1.msra.mxu0 0.0
    %621 = vmatprep.subr.mxu0 0.0
    %622 = vmatpush1.msra.mxu0 0.0
    %623 = vmatprep.subr.mxu0 0.0
    %624 = vmatpush1.msra.mxu0 0.0
    %625 = vmatprep.subr.mxu0 0.0
    %626 = vmatpush1.msra.mxu0 0.0
    %627 = vmatprep.subr.mxu0 0.0
    %628 = vmatpush1.msra.mxu0 0.0
    %629 = vmatprep.subr.mxu0 0.0
    %630 = vmatpush1.msra.mxu0 0.0
    %631 = vmatprep.subr.mxu0 0.0
    %632 = vmatpush1.msra.mxu0 %v258
    %633 = vmatprep.subr.mxu0 0.0
    %634 = vmatpush1.msra.mxu0 %v257
    %635 = vmatprep.subr.mxu0 0.0
    %636 = vmatpush1.msra.mxu0 %v256
    %637 = vmatprep.subr.mxu0 0.0
    %638 = vmatpush1.msra.mxu0 %v255
    %639 = vmatprep.subr.mxu0 0.0
    %640 = vmatpush2.msra.mxu0 0.0
    %641 = vmatprep.subr.mxu0 0.0
    %642 = vmatpush2.msra.mxu0 0.0
    %643 = vmatprep.subr.mxu0 0.0
    %644 = vmatpush2.msra.mxu0 0.0
    %645 = vmatprep.subr.mxu0 0.0
    %646 = vmatpush2.msra.mxu0 0.0
    %647 = vmatprep.subr.mxu0 0.0
    %648 = vmatpush2.msra.mxu0 0.0
    %649 = vmatprep.subr.mxu0 0.0
    %650 = vmatpush2.msra.mxu0 0.0
    %651 = vmatprep.subr.mxu0 0.0
    %652 = vmatpush2.msra.mxu0 0.0
    %653 = vmatprep.subr.mxu0 0.0
    %654 = vmatpush2.msra.mxu0 0.0
    %655 = vmatprep.subr.mxu0 0.0
    %656 = vmatpush2.msra.mxu0 0.0
    %657 = vmatprep.subr.mxu0 0.0
    %658 = vmatpush2.msra.mxu0 0.0
    %659 = vmatprep.subr.mxu0 0.0
    %660 = vmatpush2.msra.mxu0 0.0
    %661 = vmatprep.subr.mxu0 0.0
    %662 = vmatpush2.msra.mxu0 0.0
    %663 = vmatprep.subr.mxu0 0.0
    %664 = vmatpush2.msra.mxu0 0.0
    %665 = vmatprep.subr.mxu0 0.0
    %666 = vmatpush2.msra.mxu0 0.0
    %667 = vmatprep.subr.mxu0 0.0
    %668 = vmatpush2.msra.mxu0 0.0
    %669 = vmatprep.subr.mxu0 0.0
    %670 = vmatpush2.msra.mxu0 0.0
    %671 = vmatprep.mubr.f32.mxu0 0.0
    %672 = vmatmul.mubr.f32.gmra.mxu0 %v605
    %v673 = vpop.f32.mrf.mxu0
    %v674 = vadd.f32 0.0, %v673
    %v675 = vpop.f32.mrf.mxu0
    %676 = vdwg.mxu0
    %v678 = vrot.slane %v674, 6
    %v679 = vrot.slane %v674, 7
    %v682 = vadd.f32 %v347, %v678
    %v683 = vadd.f32 %v348, %v679
    %v684 = vtanh.pop %v682
    %v685 = vtanh.pop %v683
    %v686 = vmul.f32 %v684, 0.5
    %v687 = vmul.f32 %v685, 0.5
    %v688 = vadd.f32 %v686, 0.5
    %v689 = vadd.f32 %v687, 0.5
    %v692 = vrot.slane %v585, 7
    %v693 = vrot.slane %v586, 7
    %v696 = vmul.f32 %v688, %v692
    %v697 = vmul.f32 %v689, %v693
    %700 = vrot.lane.b32.xlu0 %v684, 64
    %v701 = vpop.permute.xlu0 %700
    %702 = vrot.lane.b32.xlu0 %v685, 64
    %v703 = vpop.permute.xlu0 %702
    %v706 = vmul.f32 %v688, %v701
    %v707 = vmul.f32 %v689, %v703
    %710 = vrot.lane.b32.xlu0 %v706, 32
    %v711 = vpop.permute.xlu0 %710
    %712 = vrot.lane.b32.xlu0 %v707, 32
    %v713 = vpop.permute.xlu0 %712
    %v716 = vadd.f32 %v696, %v711
    %v717 = vadd.f32 %v697, %v713
    %v718 = vtanh.pop %v716
    %v719 = vtanh.pop %v717
    %722 = vrot.lane.b32.xlu0 %v718, 64
    %v723 = vpop.permute.xlu0 %722
    %724 = vrot.lane.b32.xlu0 %v719, 64
    %v725 = vpop.permute.xlu0 %724
    %v728 = vmul.f32 %v688, %v723
    %v729 = vmul.f32 %v689, %v725
    %v732 = vrot.slane %v728, 2
    %v733 = vrot.slane %v729, 1
    %v734 = vsel %vm471, %v733, %v732
    %735 = vrot.lane.b32.xlu0 %v734, 32
    %v736 = vpop.permute.xlu0 %735
    %v737 = vsel %vm103, %v736, 0
    %739 = vmatprep.subr.mxu0 0.0
    %740 = vmatpush1.msra.mxu0 0.0
    %741 = vmatprep.subr.mxu0 0.0
    %742 = vmatpush1.msra.mxu0 0.0
    %743 = vmatprep.subr.mxu0 0.0
    %744 = vmatpush1.msra.mxu0 0.0
    %745 = vmatprep.subr.mxu0 0.0
    %746 = vmatpush1.msra.mxu0 0.0
    %747 = vmatprep.subr.mxu0 0.0
    %748 = vmatpush1.msra.mxu0 0.0
    %749 = vmatprep.subr.mxu0 0.0
    %750 = vmatpush1.msra.mxu0 0.0
    %751 = vmatprep.subr.mxu0 0.0
    %752 = vmatpush1.msra.mxu0 0.0
    %753 = vmatprep.subr.mxu0 0.0
    %754 = vmatpush1.msra.mxu0 0.0
    %755 = vmatprep.subr.mxu0 0.0
    %756 = vmatpush1.msra.mxu0 0.0
    %757 = vmatprep.subr.mxu0 0.0
    %758 = vmatpush1.msra.mxu0 0.0
    %759 = vmatprep.subr.mxu0 0.0
    %760 = vmatpush1.msra.mxu0 0.0
    %761 = vmatprep.subr.mxu0 0.0
    %762 = vmatpush1.msra.mxu0 0.0
    %763 = vmatprep.subr.mxu0 0.0
    %764 = vmatpush1.msra.mxu0 %v258
    %765 = vmatprep.subr.mxu0 0.0
    %766 = vmatpush1.msra.mxu0 %v257
    %767 = vmatprep.subr.mxu0 0.0
    %768 = vmatpush1.msra.mxu0 %v256
    %769 = vmatprep.subr.mxu0 0.0
    %770 = vmatpush1.msra.mxu0 %v255
    %771 = vmatprep.subr.mxu0 0.0
    %772 = vmatpush2.msra.mxu0 0.0
    %773 = vmatprep.subr.mxu0 0.0
    %774 = vmatpush2.msra.mxu0 0.0
    %775 = vmatprep.subr.mxu0 0.0
    %776 = vmatpush2.msra.mxu0 0.0
    %777 = vmatprep.subr.mxu0 0.0
    %778 = vmatpush2.msra.mxu0 0.0
    %779 = vmatprep.subr.mxu0 0.0
    %780 = vmatpush2.msra.mxu0 0.0
    %781 = vmatprep.subr.mxu0 0.0
    %782 = vmatpush2.msra.mxu0 0.0
    %783 = vmatprep.subr.mxu0 0.0
    %784 = vmatpush2.msra.mxu0 0.0
    %785 = vmatprep.subr.mxu0 0.0
    %786 = vmatpush2.msra.mxu0 0.0
    %787 = vmatprep.subr.mxu0 0.0
    %788 = vmatpush2.msra.mxu0 0.0
    %789 = vmatprep.subr.mxu0 0.0
    %790 = vmatpush2.msra.mxu0 0.0
    %791 = vmatprep.subr.mxu0 0.0
    %792 = vmatpush2.msra.mxu0 0.0
    %793 = vmatprep.subr.mxu0 0.0
    %794 = vmatpush2.msra.mxu0 0.0
    %795 = vmatprep.subr.mxu0 0.0
    %796 = vmatpush2.msra.mxu0 0.0
    %797 = vmatprep.subr.mxu0 0.0
    %798 = vmatpush2.msra.mxu0 0.0
    %799 = vmatprep.subr.mxu0 0.0
    %800 = vmatpush2.msra.mxu0 0.0
    %801 = vmatprep.subr.mxu0 0.0
    %802 = vmatpush2.msra.mxu0 0.0
    %803 = vmatprep.mubr.f32.mxu0 0.0
    %804 = vmatmul.mubr.f32.gmra.mxu0 %v737
    %v805 = vpop.f32.mrf.mxu0
    %v806 = vadd.f32 0.0, %v805
    %v807 = vpop.f32.mrf.mxu0
    %808 = vdwg.mxu0
    %v810 = vrot.slane %v806, 5
    %v811 = vrot.slane %v806, 6
    %v814 = vadd.f32 %v347, %v810
    %v815 = vadd.f32 %v348, %v811
    %v816 = vtanh.pop %v814
    %v817 = vtanh.pop %v815
    %v818 = vmul.f32 %v816, 0.5
    %v819 = vmul.f32 %v817, 0.5
    %v820 = vadd.f32 %v818, 0.5
    %v821 = vadd.f32 %v819, 0.5
    %v824 = vrot.slane %v716, 7
    %v825 = vrot.slane %v717, 7
    %v828 = vmul.f32 %v820, %v824
    %v829 = vmul.f32 %v821, %v825
    %832 = vrot.lane.b32.xlu0 %v816, 64
    %v833 = vpop.permute.xlu0 %832
    %834 = vrot.lane.b32.xlu0 %v817, 64
    %v835 = vpop.permute.xlu0 %834
    %v838 = vmul.f32 %v820, %v833
    %v839 = vmul.f32 %v821, %v835
    %842 = vrot.lane.b32.xlu0 %v838, 32
    %v843 = vpop.permute.xlu0 %842
    %844 = vrot.lane.b32.xlu0 %v839, 32
    %v845 = vpop.permute.xlu0 %844
    %v848 = vadd.f32 %v828, %v843
    %v849 = vadd.f32 %v829, %v845
    %v850 = vtanh.pop %v848
    %v851 = vtanh.pop %v849
    %854 = vrot.lane.b32.xlu0 %v850, 64
    %v855 = vpop.permute.xlu0 %854
    %856 = vrot.lane.b32.xlu0 %v851, 64
    %v857 = vpop.permute.xlu0 %856
    %v860 = vmul.f32 %v820, %v855
    %v861 = vmul.f32 %v821, %v857
    %v864 = vrot.slane %v860, 3
    %v865 = vrot.slane %v861, 2
    %v866 = vsel %vm471, %v865, %v864
    %867 = vrot.lane.b32.xlu0 %v866, 32
    %v868 = vpop.permute.xlu0 %867
    %v869 = vsel %vm103, %v868, 0
    %871 = vmatprep.subr.mxu0 0.0
    %872 = vmatpush1.msra.mxu0 0.0
    %873 = vmatprep.subr.mxu0 0.0
    %874 = vmatpush1.msra.mxu0 0.0
    %875 = vmatprep.subr.mxu0 0.0
    %876 = vmatpush1.msra.mxu0 0.0
    %877 = vmatprep.subr.mxu0 0.0
    %878 = vmatpush1.msra.mxu0 0.0
    %879 = vmatprep.subr.mxu0 0.0
    %880 = vmatpush1.msra.mxu0 0.0
    %881 = vmatprep.subr.mxu0 0.0
    %882 = vmatpush1.msra.mxu0 0.0
    %883 = vmatprep.subr.mxu0 0.0
    %884 = vmatpush1.msra.mxu0 0.0
    %885 = vmatprep.subr.mxu0 0.0
    %886 = vmatpush1.msra.mxu0 0.0
    %887 = vmatprep.subr.mxu0 0.0
    %888 = vmatpush1.msra.mxu0 0.0
    %889 = vmatprep.subr.mxu0 0.0
    %890 = vmatpush1.msra.mxu0 0.0
    %891 = vmatprep.subr.mxu0 0.0
    %892 = vmatpush1.msra.mxu0 0.0
    %893 = vmatprep.subr.mxu0 0.0
    %894 = vmatpush1.msra.mxu0 0.0
    %895 = vmatprep.subr.mxu0 0.0
    %896 = vmatpush1.msra.mxu0 %v258
    %897 = vmatprep.subr.mxu0 0.0
    %898 = vmatpush1.msra.mxu0 %v257
    %899 = vmatprep.subr.mxu0 0.0
    %900 = vmatpush1.msra.mxu0 %v256
    %901 = vmatprep.subr.mxu0 0.0
    %902 = vmatpush1.msra.mxu0 %v255
    %903 = vmatprep.subr.mxu0 0.0
    %904 = vmatpush2.msra.mxu0 0.0
    %905 = vmatprep.subr.mxu0 0.0
    %906 = vmatpush2.msra.mxu0 0.0
    %907 = vmatprep.subr.mxu0 0.0
    %908 = vmatpush2.msra.mxu0 0.0
    %909 = vmatprep.subr.mxu0 0.0
    %910 = vmatpush2.msra.mxu0 0.0
    %911 = vmatprep.subr.mxu0 0.0
    %912 = vmatpush2.msra.mxu0 0.0
    %913 = vmatprep.subr.mxu0 0.0
    %914 = vmatpush2.msra.mxu0 0.0
    %915 = vmatprep.subr.mxu0 0.0
    %916 = vmatpush2.msra.mxu0 0.0
    %917 = vmatprep.subr.mxu0 0.0
    %918 = vmatpush2.msra.mxu0 0.0
    %919 = vmatprep.subr.mxu0 0.0
    %920 = vmatpush2.msra.mxu0 0.0
    %921 = vmatprep.subr.mxu0 0.0
    %922 = vmatpush2.msra.mxu0 0.0
    %923 = vmatprep.subr.mxu0 0.0
    %924 = vmatpush2.msra.mxu0 0.0
    %925 = vmatprep.subr.mxu0 0.0
    %926 = vmatpush2.msra.mxu0 0.0
    %927 = vmatprep.subr.mxu0 0.0
    %928 = vmatpush2.msra.mxu0 0.0
    %929 = vmatprep.subr.mxu0 0.0
    %930 = vmatpush2.msra.mxu0 0.0
    %931 = vmatprep.subr.mxu0 0.0
    %932 = vmatpush2.msra.mxu0 0.0
    %933 = vmatprep.subr.mxu0 0.0
    %934 = vmatpush2.msra.mxu0 0.0
    %935 = vmatprep.mubr.f32.mxu0 0.0
    %936 = vmatmul.mubr.f32.gmra.mxu0 %v869
    %v937 = vpop.f32.mrf.mxu0
    %v938 = vadd.f32 0.0, %v937
    %v939 = vpop.f32.mrf.mxu0
    %940 = vdwg.mxu0
    %v942 = vrot.slane %v938, 4
    %v943 = vrot.slane %v938, 5
    %v946 = vadd.f32 %v347, %v942
    %v947 = vadd.f32 %v348, %v943
    %v948 = vtanh.pop %v946
    %v949 = vtanh.pop %v947
    %v950 = vmul.f32 %v948, 0.5
    %v951 = vmul.f32 %v949, 0.5
    %v952 = vadd.f32 %v950, 0.5
    %v953 = vadd.f32 %v951, 0.5
    %v956 = vrot.slane %v848, 7
    %v957 = vrot.slane %v849, 7
    %v960 = vmul.f32 %v952, %v956
    %v961 = vmul.f32 %v953, %v957
    %964 = vrot.lane.b32.xlu0 %v948, 64
    %v965 = vpop.permute.xlu0 %964
    %966 = vrot.lane.b32.xlu0 %v949, 64
    %v967 = vpop.permute.xlu0 %966
    %v970 = vmul.f32 %v952, %v965
    %v971 = vmul.f32 %v953, %v967
    %974 = vrot.lane.b32.xlu0 %v970, 32
    %v975 = vpop.permute.xlu0 %974
    %976 = vrot.lane.b32.xlu0 %v971, 32
    %v977 = vpop.permute.xlu0 %976
    %v980 = vadd.f32 %v960, %v975
    %v981 = vadd.f32 %v961, %v977
    %v982 = vtanh.pop %v980
    %v983 = vtanh.pop %v981
    %986 = vrot.lane.b32.xlu0 %v982, 64
    %v987 = vpop.permute.xlu0 %986
    %988 = vrot.lane.b32.xlu0 %v983, 64
    %v989 = vpop.permute.xlu0 %988
    %v992 = vmul.f32 %v952, %v987
    %v993 = vmul.f32 %v953, %v989
    %v996 = vrot.slane %v992, 4
    %v997 = vrot.slane %v993, 3
    %v998 = vsel %vm471, %v997, %v996
    %999 = vrot.lane.b32.xlu0 %v998, 32
    %v1000 = vpop.permute.xlu0 %999
    %v1001 = vsel %vm103, %v1000, 0
    %1003 = vmatprep.subr.mxu0 0.0
    %1004 = vmatpush1.msra.mxu0 0.0
    %1005 = vmatprep.subr.mxu0 0.0
    %1006 = vmatpush1.msra.mxu0 0.0
    %1007 = vmatprep.subr.mxu0 0.0
    %1008 = vmatpush1.msra.mxu0 0.0
    %1009 = vmatprep.subr.mxu0 0.0
    %1010 = vmatpush1.msra.mxu0 0.0
    %1011 = vmatprep.subr.mxu0 0.0
    %1012 = vmatpush1.msra.mxu0 0.0
    %1013 = vmatprep.subr.mxu0 0.0
    %1014 = vmatpush1.msra.mxu0 0.0
    %1015 = vmatprep.subr.mxu0 0.0
    %1016 = vmatpush1.msra.mxu0 0.0
    %1017 = vmatprep.subr.mxu0 0.0
    %1018 = vmatpush1.msra.mxu0 0.0
    %1019 = vmatprep.subr.mxu0 0.0
    %1020 = vmatpush1.msra.mxu0 0.0
    %1021 = vmatprep.subr.mxu0 0.0
    %1022 = vmatpush1.msra.mxu0 0.0
    %1023 = vmatprep.subr.mxu0 0.0
    %1024 = vmatpush1.msra.mxu0 0.0
    %1025 = vmatprep.subr.mxu0 0.0
    %1026 = vmatpush1.msra.mxu0 0.0
    %1027 = vmatprep.subr.mxu0 0.0
    %1028 = vmatpush1.msra.mxu0 %v258
    %1029 = vmatprep.subr.mxu0 0.0
    %1030 = vmatpush1.msra.mxu0 %v257
    %1031 = vmatprep.subr.mxu0 0.0
    %1032 = vmatpush1.msra.mxu0 %v256
    %1033 = vmatprep.subr.mxu0 0.0
    %1034 = vmatpush1.msra.mxu0 %v255
    %1035 = vmatprep.subr.mxu0 0.0
    %1036 = vmatpush2.msra.mxu0 0.0
    %1037 = vmatprep.subr.mxu0 0.0
    %1038 = vmatpush2.msra.mxu0 0.0
    %1039 = vmatprep.subr.mxu0 0.0
    %1040 = vmatpush2.msra.mxu0 0.0
    %1041 = vmatprep.subr.mxu0 0.0
    %1042 = vmatpush2.msra.mxu0 0.0
    %1043 = vmatprep.subr.mxu0 0.0
    %1044 = vmatpush2.msra.mxu0 0.0
    %1045 = vmatprep.subr.mxu0 0.0
    %1046 = vmatpush2.msra.mxu0 0.0
    %1047 = vmatprep.subr.mxu0 0.0
    %1048 = vmatpush2.msra.mxu0 0.0
    %1049 = vmatprep.subr.mxu0 0.0
    %1050 = vmatpush2.msra.mxu0 0.0
    %1051 = vmatprep.subr.mxu0 0.0
    %1052 = vmatpush2.msra.mxu0 0.0
    %1053 = vmatprep.subr.mxu0 0.0
    %1054 = vmatpush2.msra.mxu0 0.0
    %1055 = vmatprep.subr.mxu0 0.0
    %1056 = vmatpush2.msra.mxu0 0.0
    %1057 = vmatprep.subr.mxu0 0.0
    %1058 = vmatpush2.msra.mxu0 0.0
    %1059 = vmatprep.subr.mxu0 0.0
    %1060 = vmatpush2.msra.mxu0 0.0
    %1061 = vmatprep.subr.mxu0 0.0
    %1062 = vmatpush2.msra.mxu0 0.0
    %1063 = vmatprep.subr.mxu0 0.0
    %1064 = vmatpush2.msra.mxu0 0.0
    %1065 = vmatprep.subr.mxu0 0.0
    %1066 = vmatpush2.msra.mxu0 0.0
    %1067 = vmatprep.mubr.f32.mxu0 0.0
    %1068 = vmatmul.mubr.f32.gmra.mxu0 %v1001
    %v1069 = vpop.f32.mrf.mxu0
    %v1070 = vadd.f32 0.0, %v1069
    %v1071 = vpop.f32.mrf.mxu0
    %1072 = vdwg.mxu0
    %v1074 = vrot.slane %v1070, 3
    %v1075 = vrot.slane %v1070, 4
    %v1078 = vadd.f32 %v347, %v1074
    %v1079 = vadd.f32 %v348, %v1075
    %v1080 = vtanh.pop %v1078
    %v1081 = vtanh.pop %v1079
    %v1082 = vmul.f32 %v1080, 0.5
    %v1083 = vmul.f32 %v1081, 0.5
    %v1084 = vadd.f32 %v1082, 0.5
    %v1085 = vadd.f32 %v1083, 0.5
    %v1088 = vrot.slane %v980, 7
    %v1089 = vrot.slane %v981, 7
    %v1092 = vmul.f32 %v1084, %v1088
    %v1093 = vmul.f32 %v1085, %v1089
    %1096 = vrot.lane.b32.xlu0 %v1080, 64
    %v1097 = vpop.permute.xlu0 %1096
    %1098 = vrot.lane.b32.xlu0 %v1081, 64
    %v1099 = vpop.permute.xlu0 %1098
    %v1102 = vmul.f32 %v1084, %v1097
    %v1103 = vmul.f32 %v1085, %v1099
    %1106 = vrot.lane.b32.xlu0 %v1102, 32
    %v1107 = vpop.permute.xlu0 %1106
    %1108 = vrot.lane.b32.xlu0 %v1103, 32
    %v1109 = vpop.permute.xlu0 %1108
    %v1112 = vadd.f32 %v1092, %v1107
    %v1113 = vadd.f32 %v1093, %v1109
    %v1114 = vtanh.pop %v1112
    %v1115 = vtanh.pop %v1113
    %1118 = vrot.lane.b32.xlu0 %v1114, 64
    %v1119 = vpop.permute.xlu0 %1118
    %1120 = vrot.lane.b32.xlu0 %v1115, 64
    %v1121 = vpop.permute.xlu0 %1120
    %v1124 = vmul.f32 %v1084, %v1119
    %v1125 = vmul.f32 %v1085, %v1121
    %v1128 = vrot.slane %v1124, 5
    %v1129 = vrot.slane %v1125, 4
    %v1130 = vsel %vm471, %v1129, %v1128
    %1131 = vrot.lane.b32.xlu0 %v1130, 32
    %v1132 = vpop.permute.xlu0 %1131
    %v1133 = vsel %vm103, %v1132, 0
    %1135 = vmatprep.subr.mxu0 0.0
    %1136 = vmatpush1.msra.mxu0 0.0
    %1137 = vmatprep.subr.mxu0 0.0
    %1138 = vmatpush1.msra.mxu0 0.0
    %1139 = vmatprep.subr.mxu0 0.0
    %1140 = vmatpush1.msra.mxu0 0.0
    %1141 = vmatprep.subr.mxu0 0.0
    %1142 = vmatpush1.msra.mxu0 0.0
    %1143 = vmatprep.subr.mxu0 0.0
    %1144 = vmatpush1.msra.mxu0 0.0
    %1145 = vmatprep.subr.mxu0 0.0
    %1146 = vmatpush1.msra.mxu0 0.0
    %1147 = vmatprep.subr.mxu0 0.0
    %1148 = vmatpush1.msra.mxu0 0.0
    %1149 = vmatprep.subr.mxu0 0.0
    %1150 = vmatpush1.msra.mxu0 0.0
    %1151 = vmatprep.subr.mxu0 0.0
    %1152 = vmatpush1.msra.mxu0 0.0
    %1153 = vmatprep.subr.mxu0 0.0
    %1154 = vmatpush1.msra.mxu0 0.0
    %1155 = vmatprep.subr.mxu0 0.0
    %1156 = vmatpush1.msra.mxu0 0.0
    %1157 = vmatprep.subr.mxu0 0.0
    %1158 = vmatpush1.msra.mxu0 0.0
    %1159 = vmatprep.subr.mxu0 0.0
    %1160 = vmatpush1.msra.mxu0 %v258
    %1161 = vmatprep.subr.mxu0 0.0
    %1162 = vmatpush1.msra.mxu0 %v257
    %1163 = vmatprep.subr.mxu0 0.0
    %1164 = vmatpush1.msra.mxu0 %v256
    %1165 = vmatprep.subr.mxu0 0.0
    %1166 = vmatpush1.msra.mxu0 %v255
    %1167 = vmatprep.subr.mxu0 0.0
    %1168 = vmatpush2.msra.mxu0 0.0
    %1169 = vmatprep.subr.mxu0 0.0
    %1170 = vmatpush2.msra.mxu0 0.0
    %1171 = vmatprep.subr.mxu0 0.0
    %1172 = vmatpush2.msra.mxu0 0.0
    %1173 = vmatprep.subr.mxu0 0.0
    %1174 = vmatpush2.msra.mxu0 0.0
    %1175 = vmatprep.subr.mxu0 0.0
    %1176 = vmatpush2.msra.mxu0 0.0
    %1177 = vmatprep.subr.mxu0 0.0
    %1178 = vmatpush2.msra.mxu0 0.0
    %1179 = vmatprep.subr.mxu0 0.0
    %1180 = vmatpush2.msra.mxu0 0.0
    %1181 = vmatprep.subr.mxu0 0.0
    %1182 = vmatpush2.msra.mxu0 0.0
    %1183 = vmatprep.subr.mxu0 0.0
    %1184 = vmatpush2.msra.mxu0 0.0
    %1185 = vmatprep.subr.mxu0 0.0
    %1186 = vmatpush2.msra.mxu0 0.0
    %1187 = vmatprep.subr.mxu0 0.0
    %1188 = vmatpush2.msra.mxu0 0.0
    %1189 = vmatprep.subr.mxu0 0.0
    %1190 = vmatpush2.msra.mxu0 0.0
    %1191 = vmatprep.subr.mxu0 0.0
    %1192 = vmatpush2.msra.mxu0 0.0
    %1193 = vmatprep.subr.mxu0 0.0
    %1194 = vmatpush2.msra.mxu0 0.0
    %1195 = vmatprep.subr.mxu0 0.0
    %1196 = vmatpush2.msra.mxu0 0.0
    %1197 = vmatprep.subr.mxu0 0.0
    %1198 = vmatpush2.msra.mxu0 0.0
    %1199 = vmatprep.mubr.f32.mxu0 0.0
    %1200 = vmatmul.mubr.f32.gmra.mxu0 %v1133
    %v1201 = vpop.f32.mrf.mxu0
    %v1202 = vadd.f32 0.0, %v1201
    %v1203 = vpop.f32.mrf.mxu0
    %1204 = vdwg.mxu0
    %v1206 = vrot.slane %v1202, 2
    %v1207 = vrot.slane %v1202, 3
    %v1210 = vadd.f32 %v347, %v1206
    %v1211 = vadd.f32 %v348, %v1207
    %v1212 = vtanh.pop %v1210
    %v1213 = vtanh.pop %v1211
    %v1214 = vmul.f32 %v1212, 0.5
    %v1215 = vmul.f32 %v1213, 0.5
    %v1216 = vadd.f32 %v1214, 0.5
    %v1217 = vadd.f32 %v1215, 0.5
    %v1220 = vrot.slane %v1112, 7
    %v1221 = vrot.slane %v1113, 7
    %v1224 = vmul.f32 %v1216, %v1220
    %v1225 = vmul.f32 %v1217, %v1221
    %1228 = vrot.lane.b32.xlu0 %v1212, 64
    %v1229 = vpop.permute.xlu0 %1228
    %1230 = vrot.lane.b32.xlu0 %v1213, 64
    %v1231 = vpop.permute.xlu0 %1230
    %v1234 = vmul.f32 %v1216, %v1229
    %v1235 = vmul.f32 %v1217, %v1231
    %1238 = vrot.lane.b32.xlu0 %v1234, 32
    %v1239 = vpop.permute.xlu0 %1238
    %1240 = vrot.lane.b32.xlu0 %v1235, 32
    %v1241 = vpop.permute.xlu0 %1240
    %v1244 = vadd.f32 %v1224, %v1239
    %v1245 = vadd.f32 %v1225, %v1241
    %v1246 = vtanh.pop %v1244
    %v1247 = vtanh.pop %v1245
    %1250 = vrot.lane.b32.xlu0 %v1246, 64
    %v1251 = vpop.permute.xlu0 %1250
    %1252 = vrot.lane.b32.xlu0 %v1247, 64
    %v1253 = vpop.permute.xlu0 %1252
    %v1256 = vmul.f32 %v1216, %v1251
    %v1257 = vmul.f32 %v1217, %v1253
    %v1260 = vrot.slane %v1256, 6
    %v1261 = vrot.slane %v1257, 5
    %v1262 = vsel %vm471, %v1261, %v1260
    %1263 = vrot.lane.b32.xlu0 %v1262, 32
    %v1264 = vpop.permute.xlu0 %1263
    %v1265 = vsel %vm103, %v1264, 0
    %1267 = vmatprep.subr.mxu0 0.0
    %1268 = vmatpush1.msra.mxu0 0.0
    %1269 = vmatprep.subr.mxu0 0.0
    %1270 = vmatpush1.msra.mxu0 0.0
    %1271 = vmatprep.subr.mxu0 0.0
    %1272 = vmatpush1.msra.mxu0 0.0
    %1273 = vmatprep.subr.mxu0 0.0
    %1274 = vmatpush1.msra.mxu0 0.0
    %1275 = vmatprep.subr.mxu0 0.0
    %1276 = vmatpush1.msra.mxu0 0.0
    %1277 = vmatprep.subr.mxu0 0.0
    %1278 = vmatpush1.msra.mxu0 0.0
    %1279 = vmatprep.subr.mxu0 0.0
    %1280 = vmatpush1.msra.mxu0 0.0
    %1281 = vmatprep.subr.mxu0 0.0
    %1282 = vmatpush1.msra.mxu0 0.0
    %1283 = vmatprep.subr.mxu0 0.0
    %1284 = vmatpush1.msra.mxu0 0.0
    %1285 = vmatprep.subr.mxu0 0.0
    %1286 = vmatpush1.msra.mxu0 0.0
    %1287 = vmatprep.subr.mxu0 0.0
    %1288 = vmatpush1.msra.mxu0 0.0
    %1289 = vmatprep.subr.mxu0 0.0
    %1290 = vmatpush1.msra.mxu0 0.0
    %1291 = vmatprep.subr.mxu0 0.0
    %1292 = vmatpush1.msra.mxu0 %v258
    %1293 = vmatprep.subr.mxu0 0.0
    %1294 = vmatpush1.msra.mxu0 %v257
    %1295 = vmatprep.subr.mxu0 0.0
    %1296 = vmatpush1.msra.mxu0 %v256
    %1297 = vmatprep.subr.mxu0 0.0
    %1298 = vmatpush1.msra.mxu0 %v255
    %1299 = vmatprep.subr.mxu0 0.0
    %1300 = vmatpush2.msra.mxu0 0.0
    %1301 = vmatprep.subr.mxu0 0.0
    %1302 = vmatpush2.msra.mxu0 0.0
    %1303 = vmatprep.subr.mxu0 0.0
    %1304 = vmatpush2.msra.mxu0 0.0
    %1305 = vmatprep.subr.mxu0 0.0
    %1306 = vmatpush2.msra.mxu0 0.0
    %1307 = vmatprep.subr.mxu0 0.0
    %1308 = vmatpush2.msra.mxu0 0.0
    %1309 = vmatprep.subr.mxu0 0.0
    %1310 = vmatpush2.msra.mxu0 0.0
    %1311 = vmatprep.subr.mxu0 0.0
    %1312 = vmatpush2.msra.mxu0 0.0
    %1313 = vmatprep.subr.mxu0 0.0
    %1314 = vmatpush2.msra.mxu0 0.0
    %1315 = vmatprep.subr.mxu0 0.0
    %1316 = vmatpush2.msra.mxu0 0.0
    %1317 = vmatprep.subr.mxu0 0.0
    %1318 = vmatpush2.msra.mxu0 0.0
    %1319 = vmatprep.subr.mxu0 0.0
    %1320 = vmatpush2.msra.mxu0 0.0
    %1321 = vmatprep.subr.mxu0 0.0
    %1322 = vmatpush2.msra.mxu0 0.0
    %1323 = vmatprep.subr.mxu0 0.0
    %1324 = vmatpush2.msra.mxu0 0.0
    %1325 = vmatprep.subr.mxu0 0.0
    %1326 = vmatpush2.msra.mxu0 0.0
    %1327 = vmatprep.subr.mxu0 0.0
    %1328 = vmatpush2.msra.mxu0 0.0
    %1329 = vmatprep.subr.mxu0 0.0
    %1330 = vmatpush2.msra.mxu0 0.0
    %1331 = vmatprep.mubr.f32.mxu0 0.0
    %1332 = vmatmul.mubr.f32.gmra.mxu0 %v1265
    %v1333 = vpop.f32.mrf.mxu0
    %v1334 = vadd.f32 0.0, %v1333
    %v1335 = vpop.f32.mrf.mxu0
    %1336 = vdwg.mxu0
    %v1338 = vrot.slane %v1334, 1
    %v1339 = vrot.slane %v1334, 2
    %v1342 = vadd.f32 %v347, %v1338
    %v1343 = vadd.f32 %v348, %v1339
    %v1344 = vtanh.pop %v1342
    %v1345 = vtanh.pop %v1343
    %v1346 = vmul.f32 %v1344, 0.5
    %v1347 = vmul.f32 %v1345, 0.5
    %v1348 = vadd.f32 %v1346, 0.5
    %v1349 = vadd.f32 %v1347, 0.5
    %v1352 = vrot.slane %v1244, 7
    %v1353 = vrot.slane %v1245, 7
    %v1356 = vmul.f32 %v1348, %v1352
    %v1357 = vmul.f32 %v1349, %v1353
    %1360 = vrot.lane.b32.xlu0 %v1344, 64
    %v1361 = vpop.permute.xlu0 %1360
    %1362 = vrot.lane.b32.xlu0 %v1345, 64
    %v1363 = vpop.permute.xlu0 %1362
    %v1366 = vmul.f32 %v1348, %v1361
    %v1367 = vmul.f32 %v1349, %v1363
    %1370 = vrot.lane.b32.xlu0 %v1366, 32
    %v1371 = vpop.permute.xlu0 %1370
    %1372 = vrot.lane.b32.xlu0 %v1367, 32
    %v1373 = vpop.permute.xlu0 %1372
    %v1376 = vadd.f32 %v1356, %v1371
    %v1377 = vadd.f32 %v1357, %v1373
    %v1378 = vtanh.pop %v1376
    %v1379 = vtanh.pop %v1377
    %1382 = vrot.lane.b32.xlu0 %v1378, 64
    %v1383 = vpop.permute.xlu0 %1382
    %1384 = vrot.lane.b32.xlu0 %v1379, 64
    %v1385 = vpop.permute.xlu0 %1384
    %v1388 = vmul.f32 %v1348, %v1383
    %v1389 = vmul.f32 %v1349, %v1385
    %vm1390 = vcmask 1040384
    %v1391 = vsel %vm1390, %v466, %v597
    %v1392 = vsel %vm1390, %v467, %v598
    %vm1393 = vcmask 1041408
    %v1394 = vsel %vm1393, %v1391, %v728
    %v1395 = vsel %vm1393, %v1392, %v729
    %vm1396 = vcmask 1042432
    %v1397 = vsel %vm1396, %v1394, %v860
    %v1398 = vsel %vm1396, %v1395, %v861
    %vm1399 = vcmask 1043456
    %v1400 = vsel %vm1399, %v1397, %v992
    %v1401 = vsel %vm1399, %v1398, %v993
    %vm1402 = vcmask 1044480
    %v1403 = vsel %vm1402, %v1400, %v1124
    %v1404 = vsel %vm1402, %v1401, %v1125
    %vm1405 = vcmask 1045504
    %v1406 = vsel %vm1405, %v1403, %v1256
    %v1407 = vsel %vm1405, %v1404, %v1257
    %vm1408 = vcmask 1046528
    %v1409 = vsel %vm1408, %v1406, %v1388
    %v1410 = vsel %vm1408, %v1407, %v1389
    %s1411 = scalar_lea.vmem [#allocation7], 32
    %v1412 = vld [vmem:[%s1411] sm:$0xff]
    %v1413 = vld [vmem:[%s1411 + $0x8] sm:$0xff]
    %v1414 = vld [vmem:[%s1411 + $0x10] sm:$0xff]
    %v1415 = vld [vmem:[%s1411 + $0x18] sm:$0xff]
    %s1416 = scalar_lea.vmem [#allocation8], 32
    %v1417 = vld [vmem:[%s1416] sm:$0xff]
    %v1418 = vld [vmem:[%s1416 + $0x8] sm:$0xff]
    %v1419 = vld [vmem:[%s1416 + $0x10] sm:$0xff]
    %v1420 = vld [vmem:[%s1416 + $0x18] sm:$0xff]
    %v1421 = vmul.f32 %v1417, %v246
    %v1422 = vmul.f32 %v1418, %v246
    %v1423 = vmul.f32 %v1419, %v246
    %v1424 = vmul.f32 %v1420, %v246
    %s1425 = scalar_lea.vmem %s5, 1
    %v1426 = vld [vmem:[%s1425] sm:$0x1]
    %v1428 = vlaneseq
    %v1429 = vshrl.u32 %v1428, 7
    %v1430 = vsub.s32 0, %v1429
    %v1431 = vrot.slane %v1426, %v1430
    %1435 = vrot.lane.b32.xlu0 %v1409, 32
    %v1436 = vpop.permute.xlu0 %1435
    %1437 = vrot.lane.b32.xlu0 %v1410, 32
    %v1438 = vpop.permute.xlu0 %1437
    %v1439 = vsel %vm103, %v1436, 0
    %v1441 = vsel %vm103, %v1438, 0
    %1443 = vmatprep.subr.mxu0 0.0
    %1444 = vmatpush1.msra.mxu0 0.0
    %1445 = vmatprep.subr.mxu0 0.0
    %1446 = vmatpush1.msra.mxu0 0.0
    %1447 = vmatprep.subr.mxu0 0.0
    %1448 = vmatpush1.msra.mxu0 0.0
    %1449 = vmatprep.subr.mxu0 0.0
    %1450 = vmatpush1.msra.mxu0 0.0
    %1451 = vmatprep.subr.mxu0 0.0
    %1452 = vmatpush1.msra.mxu0 0.0
    %1453 = vmatprep.subr.mxu0 0.0
    %1454 = vmatpush1.msra.mxu0 0.0
    %1455 = vmatprep.subr.mxu0 0.0
    %1456 = vmatpush1.msra.mxu0 0.0
    %1457 = vmatprep.subr.mxu0 0.0
    %1458 = vmatpush1.msra.mxu0 0.0
    %1459 = vmatprep.subr.mxu0 0.0
    %1460 = vmatpush1.msra.mxu0 0.0
    %1461 = vmatprep.subr.mxu0 0.0
    %1462 = vmatpush1.msra.mxu0 0.0
    %1463 = vmatprep.subr.mxu0 0.0
    %1464 = vmatpush1.msra.mxu0 0.0
    %1465 = vmatprep.subr.mxu0 0.0
    %1466 = vmatpush1.msra.mxu0 0.0
    %1467 = vmatprep.subr.mxu0 0.0
    %1468 = vmatpush1.msra.mxu0 %v1415
    %1469 = vmatprep.subr.mxu0 0.0
    %1470 = vmatpush1.msra.mxu0 %v1414
    %1471 = vmatprep.subr.mxu0 0.0
    %1472 = vmatpush1.msra.mxu0 %v1413
    %1473 = vmatprep.subr.mxu0 0.0
    %1474 = vmatpush1.msra.mxu0 %v1412
    %1475 = vmatprep.subr.mxu0 0.0
    %1476 = vmatpush2.msra.mxu0 0.0
    %1477 = vmatprep.subr.mxu0 0.0
    %1478 = vmatpush2.msra.mxu0 0.0
    %1479 = vmatprep.subr.mxu0 0.0
    %1480 = vmatpush2.msra.mxu0 0.0
    %1481 = vmatprep.subr.mxu0 0.0
    %1482 = vmatpush2.msra.mxu0 0.0
    %1483 = vmatprep.subr.mxu0 0.0
    %1484 = vmatpush2.msra.mxu0 0.0
    %1485 = vmatprep.subr.mxu0 0.0
    %1486 = vmatpush2.msra.mxu0 0.0
    %1487 = vmatprep.subr.mxu0 0.0
    %1488 = vmatpush2.msra.mxu0 0.0
    %1489 = vmatprep.subr.mxu0 0.0
    %1490 = vmatpush2.msra.mxu0 0.0
    %1491 = vmatprep.subr.mxu0 0.0
    %1492 = vmatpush2.msra.mxu0 0.0
    %1493 = vmatprep.subr.mxu0 0.0
    %1494 = vmatpush2.msra.mxu0 0.0
    %1495 = vmatprep.subr.mxu0 0.0
    %1496 = vmatpush2.msra.mxu0 0.0
    %1497 = vmatprep.subr.mxu0 0.0
    %1498 = vmatpush2.msra.mxu0 0.0
    %1499 = vmatprep.subr.mxu0 0.0
    %1500 = vmatpush2.msra.mxu0 0.0
    %1501 = vmatprep.subr.mxu0 0.0
    %1502 = vmatpush2.msra.mxu0 0.0
    %1503 = vmatprep.subr.mxu0 0.0
    %1504 = vmatpush2.msra.mxu0 0.0
    %1505 = vmatprep.subr.mxu0 0.0
    %1506 = vmatpush2.msra.mxu0 0.0
    %1507 = vmatprep.mubr.f32.mxu0 0.0
    %1508 = vmatmul.mubr.f32.gmra.mxu0 %v1439
    %v1509 = vpop.f32.mrf.mxu0
    %v1510 = vadd.f32 %v1431, %v1509
    %v1511 = vpop.f32.mrf.mxu0
    %1512 = vmatprep.mubr.f32.mxu0 0.0
    %1513 = vmatmul.mubr.f32.gmra.mxu0 %v1441
    %v1514 = vpop.f32.mrf.mxu0
    %v1515 = vadd.f32 %v1431, %v1514
    %v1516 = vpop.f32.mrf.mxu0
    %1517 = vdwg.mxu0
    %v1518 = vmul.f32 %v1510, %v246
    %v1519 = vmul.f32 %v1515, %v246
    %1520 = vmatprep.subr.mxu0 0.0
    %1521 = vmatpush1.msra.mxu0 0.0
    %1522 = vmatprep.subr.mxu0 0.0
    %1523 = vmatpush1.msra.mxu0 0.0
    %1524 = vmatprep.subr.mxu0 0.0
    %1525 = vmatpush1.msra.mxu0 0.0
    %1526 = vmatprep.subr.mxu0 0.0
    %1527 = vmatpush1.msra.mxu0 0.0
    %1528 = vmatprep.subr.mxu0 0.0
    %1529 = vmatpush1.msra.mxu0 0.0
    %1530 = vmatprep.subr.mxu0 0.0
    %1531 = vmatpush1.msra.mxu0 0.0
    %1532 = vmatprep.subr.mxu0 0.0
    %1533 = vmatpush1.msra.mxu0 0.0
    %1534 = vmatprep.subr.mxu0 0.0
    %1535 = vmatpush1.msra.mxu0 0.0
    %1536 = vmatprep.subr.mxu0 0.0
    %1537 = vmatpush1.msra.mxu0 0.0
    %1538 = vmatprep.subr.mxu0 0.0
    %1539 = vmatpush1.msra.mxu0 0.0
    %1540 = vmatprep.subr.mxu0 0.0
    %1541 = vmatpush1.msra.mxu0 0.0
    %1542 = vmatprep.subr.mxu0 0.0
    %1543 = vmatpush1.msra.mxu0 0.0
    %1544 = vmatprep.subr.mxu0 0.0
    %1545 = vmatpush1.msra.mxu0 %v1424
    %1546 = vmatprep.subr.mxu0 0.0
    %1547 = vmatpush1.msra.mxu0 %v1423
    %1548 = vmatprep.subr.mxu0 0.0
    %1549 = vmatpush1.msra.mxu0 %v1422
    %1550 = vmatprep.subr.mxu0 0.0
    %1551 = vmatpush1.msra.mxu0 %v1421
    %1552 = vmatprep.subr.mxu0 0.0
    %1553 = vmatpush2.msra.mxu0 0.0
    %1554 = vmatprep.subr.mxu0 0.0
    %1555 = vmatpush2.msra.mxu0 0.0
    %1556 = vmatprep.subr.mxu0 0.0
    %1557 = vmatpush2.msra.mxu0 0.0
    %1558 = vmatprep.subr.mxu0 0.0
    %1559 = vmatpush2.msra.mxu0 0.0
    %1560 = vmatprep.subr.mxu0 0.0
    %1561 = vmatpush2.msra.mxu0 0.0
    %1562 = vmatprep.subr.mxu0 0.0
    %1563 = vmatpush2.msra.mxu0 0.0
    %1564 = vmatprep.subr.mxu0 0.0
    %1565 = vmatpush2.msra.mxu0 0.0
    %1566 = vmatprep.subr.mxu0 0.0
    %1567 = vmatpush2.msra.mxu0 0.0
    %1568 = vmatprep.subr.mxu0 0.0
    %1569 = vmatpush2.msra.mxu0 0.0
    %1570 = vmatprep.subr.mxu0 0.0
    %1571 = vmatpush2.msra.mxu0 0.0
    %1572 = vmatprep.subr.mxu0 0.0
    %1573 = vmatpush2.msra.mxu0 0.0
    %1574 = vmatprep.subr.mxu0 0.0
    %1575 = vmatpush2.msra.mxu0 0.0
    %1576 = vmatprep.subr.mxu0 0.0
    %1577 = vmatpush2.msra.mxu0 0.0
    %1578 = vmatprep.subr.mxu0 0.0
    %1579 = vmatpush2.msra.mxu0 0.0
    %1580 = vmatprep.subr.mxu0 0.0
    %1581 = vmatpush2.msra.mxu0 0.0
    %1582 = vmatprep.subr.mxu0 0.0
    %1583 = vmatpush2.msra.mxu0 0.0
    %1584 = vmatprep.mubr.f32.mxu0 0.0
    %1585 = vmatmul.mubr.f32.gmra.mxu0 %v350
    %v1586 = vpop.f32.mrf.mxu0
    %v1587 = vadd.f32 0.0, %v1586
    %v1588 = vpop.f32.mrf.mxu0
    %1589 = vdwg.mxu0
    %v1591 = vrot.slane %v1587, 1
    %v1594 = vadd.f32 %v1518, %v1587
    %v1595 = vadd.f32 %v1519, %v1591
    %v1596 = vtanh.pop %v1594
    %v1597 = vtanh.pop %v1595
    %v1598 = vmul.f32 %v1596, 0.5
    %v1599 = vmul.f32 %v1597, 0.5
    %v1600 = vadd.f32 %v1598, 0.5
    %v1601 = vadd.f32 %v1599, 0.5
    %v1602 = vmul.f32 %v1600, 0.0
    %v1603 = vmul.f32 %v1601, 0.0
    %1606 = vrot.lane.b32.xlu0 %v1596, 64
    %v1607 = vpop.permute.xlu0 %1606
    %1608 = vrot.lane.b32.xlu0 %v1597, 64
    %v1609 = vpop.permute.xlu0 %1608
    %v1612 = vmul.f32 %v1600, %v1607
    %v1613 = vmul.f32 %v1601, %v1609
    %1616 = vrot.lane.b32.xlu0 %v1612, 32
    %v1617 = vpop.permute.xlu0 %1616
    %1618 = vrot.lane.b32.xlu0 %v1613, 32
    %v1619 = vpop.permute.xlu0 %1618
    %v1622 = vadd.f32 %v1602, %v1617
    %v1623 = vadd.f32 %v1603, %v1619
    %v1624 = vtanh.pop %v1622
    %v1625 = vtanh.pop %v1623
    %1628 = vrot.lane.b32.xlu0 %v1624, 64
    %v1629 = vpop.permute.xlu0 %1628
    %1630 = vrot.lane.b32.xlu0 %v1625, 64
    %v1631 = vpop.permute.xlu0 %1630
    %v1634 = vmul.f32 %v1600, %v1629
    %v1635 = vmul.f32 %v1601, %v1631
    %v1638 = vrot.slane %v1635, 7
    %v1639 = vsel %vm471, %v1638, %v1634
    %1640 = vrot.lane.b32.xlu0 %v1639, 32
    %v1641 = vpop.permute.xlu0 %1640
    %v1642 = vsel %vm103, %v1641, 0
    %1644 = vmatprep.subr.mxu0 0.0
    %1645 = vmatpush1.msra.mxu0 0.0
    %1646 = vmatprep.subr.mxu0 0.0
    %1647 = vmatpush1.msra.mxu0 0.0
    %1648 = vmatprep.subr.mxu0 0.0
    %1649 = vmatpush1.msra.mxu0 0.0
    %1650 = vmatprep.subr.mxu0 0.0
    %1651 = vmatpush1.msra.mxu0 0.0
    %1652 = vmatprep.subr.mxu0 0.0
    %1653 = vmatpush1.msra.mxu0 0.0
    %1654 = vmatprep.subr.mxu0 0.0
    %1655 = vmatpush1.msra.mxu0 0.0
    %1656 = vmatprep.subr.mxu0 0.0
    %1657 = vmatpush1.msra.mxu0 0.0
    %1658 = vmatprep.subr.mxu0 0.0
    %1659 = vmatpush1.msra.mxu0 0.0
    %1660 = vmatprep.subr.mxu0 0.0
    %1661 = vmatpush1.msra.mxu0 0.0
    %1662 = vmatprep.subr.mxu0 0.0
    %1663 = vmatpush1.msra.mxu0 0.0
    %1664 = vmatprep.subr.mxu0 0.0
    %1665 = vmatpush1.msra.mxu0 0.0
    %1666 = vmatprep.subr.mxu0 0.0
    %1667 = vmatpush1.msra.mxu0 0.0
    %1668 = vmatprep.subr.mxu0 0.0
    %1669 = vmatpush1.msra.mxu0 %v1424
    %1670 = vmatprep.subr.mxu0 0.0
    %1671 = vmatpush1.msra.mxu0 %v1423
    %1672 = vmatprep.subr.mxu0 0.0
    %1673 = vmatpush1.msra.mxu0 %v1422
    %1674 = vmatprep.subr.mxu0 0.0
    %1675 = vmatpush1.msra.mxu0 %v1421
    %1676 = vmatprep.subr.mxu0 0.0
    %1677 = vmatpush2.msra.mxu0 0.0
    %1678 = vmatprep.subr.mxu0 0.0
    %1679 = vmatpush2.msra.mxu0 0.0
    %1680 = vmatprep.subr.mxu0 0.0
    %1681 = vmatpush2.msra.mxu0 0.0
    %1682 = vmatprep.subr.mxu0 0.0
    %1683 = vmatpush2.msra.mxu0 0.0
    %1684 = vmatprep.subr.mxu0 0.0
    %1685 = vmatpush2.msra.mxu0 0.0
    %1686 = vmatprep.subr.mxu0 0.0
    %1687 = vmatpush2.msra.mxu0 0.0
    %1688 = vmatprep.subr.mxu0 0.0
    %1689 = vmatpush2.msra.mxu0 0.0
    %1690 = vmatprep.subr.mxu0 0.0
    %1691 = vmatpush2.msra.mxu0 0.0
    %1692 = vmatprep.subr.mxu0 0.0
    %1693 = vmatpush2.msra.mxu0 0.0
    %1694 = vmatprep.subr.mxu0 0.0
    %1695 = vmatpush2.msra.mxu0 0.0
    %1696 = vmatprep.subr.mxu0 0.0
    %1697 = vmatpush2.msra.mxu0 0.0
    %1698 = vmatprep.subr.mxu0 0.0
    %1699 = vmatpush2.msra.mxu0 0.0
    %1700 = vmatprep.subr.mxu0 0.0
    %1701 = vmatpush2.msra.mxu0 0.0
    %1702 = vmatprep.subr.mxu0 0.0
    %1703 = vmatpush2.msra.mxu0 0.0
    %1704 = vmatprep.subr.mxu0 0.0
    %1705 = vmatpush2.msra.mxu0 0.0
    %1706 = vmatprep.subr.mxu0 0.0
    %1707 = vmatpush2.msra.mxu0 0.0
    %1708 = vmatprep.mubr.f32.mxu0 0.0
    %1709 = vmatmul.mubr.f32.gmra.mxu0 %v1642
    %v1710 = vpop.f32.mrf.mxu0
    %v1711 = vadd.f32 0.0, %v1710
    %v1712 = vpop.f32.mrf.mxu0
    %1713 = vdwg.mxu0
    %v1715 = vrot.slane %v1711, 7
    %v1718 = vadd.f32 %v1518, %v1715
    %v1719 = vadd.f32 %v1519, %v1711
    %v1720 = vtanh.pop %v1718
    %v1721 = vtanh.pop %v1719
    %v1722 = vmul.f32 %v1720, 0.5
    %v1723 = vmul.f32 %v1721, 0.5
    %v1724 = vadd.f32 %v1722, 0.5
    %v1725 = vadd.f32 %v1723, 0.5
    %v1728 = vrot.slane %v1622, 7
    %v1729 = vrot.slane %v1623, 7
    %v1732 = vmul.f32 %v1724, %v1728
    %v1733 = vmul.f32 %v1725, %v1729
    %1736 = vrot.lane.b32.xlu0 %v1720, 64
    %v1737 = vpop.permute.xlu0 %1736
    %1738 = vrot.lane.b32.xlu0 %v1721, 64
    %v1739 = vpop.permute.xlu0 %1738
    %v1742 = vmul.f32 %v1724, %v1737
    %v1743 = vmul.f32 %v1725, %v1739
    %1746 = vrot.lane.b32.xlu0 %v1742, 32
    %v1747 = vpop.permute.xlu0 %1746
    %1748 = vrot.lane.b32.xlu0 %v1743, 32
    %v1749 = vpop.permute.xlu0 %1748
    %v1752 = vadd.f32 %v1732, %v1747
    %v1753 = vadd.f32 %v1733, %v1749
    %v1754 = vtanh.pop %v1752
    %v1755 = vtanh.pop %v1753
    %1758 = vrot.lane.b32.xlu0 %v1754, 64
    %v1759 = vpop.permute.xlu0 %1758
    %1760 = vrot.lane.b32.xlu0 %v1755, 64
    %v1761 = vpop.permute.xlu0 %1760
    %v1764 = vmul.f32 %v1724, %v1759
    %v1765 = vmul.f32 %v1725, %v1761
    %v1768 = vrot.slane %v1764, 1
    %v1769 = vsel %vm471, %v1765, %v1768
    %1770 = vrot.lane.b32.xlu0 %v1769, 32
    %v1771 = vpop.permute.xlu0 %1770
    %v1772 = vsel %vm103, %v1771, 0
    %1774 = vmatprep.subr.mxu0 0.0
    %1775 = vmatpush1.msra.mxu0 0.0
    %1776 = vmatprep.subr.mxu0 0.0
    %1777 = vmatpush1.msra.mxu0 0.0
    %1778 = vmatprep.subr.mxu0 0.0
    %1779 = vmatpush1.msra.mxu0 0.0
    %1780 = vmatprep.subr.mxu0 0.0
    %1781 = vmatpush1.msra.mxu0 0.0
    %1782 = vmatprep.subr.mxu0 0.0
    %1783 = vmatpush1.msra.mxu0 0.0
    %1784 = vmatprep.subr.mxu0 0.0
    %1785 = vmatpush1.msra.mxu0 0.0
    %1786 = vmatprep.subr.mxu0 0.0
    %1787 = vmatpush1.msra.mxu0 0.0
    %1788 = vmatprep.subr.mxu0 0.0
    %1789 = vmatpush1.msra.mxu0 0.0
    %1790 = vmatprep.subr.mxu0 0.0
    %1791 = vmatpush1.msra.mxu0 0.0
    %1792 = vmatprep.subr.mxu0 0.0
    %1793 = vmatpush1.msra.mxu0 0.0
    %1794 = vmatprep.subr.mxu0 0.0
    %1795 = vmatpush1.msra.mxu0 0.0
    %1796 = vmatprep.subr.mxu0 0.0
    %1797 = vmatpush1.msra.mxu0 0.0
    %1798 = vmatprep.subr.mxu0 0.0
    %1799 = vmatpush1.msra.mxu0 %v1424
    %1800 = vmatprep.subr.mxu0 0.0
    %1801 = vmatpush1.msra.mxu0 %v1423
    %1802 = vmatprep.subr.mxu0 0.0
    %1803 = vmatpush1.msra.mxu0 %v1422
    %1804 = vmatprep.subr.mxu0 0.0
    %1805 = vmatpush1.msra.mxu0 %v1421
    %1806 = vmatprep.subr.mxu0 0.0
    %1807 = vmatpush2.msra.mxu0 0.0
    %1808 = vmatprep.subr.mxu0 0.0
    %1809 = vmatpush2.msra.mxu0 0.0
    %1810 = vmatprep.subr.mxu0 0.0
    %1811 = vmatpush2.msra.mxu0 0.0
    %1812 = vmatprep.subr.mxu0 0.0
    %1813 = vmatpush2.msra.mxu0 0.0
    %1814 = vmatprep.subr.mxu0 0.0
    %1815 = vmatpush2.msra.mxu0 0.0
    %1816 = vmatprep.subr.mxu0 0.0
    %1817 = vmatpush2.msra.mxu0 0.0
    %1818 = vmatprep.subr.mxu0 0.0
    %1819 = vmatpush2.msra.mxu0 0.0
    %1820 = vmatprep.subr.mxu0 0.0
    %1821 = vmatpush2.msra.mxu0 0.0
    %1822 = vmatprep.subr.mxu0 0.0
    %1823 = vmatpush2.msra.mxu0 0.0
    %1824 = vmatprep.subr.mxu0 0.0
    %1825 = vmatpush2.msra.mxu0 0.0
    %1826 = vmatprep.subr.mxu0 0.0
    %1827 = vmatpush2.msra.mxu0 0.0
    %1828 = vmatprep.subr.mxu0 0.0
    %1829 = vmatpush2.msra.mxu0 0.0
    %1830 = vmatprep.subr.mxu0 0.0
    %1831 = vmatpush2.msra.mxu0 0.0
    %1832 = vmatprep.subr.mxu0 0.0
    %1833 = vmatpush2.msra.mxu0 0.0
    %1834 = vmatprep.subr.mxu0 0.0
    %1835 = vmatpush2.msra.mxu0 0.0
    %1836 = vmatprep.subr.mxu0 0.0
    %1837 = vmatpush2.msra.mxu0 0.0
    %1838 = vmatprep.mubr.f32.mxu0 0.0
    %1839 = vmatmul.mubr.f32.gmra.mxu0 %v1772
    %v1840 = vpop.f32.mrf.mxu0
    %v1841 = vadd.f32 0.0, %v1840
    %v1842 = vpop.f32.mrf.mxu0
    %1843 = vdwg.mxu0
    %v1845 = vrot.slane %v1841, 6
    %v1846 = vrot.slane %v1841, 7
    %v1849 = vadd.f32 %v1518, %v1845
    %v1850 = vadd.f32 %v1519, %v1846
    %v1851 = vtanh.pop %v1849
    %v1852 = vtanh.pop %v1850
    %v1853 = vmul.f32 %v1851, 0.5
    %v1854 = vmul.f32 %v1852, 0.5
    %v1855 = vadd.f32 %v1853, 0.5
    %v1856 = vadd.f32 %v1854, 0.5
    %v1859 = vrot.slane %v1752, 7
    %v1860 = vrot.slane %v1753, 7
    %v1863 = vmul.f32 %v1855, %v1859
    %v1864 = vmul.f32 %v1856, %v1860
    %1867 = vrot.lane.b32.xlu0 %v1851, 64
    %v1868 = vpop.permute.xlu0 %1867
    %1869 = vrot.lane.b32.xlu0 %v1852, 64
    %v1870 = vpop.permute.xlu0 %1869
    %v1873 = vmul.f32 %v1855, %v1868
    %v1874 = vmul.f32 %v1856, %v1870
    %1877 = vrot.lane.b32.xlu0 %v1873, 32
    %v1878 = vpop.permute.xlu0 %1877
    %1879 = vrot.lane.b32.xlu0 %v1874, 32
    %v1880 = vpop.permute.xlu0 %1879
    %v1883 = vadd.f32 %v1863, %v1878
    %v1884 = vadd.f32 %v1864, %v1880
    %v1885 = vtanh.pop %v1883
    %v1886 = vtanh.pop %v1884
    %1889 = vrot.lane.b32.xlu0 %v1885, 64
    %v1890 = vpop.permute.xlu0 %1889
    %1891 = vrot.lane.b32.xlu0 %v1886, 64
    %v1892 = vpop.permute.xlu0 %1891
    %v1895 = vmul.f32 %v1855, %v1890
    %v1896 = vmul.f32 %v1856, %v1892
    %v1899 = vrot.slane %v1895, 2
    %v1900 = vrot.slane %v1896, 1
    %v1901 = vsel %vm471, %v1900, %v1899
    %1902 = vrot.lane.b32.xlu0 %v1901, 32
    %v1903 = vpop.permute.xlu0 %1902
    %v1904 = vsel %vm103, %v1903, 0
    %1906 = vmatprep.subr.mxu0 0.0
    %1907 = vmatpush1.msra.mxu0 0.0
    %1908 = vmatprep.subr.mxu0 0.0
    %1909 = vmatpush1.msra.mxu0 0.0
    %1910 = vmatprep.subr.mxu0 0.0
    %1911 = vmatpush1.msra.mxu0 0.0
    %1912 = vmatprep.subr.mxu0 0.0
    %1913 = vmatpush1.msra.mxu0 0.0
    %1914 = vmatprep.subr.mxu0 0.0
    %1915 = vmatpush1.msra.mxu0 0.0
    %1916 = vmatprep.subr.mxu0 0.0
    %1917 = vmatpush1.msra.mxu0 0.0
    %1918 = vmatprep.subr.mxu0 0.0
    %1919 = vmatpush1.msra.mxu0 0.0
    %1920 = vmatprep.subr.mxu0 0.0
    %1921 = vmatpush1.msra.mxu0 0.0
    %1922 = vmatprep.subr.mxu0 0.0
    %1923 = vmatpush1.msra.mxu0 0.0
    %1924 = vmatprep.subr.mxu0 0.0
    %1925 = vmatpush1.msra.mxu0 0.0
    %1926 = vmatprep.subr.mxu0 0.0
    %1927 = vmatpush1.msra.mxu0 0.0
    %1928 = vmatprep.subr.mxu0 0.0
    %1929 = vmatpush1.msra.mxu0 0.0
    %1930 = vmatprep.subr.mxu0 0.0
    %1931 = vmatpush1.msra.mxu0 %v1424
    %1932 = vmatprep.subr.mxu0 0.0
    %1933 = vmatpush1.msra.mxu0 %v1423
    %1934 = vmatprep.subr.mxu0 0.0
    %1935 = vmatpush1.msra.mxu0 %v1422
    %1936 = vmatprep.subr.mxu0 0.0
    %1937 = vmatpush1.msra.mxu0 %v1421
    %1938 = vmatprep.subr.mxu0 0.0
    %1939 = vmatpush2.msra.mxu0 0.0
    %1940 = vmatprep.subr.mxu0 0.0
    %1941 = vmatpush2.msra.mxu0 0.0
    %1942 = vmatprep.subr.mxu0 0.0
    %1943 = vmatpush2.msra.mxu0 0.0
    %1944 = vmatprep.subr.mxu0 0.0
    %1945 = vmatpush2.msra.mxu0 0.0
    %1946 = vmatprep.subr.mxu0 0.0
    %1947 = vmatpush2.msra.mxu0 0.0
    %1948 = vmatprep.subr.mxu0 0.0
    %1949 = vmatpush2.msra.mxu0 0.0
    %1950 = vmatprep.subr.mxu0 0.0
    %1951 = vmatpush2.msra.mxu0 0.0
    %1952 = vmatprep.subr.mxu0 0.0
    %1953 = vmatpush2.msra.mxu0 0.0
    %1954 = vmatprep.subr.mxu0 0.0
    %1955 = vmatpush2.msra.mxu0 0.0
    %1956 = vmatprep.subr.mxu0 0.0
    %1957 = vmatpush2.msra.mxu0 0.0
    %1958 = vmatprep.subr.mxu0 0.0
    %1959 = vmatpush2.msra.mxu0 0.0
    %1960 = vmatprep.subr.mxu0 0.0
    %1961 = vmatpush2.msra.mxu0 0.0
    %1962 = vmatprep.subr.mxu0 0.0
    %1963 = vmatpush2.msra.mxu0 0.0
    %1964 = vmatprep.subr.mxu0 0.0
    %1965 = vmatpush2.msra.mxu0 0.0
    %1966 = vmatprep.subr.mxu0 0.0
    %1967 = vmatpush2.msra.mxu0 0.0
    %1968 = vmatprep.subr.mxu0 0.0
    %1969 = vmatpush2.msra.mxu0 0.0
    %1970 = vmatprep.mubr.f32.mxu0 0.0
    %1971 = vmatmul.mubr.f32.gmra.mxu0 %v1904
    %v1972 = vpop.f32.mrf.mxu0
    %v1973 = vadd.f32 0.0, %v1972
    %v1974 = vpop.f32.mrf.mxu0
    %1975 = vdwg.mxu0
    %v1977 = vrot.slane %v1973, 5
    %v1978 = vrot.slane %v1973, 6
    %v1981 = vadd.f32 %v1518, %v1977
    %v1982 = vadd.f32 %v1519, %v1978
    %v1983 = vtanh.pop %v1981
    %v1984 = vtanh.pop %v1982
    %v1985 = vmul.f32 %v1983, 0.5
    %v1986 = vmul.f32 %v1984, 0.5
    %v1987 = vadd.f32 %v1985, 0.5
    %v1988 = vadd.f32 %v1986, 0.5
    %v1991 = vrot.slane %v1883, 7
    %v1992 = vrot.slane %v1884, 7
    %v1995 = vmul.f32 %v1987, %v1991
    %v1996 = vmul.f32 %v1988, %v1992
    %1999 = vrot.lane.b32.xlu0 %v1983, 64
    %v2000 = vpop.permute.xlu0 %1999
    %2001 = vrot.lane.b32.xlu0 %v1984, 64
    %v2002 = vpop.permute.xlu0 %2001
    %v2005 = vmul.f32 %v1987, %v2000
    %v2006 = vmul.f32 %v1988, %v2002
    %2009 = vrot.lane.b32.xlu0 %v2005, 32
    %v2010 = vpop.permute.xlu0 %2009
    %2011 = vrot.lane.b32.xlu0 %v2006, 32
    %v2012 = vpop.permute.xlu0 %2011
    %v2015 = vadd.f32 %v1995, %v2010
    %v2016 = vadd.f32 %v1996, %v2012
    %v2017 = vtanh.pop %v2015
    %v2018 = vtanh.pop %v2016
    %2021 = vrot.lane.b32.xlu0 %v2017, 64
    %v2022 = vpop.permute.xlu0 %2021
    %2023 = vrot.lane.b32.xlu0 %v2018, 64
    %v2024 = vpop.permute.xlu0 %2023
    %v2027 = vmul.f32 %v1987, %v2022
    %v2028 = vmul.f32 %v1988, %v2024
    %v2031 = vrot.slane %v2027, 3
    %v2032 = vrot.slane %v2028, 2
    %v2033 = vsel %vm471, %v2032, %v2031
    %2034 = vrot.lane.b32.xlu0 %v2033, 32
    %v2035 = vpop.permute.xlu0 %2034
    %v2036 = vsel %vm103, %v2035, 0
    %2038 = vmatprep.subr.mxu0 0.0
    %2039 = vmatpush1.msra.mxu0 0.0
    %2040 = vmatprep.subr.mxu0 0.0
    %2041 = vmatpush1.msra.mxu0 0.0
    %2042 = vmatprep.subr.mxu0 0.0
    %2043 = vmatpush1.msra.mxu0 0.0
    %2044 = vmatprep.subr.mxu0 0.0
    %2045 = vmatpush1.msra.mxu0 0.0
    %2046 = vmatprep.subr.mxu0 0.0
    %2047 = vmatpush1.msra.mxu0 0.0
    %2048 = vmatprep.subr.mxu0 0.0
    %2049 = vmatpush1.msra.mxu0 0.0
    %2050 = vmatprep.subr.mxu0 0.0
    %2051 = vmatpush1.msra.mxu0 0.0
    %2052 = vmatprep.subr.mxu0 0.0
    %2053 = vmatpush1.msra.mxu0 0.0
    %2054 = vmatprep.subr.mxu0 0.0
    %2055 = vmatpush1.msra.mxu0 0.0
    %2056 = vmatprep.subr.mxu0 0.0
    %2057 = vmatpush1.msra.mxu0 0.0
    %2058 = vmatprep.subr.mxu0 0.0
    %2059 = vmatpush1.msra.mxu0 0.0
    %2060 = vmatprep.subr.mxu0 0.0
    %2061 = vmatpush1.msra.mxu0 0.0
    %2062 = vmatprep.subr.mxu0 0.0
    %2063 = vmatpush1.msra.mxu0 %v1424
    %2064 = vmatprep.subr.mxu0 0.0
    %2065 = vmatpush1.msra.mxu0 %v1423
    %2066 = vmatprep.subr.mxu0 0.0
    %2067 = vmatpush1.msra.mxu0 %v1422
    %2068 = vmatprep.subr.mxu0 0.0
    %2069 = vmatpush1.msra.mxu0 %v1421
    %2070 = vmatprep.subr.mxu0 0.0
    %2071 = vmatpush2.msra.mxu0 0.0
    %2072 = vmatprep.subr.mxu0 0.0
    %2073 = vmatpush2.msra.mxu0 0.0
    %2074 = vmatprep.subr.mxu0 0.0
    %2075 = vmatpush2.msra.mxu0 0.0
    %2076 = vmatprep.subr.mxu0 0.0
    %2077 = vmatpush2.msra.mxu0 0.0
    %2078 = vmatprep.subr.mxu0 0.0
    %2079 = vmatpush2.msra.mxu0 0.0
    %2080 = vmatprep.subr.mxu0 0.0
    %2081 = vmatpush2.msra.mxu0 0.0
    %2082 = vmatprep.subr.mxu0 0.0
    %2083 = vmatpush2.msra.mxu0 0.0
    %2084 = vmatprep.subr.mxu0 0.0
    %2085 = vmatpush2.msra.mxu0 0.0
    %2086 = vmatprep.subr.mxu0 0.0
    %2087 = vmatpush2.msra.mxu0 0.0
    %2088 = vmatprep.subr.mxu0 0.0
    %2089 = vmatpush2.msra.mxu0 0.0
    %2090 = vmatprep.subr.mxu0 0.0
    %2091 = vmatpush2.msra.mxu0 0.0
    %2092 = vmatprep.subr.mxu0 0.0
    %2093 = vmatpush2.msra.mxu0 0.0
    %2094 = vmatprep.subr.mxu0 0.0
    %2095 = vmatpush2.msra.mxu0 0.0
    %2096 = vmatprep.subr.mxu0 0.0
    %2097 = vmatpush2.msra.mxu0 0.0
    %2098 = vmatprep.subr.mxu0 0.0
    %2099 = vmatpush2.msra.mxu0 0.0
    %2100 = vmatprep.subr.mxu0 0.0
    %2101 = vmatpush2.msra.mxu0 0.0
    %2102 = vmatprep.mubr.f32.mxu0 0.0
    %2103 = vmatmul.mubr.f32.gmra.mxu0 %v2036
    %v2104 = vpop.f32.mrf.mxu0
    %v2105 = vadd.f32 0.0, %v2104
    %v2106 = vpop.f32.mrf.mxu0
    %2107 = vdwg.mxu0
    %v2109 = vrot.slane %v2105, 4
    %v2110 = vrot.slane %v2105, 5
    %v2113 = vadd.f32 %v1518, %v2109
    %v2114 = vadd.f32 %v1519, %v2110
    %v2115 = vtanh.pop %v2113
    %v2116 = vtanh.pop %v2114
    %v2117 = vmul.f32 %v2115, 0.5
    %v2118 = vmul.f32 %v2116, 0.5
    %v2119 = vadd.f32 %v2117, 0.5
    %v2120 = vadd.f32 %v2118, 0.5
    %v2123 = vrot.slane %v2015, 7
    %v2124 = vrot.slane %v2016, 7
    %v2127 = vmul.f32 %v2119, %v2123
    %v2128 = vmul.f32 %v2120, %v2124
    %2131 = vrot.lane.b32.xlu0 %v2115, 64
    %v2132 = vpop.permute.xlu0 %2131
    %2133 = vrot.lane.b32.xlu0 %v2116, 64
    %v2134 = vpop.permute.xlu0 %2133
    %v2137 = vmul.f32 %v2119, %v2132
    %v2138 = vmul.f32 %v2120, %v2134
    %2141 = vrot.lane.b32.xlu0 %v2137, 32
    %v2142 = vpop.permute.xlu0 %2141
    %2143 = vrot.lane.b32.xlu0 %v2138, 32
    %v2144 = vpop.permute.xlu0 %2143
    %v2147 = vadd.f32 %v2127, %v2142
    %v2148 = vadd.f32 %v2128, %v2144
    %v2149 = vtanh.pop %v2147
    %v2150 = vtanh.pop %v2148
    %2153 = vrot.lane.b32.xlu0 %v2149, 64
    %v2154 = vpop.permute.xlu0 %2153
    %2155 = vrot.lane.b32.xlu0 %v2150, 64
    %v2156 = vpop.permute.xlu0 %2155
    %v2159 = vmul.f32 %v2119, %v2154
    %v2160 = vmul.f32 %v2120, %v2156
    %v2163 = vrot.slane %v2159, 4
    %v2164 = vrot.slane %v2160, 3
    %v2165 = vsel %vm471, %v2164, %v2163
    %2166 = vrot.lane.b32.xlu0 %v2165, 32
    %v2167 = vpop.permute.xlu0 %2166
    %v2168 = vsel %vm103, %v2167, 0
    %2170 = vmatprep.subr.mxu0 0.0
    %2171 = vmatpush1.msra.mxu0 0.0
    %2172 = vmatprep.subr.mxu0 0.0
    %2173 = vmatpush1.msra.mxu0 0.0
    %2174 = vmatprep.subr.mxu0 0.0
    %2175 = vmatpush1.msra.mxu0 0.0
    %2176 = vmatprep.subr.mxu0 0.0
    %2177 = vmatpush1.msra.mxu0 0.0
    %2178 = vmatprep.subr.mxu0 0.0
    %2179 = vmatpush1.msra.mxu0 0.0
    %2180 = vmatprep.subr.mxu0 0.0
    %2181 = vmatpush1.msra.mxu0 0.0
    %2182 = vmatprep.subr.mxu0 0.0
    %2183 = vmatpush1.msra.mxu0 0.0
    %2184 = vmatprep.subr.mxu0 0.0
    %2185 = vmatpush1.msra.mxu0 0.0
    %2186 = vmatprep.subr.mxu0 0.0
    %2187 = vmatpush1.msra.mxu0 0.0
    %2188 = vmatprep.subr.mxu0 0.0
    %2189 = vmatpush1.msra.mxu0 0.0
    %2190 = vmatprep.subr.mxu0 0.0
    %2191 = vmatpush1.msra.mxu0 0.0
    %2192 = vmatprep.subr.mxu0 0.0
    %2193 = vmatpush1.msra.mxu0 0.0
    %2194 = vmatprep.subr.mxu0 0.0
    %2195 = vmatpush1.msra.mxu0 %v1424
    %2196 = vmatprep.subr.mxu0 0.0
    %2197 = vmatpush1.msra.mxu0 %v1423
    %2198 = vmatprep.subr.mxu0 0.0
    %2199 = vmatpush1.msra.mxu0 %v1422
    %2200 = vmatprep.subr.mxu0 0.0
    %2201 = vmatpush1.msra.mxu0 %v1421
    %2202 = vmatprep.subr.mxu0 0.0
    %2203 = vmatpush2.msra.mxu0 0.0
    %2204 = vmatprep.subr.mxu0 0.0
    %2205 = vmatpush2.msra.mxu0 0.0
    %2206 = vmatprep.subr.mxu0 0.0
    %2207 = vmatpush2.msra.mxu0 0.0
    %2208 = vmatprep.subr.mxu0 0.0
    %2209 = vmatpush2.msra.mxu0 0.0
    %2210 = vmatprep.subr.mxu0 0.0
    %2211 = vmatpush2.msra.mxu0 0.0
    %2212 = vmatprep.subr.mxu0 0.0
    %2213 = vmatpush2.msra.mxu0 0.0
    %2214 = vmatprep.subr.mxu0 0.0
    %2215 = vmatpush2.msra.mxu0 0.0
    %2216 = vmatprep.subr.mxu0 0.0
    %2217 = vmatpush2.msra.mxu0 0.0
    %2218 = vmatprep.subr.mxu0 0.0
    %2219 = vmatpush2.msra.mxu0 0.0
    %2220 = vmatprep.subr.mxu0 0.0
    %2221 = vmatpush2.msra.mxu0 0.0
    %2222 = vmatprep.subr.mxu0 0.0
    %2223 = vmatpush2.msra.mxu0 0.0
    %2224 = vmatprep.subr.mxu0 0.0
    %2225 = vmatpush2.msra.mxu0 0.0
    %2226 = vmatprep.subr.mxu0 0.0
    %2227 = vmatpush2.msra.mxu0 0.0
    %2228 = vmatprep.subr.mxu0 0.0
    %2229 = vmatpush2.msra.mxu0 0.0
    %2230 = vmatprep.subr.mxu0 0.0
    %2231 = vmatpush2.msra.mxu0 0.0
    %2232 = vmatprep.subr.mxu0 0.0
    %2233 = vmatpush2.msra.mxu0 0.0
    %2234 = vmatprep.mubr.f32.mxu0 0.0
    %2235 = vmatmul.mubr.f32.gmra.mxu0 %v2168
    %v2236 = vpop.f32.mrf.mxu0
    %v2237 = vadd.f32 0.0, %v2236
    %v2238 = vpop.f32.mrf.mxu0
    %2239 = vdwg.mxu0
    %v2241 = vrot.slane %v2237, 3
    %v2242 = vrot.slane %v2237, 4
    %v2245 = vadd.f32 %v1518, %v2241
    %v2246 = vadd.f32 %v1519, %v2242
    %v2247 = vtanh.pop %v2245
    %v2248 = vtanh.pop %v2246
    %v2249 = vmul.f32 %v2247, 0.5
    %v2250 = vmul.f32 %v2248, 0.5
    %v2251 = vadd.f32 %v2249, 0.5
    %v2252 = vadd.f32 %v2250, 0.5
    %v2255 = vrot.slane %v2147, 7
    %v2256 = vrot.slane %v2148, 7
    %v2259 = vmul.f32 %v2251, %v2255
    %v2260 = vmul.f32 %v2252, %v2256
    %2263 = vrot.lane.b32.xlu0 %v2247, 64
    %v2264 = vpop.permute.xlu0 %2263
    %2265 = vrot.lane.b32.xlu0 %v2248, 64
    %v2266 = vpop.permute.xlu0 %2265
    %v2269 = vmul.f32 %v2251, %v2264
    %v2270 = vmul.f32 %v2252, %v2266
    %2273 = vrot.lane.b32.xlu0 %v2269, 32
    %v2274 = vpop.permute.xlu0 %2273
    %2275 = vrot.lane.b32.xlu0 %v2270, 32
    %v2276 = vpop.permute.xlu0 %2275
    %v2279 = vadd.f32 %v2259, %v2274
    %v2280 = vadd.f32 %v2260, %v2276
    %v2281 = vtanh.pop %v2279
    %v2282 = vtanh.pop %v2280
    %2285 = vrot.lane.b32.xlu0 %v2281, 64
    %v2286 = vpop.permute.xlu0 %2285
    %2287 = vrot.lane.b32.xlu0 %v2282, 64
    %v2288 = vpop.permute.xlu0 %2287
    %v2291 = vmul.f32 %v2251, %v2286
    %v2292 = vmul.f32 %v2252, %v2288
    %v2295 = vrot.slane %v2291, 5
    %v2296 = vrot.slane %v2292, 4
    %v2297 = vsel %vm471, %v2296, %v2295
    %2298 = vrot.lane.b32.xlu0 %v2297, 32
    %v2299 = vpop.permute.xlu0 %2298
    %v2300 = vsel %vm103, %v2299, 0
    %2302 = vmatprep.subr.mxu0 0.0
    %2303 = vmatpush1.msra.mxu0 0.0
    %2304 = vmatprep.subr.mxu0 0.0
    %2305 = vmatpush1.msra.mxu0 0.0
    %2306 = vmatprep.subr.mxu0 0.0
    %2307 = vmatpush1.msra.mxu0 0.0
    %2308 = vmatprep.subr.mxu0 0.0
    %2309 = vmatpush1.msra.mxu0 0.0
    %2310 = vmatprep.subr.mxu0 0.0
    %2311 = vmatpush1.msra.mxu0 0.0
    %2312 = vmatprep.subr.mxu0 0.0
    %2313 = vmatpush1.msra.mxu0 0.0
    %2314 = vmatprep.subr.mxu0 0.0
    %2315 = vmatpush1.msra.mxu0 0.0
    %2316 = vmatprep.subr.mxu0 0.0
    %2317 = vmatpush1.msra.mxu0 0.0
    %2318 = vmatprep.subr.mxu0 0.0
    %2319 = vmatpush1.msra.mxu0 0.0
    %2320 = vmatprep.subr.mxu0 0.0
    %2321 = vmatpush1.msra.mxu0 0.0
    %2322 = vmatprep.subr.mxu0 0.0
    %2323 = vmatpush1.msra.mxu0 0.0
    %2324 = vmatprep.subr.mxu0 0.0
    %2325 = vmatpush1.msra.mxu0 0.0
    %2326 = vmatprep.subr.mxu0 0.0
    %2327 = vmatpush1.msra.mxu0 %v1424
    %2328 = vmatprep.subr.mxu0 0.0
    %2329 = vmatpush1.msra.mxu0 %v1423
    %2330 = vmatprep.subr.mxu0 0.0
    %2331 = vmatpush1.msra.mxu0 %v1422
    %2332 = vmatprep.subr.mxu0 0.0
    %2333 = vmatpush1.msra.mxu0 %v1421
    %2334 = vmatprep.subr.mxu0 0.0
    %2335 = vmatpush2.msra.mxu0 0.0
    %2336 = vmatprep.subr.mxu0 0.0
    %2337 = vmatpush2.msra.mxu0 0.0
    %2338 = vmatprep.subr.mxu0 0.0
    %2339 = vmatpush2.msra.mxu0 0.0
    %2340 = vmatprep.subr.mxu0 0.0
    %2341 = vmatpush2.msra.mxu0 0.0
    %2342 = vmatprep.subr.mxu0 0.0
    %2343 = vmatpush2.msra.mxu0 0.0
    %2344 = vmatprep.subr.mxu0 0.0
    %2345 = vmatpush2.msra.mxu0 0.0
    %2346 = vmatprep.subr.mxu0 0.0
    %2347 = vmatpush2.msra.mxu0 0.0
    %2348 = vmatprep.subr.mxu0 0.0
    %2349 = vmatpush2.msra.mxu0 0.0
    %2350 = vmatprep.subr.mxu0 0.0
    %2351 = vmatpush2.msra.mxu0 0.0
    %2352 = vmatprep.subr.mxu0 0.0
    %2353 = vmatpush2.msra.mxu0 0.0
    %2354 = vmatprep.subr.mxu0 0.0
    %2355 = vmatpush2.msra.mxu0 0.0
    %2356 = vmatprep.subr.mxu0 0.0
    %2357 = vmatpush2.msra.mxu0 0.0
    %2358 = vmatprep.subr.mxu0 0.0
    %2359 = vmatpush2.msra.mxu0 0.0
    %2360 = vmatprep.subr.mxu0 0.0
    %2361 = vmatpush2.msra.mxu0 0.0
    %2362 = vmatprep.subr.mxu0 0.0
    %2363 = vmatpush2.msra.mxu0 0.0
    %2364 = vmatprep.subr.mxu0 0.0
    %2365 = vmatpush2.msra.mxu0 0.0
    %2366 = vmatprep.mubr.f32.mxu0 0.0
    %2367 = vmatmul.mubr.f32.gmra.mxu0 %v2300
    %v2368 = vpop.f32.mrf.mxu0
    %v2369 = vadd.f32 0.0, %v2368
    %v2370 = vpop.f32.mrf.mxu0
    %2371 = vdwg.mxu0
    %v2373 = vrot.slane %v2369, 2
    %v2374 = vrot.slane %v2369, 3
    %v2377 = vadd.f32 %v1518, %v2373
    %v2378 = vadd.f32 %v1519, %v2374
    %v2379 = vtanh.pop %v2377
    %v2380 = vtanh.pop %v2378
    %v2381 = vmul.f32 %v2379, 0.5
    %v2382 = vmul.f32 %v2380, 0.5
    %v2383 = vadd.f32 %v2381, 0.5
    %v2384 = vadd.f32 %v2382, 0.5
    %v2387 = vrot.slane %v2279, 7
    %v2388 = vrot.slane %v2280, 7
    %v2391 = vmul.f32 %v2383, %v2387
    %v2392 = vmul.f32 %v2384, %v2388
    %2395 = vrot.lane.b32.xlu0 %v2379, 64
    %v2396 = vpop.permute.xlu0 %2395
    %2397 = vrot.lane.b32.xlu0 %v2380, 64
    %v2398 = vpop.permute.xlu0 %2397
    %v2401 = vmul.f32 %v2383, %v2396
    %v2402 = vmul.f32 %v2384, %v2398
    %2405 = vrot.lane.b32.xlu0 %v2401, 32
    %v2406 = vpop.permute.xlu0 %2405
    %2407 = vrot.lane.b32.xlu0 %v2402, 32
    %v2408 = vpop.permute.xlu0 %2407
    %v2411 = vadd.f32 %v2391, %v2406
    %v2412 = vadd.f32 %v2392, %v2408
    %v2413 = vtanh.pop %v2411
    %v2414 = vtanh.pop %v2412
    %2417 = vrot.lane.b32.xlu0 %v2413, 64
    %v2418 = vpop.permute.xlu0 %2417
    %2419 = vrot.lane.b32.xlu0 %v2414, 64
    %v2420 = vpop.permute.xlu0 %2419
    %v2423 = vmul.f32 %v2383, %v2418
    %v2424 = vmul.f32 %v2384, %v2420
    %v2427 = vrot.slane %v2423, 6
    %v2428 = vrot.slane %v2424, 5
    %v2429 = vsel %vm471, %v2428, %v2427
    %2430 = vrot.lane.b32.xlu0 %v2429, 32
    %v2431 = vpop.permute.xlu0 %2430
    %v2432 = vsel %vm103, %v2431, 0
    %2434 = vmatprep.subr.mxu0 0.0
    %2435 = vmatpush1.msra.mxu0 0.0
    %2436 = vmatprep.subr.mxu0 0.0
    %2437 = vmatpush1.msra.mxu0 0.0
    %2438 = vmatprep.subr.mxu0 0.0
    %2439 = vmatpush1.msra.mxu0 0.0
    %2440 = vmatprep.subr.mxu0 0.0
    %2441 = vmatpush1.msra.mxu0 0.0
    %2442 = vmatprep.subr.mxu0 0.0
    %2443 = vmatpush1.msra.mxu0 0.0
    %2444 = vmatprep.subr.mxu0 0.0
    %2445 = vmatpush1.msra.mxu0 0.0
    %2446 = vmatprep.subr.mxu0 0.0
    %2447 = vmatpush1.msra.mxu0 0.0
    %2448 = vmatprep.subr.mxu0 0.0
    %2449 = vmatpush1.msra.mxu0 0.0
    %2450 = vmatprep.subr.mxu0 0.0
    %2451 = vmatpush1.msra.mxu0 0.0
    %2452 = vmatprep.subr.mxu0 0.0
    %2453 = vmatpush1.msra.mxu0 0.0
    %2454 = vmatprep.subr.mxu0 0.0
    %2455 = vmatpush1.msra.mxu0 0.0
    %2456 = vmatprep.subr.mxu0 0.0
    %2457 = vmatpush1.msra.mxu0 0.0
    %2458 = vmatprep.subr.mxu0 0.0
    %2459 = vmatpush1.msra.mxu0 %v1424
    %2460 = vmatprep.subr.mxu0 0.0
    %2461 = vmatpush1.msra.mxu0 %v1423
    %2462 = vmatprep.subr.mxu0 0.0
    %2463 = vmatpush1.msra.mxu0 %v1422
    %2464 = vmatprep.subr.mxu0 0.0
    %2465 = vmatpush1.msra.mxu0 %v1421
    %2466 = vmatprep.subr.mxu0 0.0
    %2467 = vmatpush2.msra.mxu0 0.0
    %2468 = vmatprep.subr.mxu0 0.0
    %2469 = vmatpush2.msra.mxu0 0.0
    %2470 = vmatprep.subr.mxu0 0.0
    %2471 = vmatpush2.msra.mxu0 0.0
    %2472 = vmatprep.subr.mxu0 0.0
    %2473 = vmatpush2.msra.mxu0 0.0
    %2474 = vmatprep.subr.mxu0 0.0
    %2475 = vmatpush2.msra.mxu0 0.0
    %2476 = vmatprep.subr.mxu0 0.0
    %2477 = vmatpush2.msra.mxu0 0.0
    %2478 = vmatprep.subr.mxu0 0.0
    %2479 = vmatpush2.msra.mxu0 0.0
    %2480 = vmatprep.subr.mxu0 0.0
    %2481 = vmatpush2.msra.mxu0 0.0
    %2482 = vmatprep.subr.mxu0 0.0
    %2483 = vmatpush2.msra.mxu0 0.0
    %2484 = vmatprep.subr.mxu0 0.0
    %2485 = vmatpush2.msra.mxu0 0.0
    %2486 = vmatprep.subr.mxu0 0.0
    %2487 = vmatpush2.msra.mxu0 0.0
    %2488 = vmatprep.subr.mxu0 0.0
    %2489 = vmatpush2.msra.mxu0 0.0
    %2490 = vmatprep.subr.mxu0 0.0
    %2491 = vmatpush2.msra.mxu0 0.0
    %2492 = vmatprep.subr.mxu0 0.0
    %2493 = vmatpush2.msra.mxu0 0.0
    %2494 = vmatprep.subr.mxu0 0.0
    %2495 = vmatpush2.msra.mxu0 0.0
    %2496 = vmatprep.subr.mxu0 0.0
    %2497 = vmatpush2.msra.mxu0 0.0
    %2498 = vmatprep.mubr.f32.mxu0 0.0
    %2499 = vmatmul.mubr.f32.gmra.mxu0 %v2432
    %v2500 = vpop.f32.mrf.mxu0
    %v2501 = vadd.f32 0.0, %v2500
    %v2502 = vpop.f32.mrf.mxu0
    %2503 = vdwg.mxu0
    %v2505 = vrot.slane %v2501, 1
    %v2506 = vrot.slane %v2501, 2
    %v2509 = vadd.f32 %v1518, %v2505
    %v2510 = vadd.f32 %v1519, %v2506
    %v2511 = vtanh.pop %v2509
    %v2512 = vtanh.pop %v2510
    %v2513 = vmul.f32 %v2511, 0.5
    %v2514 = vmul.f32 %v2512, 0.5
    %v2515 = vadd.f32 %v2513, 0.5
    %v2516 = vadd.f32 %v2514, 0.5
    %v2519 = vrot.slane %v2411, 7
    %v2520 = vrot.slane %v2412, 7
    %v2523 = vmul.f32 %v2515, %v2519
    %v2524 = vmul.f32 %v2516, %v2520
    %2527 = vrot.lane.b32.xlu0 %v2511, 64
    %v2528 = vpop.permute.xlu0 %2527
    %2529 = vrot.lane.b32.xlu0 %v2512, 64
    %v2530 = vpop.permute.xlu0 %2529
    %v2533 = vmul.f32 %v2515, %v2528
    %v2534 = vmul.f32 %v2516, %v2530
    %2537 = vrot.lane.b32.xlu0 %v2533, 32
    %v2538 = vpop.permute.xlu0 %2537
    %2539 = vrot.lane.b32.xlu0 %v2534, 32
    %v2540 = vpop.permute.xlu0 %2539
    %v2543 = vadd.f32 %v2523, %v2538
    %v2544 = vadd.f32 %v2524, %v2540
    %v2545 = vtanh.pop %v2543
    %v2546 = vtanh.pop %v2544
    %2549 = vrot.lane.b32.xlu0 %v2545, 64
    %v2550 = vpop.permute.xlu0 %2549
    %2551 = vrot.lane.b32.xlu0 %v2546, 64
    %v2552 = vpop.permute.xlu0 %2551
    %v2555 = vmul.f32 %v2515, %v2550
    %v2556 = vmul.f32 %v2516, %v2552
    %v2557 = vsel %vm1390, %v1634, %v1764
    %v2558 = vsel %vm1390, %v1635, %v1765
    %v2559 = vsel %vm1393, %v2557, %v1895
    %v2560 = vsel %vm1393, %v2558, %v1896
    %v2561 = vsel %vm1396, %v2559, %v2027
    %v2562 = vsel %vm1396, %v2560, %v2028
    %v2563 = vsel %vm1399, %v2561, %v2159
    %v2564 = vsel %vm1399, %v2562, %v2160
    %v2565 = vsel %vm1402, %v2563, %v2291
    %v2566 = vsel %vm1402, %v2564, %v2292
    %v2567 = vsel %vm1405, %v2565, %v2423
    %v2568 = vsel %vm1405, %v2566, %v2424
    %v2569 = vsel %vm1408, %v2567, %v2555
    %v2570 = vsel %vm1408, %v2568, %v2556
    %v2571 = vld [vmem:[#allocation10] sm:$0xff]
    %v2572 = vld [vmem:[#allocation10 + $0x8] sm:$0xff]
    %v2573 = vld [vmem:[#allocation10 + $0x10] sm:$0xff]
    %v2574 = vld [vmem:[#allocation10 + $0x18] sm:$0xff]
    %v2575 = vld [vmem:[%s7] sm:$0x1]
    %v2577 = vlaneseq
    %v2578 = vshrl.u32 %v2577, 7
    %v2579 = vsub.s32 0, %v2578
    %v2580 = vrot.slane %v2575, %v2579
    %2584 = vrot.lane.b32.xlu0 %v2569, 32
    %v2585 = vpop.permute.xlu0 %2584
    %2586 = vrot.lane.b32.xlu0 %v2570, 32
    %v2587 = vpop.permute.xlu0 %2586
    %v2588 = vsel %vm103, %v2585, 0
    %v2590 = vsel %vm103, %v2587, 0
    %2592 = vmatprep.subr.mxu0 0.0
    %2593 = vmatpush1.msra.mxu0 0.0
    %2594 = vmatprep.subr.mxu0 0.0
    %2595 = vmatpush1.msra.mxu0 0.0
    %2596 = vmatprep.subr.mxu0 0.0
    %2597 = vmatpush1.msra.mxu0 0.0
    %2598 = vmatprep.subr.mxu0 0.0
    %2599 = vmatpush1.msra.mxu0 0.0
    %2600 = vmatprep.subr.mxu0 0.0
    %2601 = vmatpush1.msra.mxu0 0.0
    %2602 = vmatprep.subr.mxu0 0.0
    %2603 = vmatpush1.msra.mxu0 0.0
    %2604 = vmatprep.subr.mxu0 0.0
    %2605 = vmatpush1.msra.mxu0 0.0
    %2606 = vmatprep.subr.mxu0 0.0
    %2607 = vmatpush1.msra.mxu0 0.0
    %2608 = vmatprep.subr.mxu0 0.0
    %2609 = vmatpush1.msra.mxu0 0.0
    %2610 = vmatprep.subr.mxu0 0.0
    %2611 = vmatpush1.msra.mxu0 0.0
    %2612 = vmatprep.subr.mxu0 0.0
    %2613 = vmatpush1.msra.mxu0 0.0
    %2614 = vmatprep.subr.mxu0 0.0
    %2615 = vmatpush1.msra.mxu0 0.0
    %2616 = vmatprep.subr.mxu0 0.0
    %2617 = vmatpush1.msra.mxu0 %v2574
    %2618 = vmatprep.subr.mxu0 0.0
    %2619 = vmatpush1.msra.mxu0 %v2573
    %2620 = vmatprep.subr.mxu0 0.0
    %2621 = vmatpush1.msra.mxu0 %v2572
    %2622 = vmatprep.subr.mxu0 0.0
    %2623 = vmatpush1.msra.mxu0 %v2571
    %2624 = vmatprep.subr.mxu0 0.0
    %2625 = vmatpush2.msra.mxu0 0.0
    %2626 = vmatprep.subr.mxu0 0.0
    %2627 = vmatpush2.msra.mxu0 0.0
    %2628 = vmatprep.subr.mxu0 0.0
    %2629 = vmatpush2.msra.mxu0 0.0
    %2630 = vmatprep.subr.mxu0 0.0
    %2631 = vmatpush2.msra.mxu0 0.0
    %2632 = vmatprep.subr.mxu0 0.0
    %2633 = vmatpush2.msra.mxu0 0.0
    %2634 = vmatprep.subr.mxu0 0.0
    %2635 = vmatpush2.msra.mxu0 0.0
    %2636 = vmatprep.subr.mxu0 0.0
    %2637 = vmatpush2.msra.mxu0 0.0
    %2638 = vmatprep.subr.mxu0 0.0
    %2639 = vmatpush2.msra.mxu0 0.0
    %2640 = vmatprep.subr.mxu0 0.0
    %2641 = vmatpush2.msra.mxu0 0.0
    %2642 = vmatprep.subr.mxu0 0.0
    %2643 = vmatpush2.msra.mxu0 0.0
    %2644 = vmatprep.subr.mxu0 0.0
    %2645 = vmatpush2.msra.mxu0 0.0
    %2646 = vmatprep.subr.mxu0 0.0
    %2647 = vmatpush2.msra.mxu0 0.0
    %2648 = vmatprep.subr.mxu0 0.0
    %2649 = vmatpush2.msra.mxu0 0.0
    %2650 = vmatprep.subr.mxu0 0.0
    %2651 = vmatpush2.msra.mxu0 0.0
    %2652 = vmatprep.subr.mxu0 0.0
    %2653 = vmatpush2.msra.mxu0 0.0
    %2654 = vmatprep.subr.mxu0 0.0
    %2655 = vmatpush2.msra.mxu0 0.0
    %2656 = vmatprep.mubr.f32.mxu0 0.0
    %2657 = vmatmul.mubr.f32.gmra.mxu0 %v2588
    %v2658 = vpop.f32.mrf.mxu0
    %v2659 = vadd.f32 %v2580, %v2658
    %v2660 = vpop.f32.mrf.mxu0
    %2661 = vmatprep.mubr.f32.mxu0 0.0
    %2662 = vmatmul.mubr.f32.gmra.mxu0 %v2590
    %v2663 = vpop.f32.mrf.mxu0
    %v2664 = vadd.f32 %v2580, %v2663
    %v2665 = vpop.f32.mrf.mxu0
    %2666 = vdwg.mxu0
    %v2667 = vmul.f32 %v2659, %v145
    %v2668 = vmul.f32 %v2664, %v146
    %v2669 = vadd.f32 %v2667, %v119
    %v2670 = vadd.f32 %v2668, %v120
    %2671 = vst.msk [vmem:[#allocation11] sm:$0xff] %vm103, %v2669
    %2672 = vst.msk [vmem:[#allocation11 + $0x8] sm:$0xff] %vm103, %v2670
    %2675 = vrot.lane.b32.xlu0 %v145, 96
    %v2676 = vpop.permute.xlu0 %2675
    %2677 = vrot.lane.b32.xlu0 %v146, 96
    %v2678 = vpop.permute.xlu0 %2677
    %v2681 = vmul.f32 %v2555, %v2676
    %v2682 = vmul.f32 %v2556, %v2678
    %2685 = vrot.lane.b32.xlu0 %v119, 96
    %v2686 = vpop.permute.xlu0 %2685
    %2687 = vrot.lane.b32.xlu0 %v120, 96
    %v2688 = vpop.permute.xlu0 %2687
    %v2691 = vadd.f32 %v2681, %v2686
    %v2692 = vadd.f32 %v2682, %v2688
    %v2695 = vrot.slane %v2692, 7
    %2696 = vrot.lane.b32.xlu0 %v2691, 32
    %v2697 = vpop.permute.xlu0 %2696
    %2698 = vrot.lane.b32.xlu0 %v2695, 32
    %v2699 = vpop.permute.xlu0 %2698
    %vm2702 = vcmask 261127
    %2703 = vst.msk [vmem:[#allocation12 - $0x7] sm:$0x80] %vm2702, %v2697
    %vm2704 = vcmask 253952
    %2705 = vst.msk [vmem:[#allocation12 + $0x1] sm:$0x1] %vm2704, %v2699
    // Predicated region
    $region54: #{tpu_custom_call.1} parent=1 // pred_check
      _
    $region55: #{tpu_custom_call.1} parent=1 // pred_check_branch
      %2707 = sbr.rel (0) target = $region57
    $region56: #{tpu_custom_call.1} parent=1 // pred_region
      %s2709 = ssub.s32 256, 256
      %2710 = vsyncadd [#allocation4], %s2709
      %s2711 = sshll.u32 [#allocation11], 4
      %s2712 = int_to_ptr.vmem [resolvable:$true] %s2711
      %2717 = dma.vmem_to_hbm [thread:$0]  %s2712, 256, %s8, [#allocation4], 128, 128, 8
    $region57: #{tpu_custom_call.1} parent=1 // pred_fallthru
      _
    // Predicated region
    $region58: #{tpu_custom_call.1} parent=1 // pred_check
      _
    $region59: #{tpu_custom_call.1} parent=1 // pred_check_branch
      %2719 = sbr.rel (0) target = $region61
    $region60: #{tpu_custom_call.1} parent=1 // pred_region
      %s2721 = ssub.s32 32, 32
      %2722 = vsyncadd [#allocation13], %s2721
      %s2724 = sshll.u32 [#allocation12], 4
      %s2725 = int_to_ptr.vmem [resolvable:$true] %s2724
      %2727 = dma.vmem_to_hbm [thread:$0]  %s2725, 32, %s9, [#allocation13]
    $region61: #{tpu_custom_call.1} parent=1 // pred_fallthru
      _
    // Predicated region
    $region62: #{tpu_custom_call.1} parent=1 // pred_check
      _
    $region63: #{tpu_custom_call.1} parent=1 // pred_check_branch
      %2729 = sbr.rel (0) target = $region65
    $region64: #{tpu_custom_call.1} parent=1 // pred_region
      %2730 = dma.done [#allocation4], 256
    $region65: #{tpu_custom_call.1} parent=1 // pred_fallthru
      _
    // Predicated region
    $region66: #{tpu_custom_call.1} parent=1 // pred_check
      _
    $region67: #{tpu_custom_call.1} parent=1 // pred_check_branch
      %2732 = sbr.rel (0) target = $region69
    $region68: #{tpu_custom_call.1} parent=1 // pred_region
      %2733 = dma.done [#allocation13], 32
    $region69: #{tpu_custom_call.1} parent=1 // pred_fallthru
      _
    %2734 = vsyncpa [#allocation3], 1
    %2735 = vsyncpa [#allocation6], 1
    %2736 = vsyncpa [#allocation9], 1
    %2737 = vsyncpa [#allocation4], 1
    %2738 = vsyncpa [#allocation13], 1

</llo_original>
